<compile_context>
chip_gen: v7x
topology: tpu7x:2x2x1
jax: 0.10.0
libtpu: 0.0.40
codegen_flags: <defaults>
</compile_context>

<pallas_src>
import math

import jax
import jax.numpy as jnp
import numpy as np
from jax import lax
from jax.experimental import pallas as pl
from jax.experimental.pallas import tpu as pltpu

_INV_SQRT2 = 1.0 / math.sqrt(2.0)
_LN_EPS = 1e-5


def _gelu(x):
    # exact (erf-based) GELU, matching torch.nn.GELU()
    return 0.5 * x * (1.0 + lax.erf(x * _INV_SQRT2))


def _layernorm(x, g, b):
    mu = jnp.mean(x, axis=-1, keepdims=True)
    xc = x - mu
    var = jnp.mean(xc * xc, axis=-1, keepdims=True)
    return xc * lax.rsqrt(var + _LN_EPS) * g + b


# --------------------------------- fused kernel ---------------------------------
def _make_layer_kernel(H, W, C, kernel_sizes, max_pad):
    WC = W * C
    n_levels = len(kernel_sizes)

    def kernel(*refs):
        x_ref, avgc_ref, mavg_ref, shift_ref = refs[0:4]
        (n1g, n1b, qw, qb, cw, cb, gw, gb) = refs[4:12]
        focal_refs = refs[12:12 + n_levels]
        (hw, hb, pw, pb, n2g, n2b, f1w, f1b, f2w, f2b,
         out_ref) = refs[12 + n_levels:]

        d = pl.program_id(1)                       # depth index (sequential carry)

        @pl.when(d == 0)
        def _():
            out_ref[...] = x_ref[...]

        x = out_ref[0]                             # (H, WC) carry, resident in VMEM
        shortcut = x
        avgc = avgc_ref[...]

        def layernorm_sp(v, g, b):
            # per-(i, j) LayerNorm over the C channels of each C-lane block;
            # block statistics via one block-averaging matmul on the MXU.
            mu = jnp.dot(v, avgc, preferred_element_type=jnp.float32)
            vc = v - mu
            var = jnp.dot(vc * vc, avgc, preferred_element_type=jnp.float32)
            return vc * lax.rsqrt(var + _LN_EPS) * g + b

        # --- FocalModulation ---
        xn = layernorm_sp(x, n1g[0], n1b[0])

        # f-linear split into q / ctx / gates (block-diagonal weights, aligned slabs)
        q = jnp.dot(xn, qw[0], preferred_element_type=jnp.float32) + qb[0]
        ctx = jnp.dot(xn, cw[0], preferred_element_type=jnp.float32) + cb[0]
        gates = jnp.dot(xn, gw[0], preferred_element_type=jnp.float32) + gb[0]
        # gates: (H, n_gates*WC); gate of level l occupies lanes [l*WC, (l+1)*WC)

        ctx_all = jnp.zeros((H, WC), jnp.float32)
        for l, k in enumerate(kernel_sizes):
            pad = k // 2
            acc = jnp.zeros((H, WC), jnp.float32)
            for di in range(k):
                r = di - pad
                # vertical tap: masked row shift as a tiny selection matmul (MXU)
                rowsh = jnp.dot(shift_ref[r + max_pad], ctx,
                                preferred_element_type=jnp.float32)
                for dj in range(k):
                    s = dj - pad
                    tap = rowsh if s == 0 else pltpu.roll(
                        rowsh, shift=(-s * C) % WC, axis=1)
                    # conv weights are host-tiled over W and pre-zeroed where the
                    # horizontal tap would read outside the image (handles roll wrap)
                    acc = acc + tap * focal_refs[l][0, di, dj:dj + 1, :]
            ctx = _gelu(acc)
            ctx_all = ctx_all + ctx * gates[:, l * WC:(l + 1) * WC]

        # global context: spatial mean of the last level per channel, then GELU
        glob = jnp.dot(ctx, mavg_ref[...], preferred_element_type=jnp.float32)
        glob = _gelu(jnp.mean(glob, axis=0, keepdims=True))          # (1, WC)
        ctx_all = ctx_all + glob * gates[:, n_levels * WC:(n_levels + 1) * WC]

        # h: 1x1 conv (per-position linear), modulation, projection
        mod = jnp.dot(ctx_all, hw[0], preferred_element_type=jnp.float32) + hb[0]
        x_out = q * mod
        x_out = jnp.dot(x_out, pw[0], preferred_element_type=jnp.float32) + pb[0]

        # residual 1 (gamma_1 == 1.0, drop_path == identity)
        x = shortcut + x_out

        # --- MLP branch ---
        xn2 = layernorm_sp(x, n2g[0], n2b[0])
        hid = _gelu(jnp.dot(xn2, f1w[0], preferred_element_type=jnp.float32) + f1b[0])
        mlp = jnp.dot(hid, f2w[0], preferred_element_type=jnp.float32) + f2b[0]

        # residual 2 (gamma_2 == 1.0)
        out_ref[0] = (x + mlp).astype(out_ref.dtype)

    return kernel


def _const_spec(arr):
    nd = arr.ndim
    return pl.BlockSpec(arr.shape, lambda b, d, _n=nd: (0,) * _n)


def _stacked_spec(arr):
    blk = (1,) + tuple(arr.shape[1:])
    tail = (0,) * (arr.ndim - 1)
    return pl.BlockSpec(blk, lambda b, d, _t=tail: (d,) + _t)


def basic_layer_pallas(x, H, W, blocks, kernel_sizes):
    """BasicLayer.forward with downsample=None: returns (x, H, W, x, H, W)."""
    B, L, C = x.shape
    assert L == H * W
    depth = len(blocks)
    n_levels = len(kernel_sizes)
    n_gates = n_levels + 1
    WC = W * C
    max_pad = max(kernel_sizes) // 2

    # ------------- host-side (free) weight preprocessing into lane-dense form -------------
    eye_w = jnp.eye(W, dtype=jnp.float32)

    def bd(w):                       # (Cin, Cout) -> block-diagonal (W*Cin, W*Cout)
        return jnp.kron(eye_w, w.astype(jnp.float32))

    def tile_vec(v):                 # (1, n) -> (1, W*n)
        return jnp.tile(v.astype(jnp.float32), (1, W))

    # per C-lane-block averaging (LayerNorm stats) and per-channel W-averaging (global ctx)
    avg_c = jnp.kron(eye_w, jnp.full((C, C), 1.0 / C, jnp.float32))
    mavg_w = jnp.kron(jnp.full((W, W), 1.0 / W, jnp.float32),
                      jnp.eye(C, dtype=jnp.float32))

    # masked row-shift selection matrices for the vertical conv taps
    shift_np = np.zeros((2 * max_pad + 1, H, H), np.float32)
    for r in range(-max_pad, max_pad + 1):
        for i in range(H):
            if 0 <= i + r < H:
                shift_np[r + max_pad, i, i + r] = 1.0
    shift_m = jnp.asarray(shift_np)

    j_of_lane = np.repeat(np.arange(W), C)          # (WC,) -> j index of each lane

    keys = ["n1_g", "n1_b", "q_w", "q_b", "c_w", "c_b", "g_w", "g_b",
            "h_w", "h_b", "p_w", "p_b", "n2_g", "n2_b",
            "f1_w", "f1_b", "f2_w", "f2_b"]
    per_depth = {k: [] for k in keys}
    focal_per_depth = [[] for _ in range(n_levels)]

    for p in blocks:
        fw, fb = p["f_w"], p["f_b"]
        qw, cw, gw = fw[:, :C], fw[:, C:2 * C], fw[:, 2 * C:]
        qb, cb, gb = fb[:, :C], fb[:, C:2 * C], fb[:, 2 * C:]
        per_depth["n1_g"].append(tile_vec(p["n1_g"]))
        per_depth["n1_b"].append(tile_vec(p["n1_b"]))
        per_depth["q_w"].append(bd(qw))
        per_depth["q_b"].append(tile_vec(qb))
        per_depth["c_w"].append(bd(cw))
        per_depth["c_b"].append(tile_vec(cb))
        # each gate value is broadcast over the C lanes of its spatial block
        gate_cols = [bd(jnp.outer(gw[:, l], jnp.ones((C,), jnp.float32)))
                     for l in range(n_gates)]
        per_depth["g_w"].append(jnp.concatenate(gate_cols, axis=1))
        per_depth["g_b"].append(jnp.repeat(gb, WC, axis=1))
        per_depth["h_w"].append(bd(p["h_w"]))
        per_depth["h_b"].append(tile_vec(p["h_b"]))
        per_depth["p_w"].append(bd(p["proj_w"]))
        per_depth["p_b"].append(tile_vec(p["proj_b"]))
        per_depth["n2_g"].append(tile_vec(p["n2_g"]))
        per_depth["n2_b"].append(tile_vec(p["n2_b"]))
        per_depth["f1_w"].append(bd(p["fc1_w"]))
        per_depth["f1_b"].append(tile_vec(p["fc1_b"]))
        per_depth["f2_w"].append(bd(p["fc2_w"]))
        per_depth["f2_b"].append(tile_vec(p["fc2_b"]))
        for l, k in enumerate(kernel_sizes):
            pad = k // 2
            wt = jnp.tile(p[f"focal_w{l}"].astype(jnp.float32), (1, 1, W))  # (k,k,WC)
            mask = np.zeros((k, k, WC), np.float32)
            for dj in range(k):
                s = dj - pad
                mask[:, dj, :] = ((j_of_lane + s >= 0) &
                                  (j_of_lane + s < W)).astype(np.float32)
            focal_per_depth[l].append(wt * jnp.asarray(mask))

    stacked = {k: jnp.stack(v, axis=0) for k, v in per_depth.items()}
    focal_ops = [jnp.stack(v, axis=0) for v in focal_per_depth]

    # lane-dense I/O layout: x_sp[b, i, j*C + c] = x[b, i*W + j, c]
    x_sp = x.reshape(B, H, WC)

    operands = [x_sp, avg_c, mavg_w, shift_m,
                stacked["n1_g"], stacked["n1_b"],
                stacked["q_w"], stacked["q_b"],
                stacked["c_w"], stacked["c_b"],
                stacked["g_w"], stacked["g_b"],
                *focal_ops,
                stacked["h_w"], stacked["h_b"],
                stacked["p_w"], stacked["p_b"],
                stacked["n2_g"], stacked["n2_b"],
                stacked["f1_w"], stacked["f1_b"],
                stacked["f2_w"], stacked["f2_b"]]

    x_spec = pl.BlockSpec((1, H, WC), lambda b, d: (b, 0, 0))
    out_spec = pl.BlockSpec((1, H, WC), lambda b, d: (b, 0, 0))
    in_specs = [x_spec,
                _const_spec(avg_c), _const_spec(mavg_w), _const_spec(shift_m)]
    in_specs += [_stacked_spec(a) for a in operands[4:]]

    kernel = _make_layer_kernel(H, W, C, kernel_sizes, max_pad)

    out = pl.pallas_call(
        kernel,
        out_shape=jax.ShapeDtypeStruct((B, H, WC), x.dtype),
        grid_spec=pltpu.PrefetchScalarGridSpec(
            num_scalar_prefetch=0,
            grid=(B, depth),
            in_specs=in_specs,
            out_specs=out_spec,
        ),
        compiler_params=pltpu.CompilerParams(
            dimension_semantics=("parallel", "arbitrary")),
    )(*operands)

    out = out.reshape(B, L, C)
    return out, H, W, out, H, W


# ------------------------- pure-JAX reference (for checking) -------------------------
def focal_block_ref(x, p, H, W, kernel_sizes):
    B, L, C = x.shape
    n_levels = len(kernel_sizes)
    shortcut = x
    xn = _layernorm(x, p["n1_g"], p["n1_b"])
    xf = jnp.dot(xn, p["f_w"], precision="highest") + p["f_b"]
    q = xf[..., :C]
    ctx = xf[..., C:2 * C].reshape(B, H, W, C)
    gates = xf[..., 2 * C:].reshape(B, H, W, n_levels + 1)
    ctx_all = jnp.zeros_like(ctx)
    for l, k in enumerate(kernel_sizes):
        wk = p[f"focal_w{l}"].reshape(k, k, 1, C)
        ctx = lax.conv_general_dilated(
            ctx, wk, window_strides=(1, 1), padding="SAME",
            dimension_numbers=("NHWC", "HWIO", "NHWC"),
            feature_group_count=C, precision="highest")
        ctx = _gelu(ctx)
        ctx_all = ctx_all + ctx * gates[..., l:l + 1]
    ctx_global = _gelu(jnp.mean(ctx, axis=(1, 2), keepdims=True))
    ctx_all = ctx_all + ctx_global * gates[..., n_levels:]
    mod = jnp.dot(ctx_all.reshape(B, L, C), p["h_w"], precision="highest") + p["h_b"]
    x_out = q * mod
    x_out = jnp.dot(x_out, p["proj_w"], precision="highest") + p["proj_b"]
    x = shortcut + x_out
    xn2 = _layernorm(x, p["n2_g"], p["n2_b"])
    hid = _gelu(jnp.dot(xn2, p["fc1_w"], precision="highest") + p["fc1_b"])
    return x + jnp.dot(hid, p["fc2_w"], precision="highest") + p["fc2_b"]


def basic_layer_ref(x, H, W, blocks, kernel_sizes):
    for p in blocks:
        x = focal_block_ref(x, p, H, W, kernel_sizes)
    return x, H, W, x, H, W


# ------------------------------ parameter construction ------------------------------
def init_block_params(key, dim, hidden, kernel_sizes):
    n_gates = len(kernel_sizes) + 1
    ks = jax.random.split(key, 6 + len(kernel_sizes))

    def lin(k, fin, fout):
        return jax.random.normal(k, (fin, fout), jnp.float32) / math.sqrt(fin)

    p = {
        "n1_g": jnp.ones((1, dim), jnp.float32),
        "n1_b": jnp.zeros((1, dim), jnp.float32),
        "f_w": lin(ks[0], dim, 2 * dim + n_gates),
        "f_b": 0.02 * jax.random.normal(ks[1], (1, 2 * dim + n_gates), jnp.float32),
        "h_w": lin(ks[2], dim, dim),
        "h_b": jnp.zeros((1, dim), jnp.float32),
        "proj_w": lin(ks[3], dim, dim),
        "proj_b": jnp.zeros((1, dim), jnp.float32),
        "n2_g": jnp.ones((1, dim), jnp.float32),
        "n2_b": jnp.zeros((1, dim), jnp.float32),
        "fc1_w": lin(ks[4], dim, hidden),
        "fc1_b": jnp.zeros((1, hidden), jnp.float32),
        "fc2_w": lin(ks[5], hidden, dim),
        "fc2_b": jnp.zeros((1, dim), jnp.float32),
    }
    for l, k in enumerate(kernel_sizes):
        p[f"focal_w{l}"] = 0.1 * jax.random.normal(ks[6 + l], (k, k, dim), jnp.float32)
    return p


if __name__ == "__main__":
    # BasicLayer(dim=16, depth=2, mlp_ratio=4., focal_level=2, focal_window=3,
    #            downsample=None, use_postln=False, use_layerscale=False, drop=0.)
    B, H, W, dim = 2, 8, 8, 16          # W * dim = 128 -> lane-dense spatial rows
    depth = 2
    mlp_ratio = 4.0
    focal_level, focal_window, focal_factor = 2, 3, 2
    kernel_sizes = [focal_factor * l + focal_window for l in range(focal_level)]
    L = H * W
    hidden = int(dim * mlp_ratio)

    key = jax.random.PRNGKey(0)
    key, xk = jax.random.split(key)
    x = jax.random.normal(xk, (B, L, dim), jnp.float32)

    blocks = []
    for _ in range(depth):
        key, bk = jax.random.split(key)
        blocks.append(init_block_params(bk, dim, hidden, kernel_sizes))

    out, oh, ow, out_down, wh, ww = basic_layer_pallas(x, H, W, blocks, kernel_sizes)
    out = jax.block_until_ready(out)

    ref, *_ = basic_layer_ref(x, H, W, blocks, kernel_sizes)
    np.testing.assert_allclose(np.asarray(out), np.asarray(ref), rtol=5e-2, atol=5e-2)

    print("KERNEL_OK")
</pallas_src>

<mosaic_0001>
module attributes {stable_mosaic.version = 11 : i64} {
  func.func @kernel(%arg0: i32, %arg1: i32, %arg2: memref<1x8x128xf32, #tpu.memory_space<vmem>>, %arg3: memref<128x128xf32, #tpu.memory_space<vmem>>, %arg4: memref<128x128xf32, #tpu.memory_space<vmem>>, %arg5: memref<5x8x8xf32, #tpu.memory_space<vmem>>, %arg6: memref<1x1x128xf32, #tpu.memory_space<vmem>>, %arg7: memref<1x1x128xf32, #tpu.memory_space<vmem>>, %arg8: memref<1x128x128xf32, #tpu.memory_space<vmem>>, %arg9: memref<1x1x128xf32, #tpu.memory_space<vmem>>, %arg10: memref<1x128x128xf32, #tpu.memory_space<vmem>>, %arg11: memref<1x1x128xf32, #tpu.memory_space<vmem>>, %arg12: memref<1x128x384xf32, #tpu.memory_space<vmem>>, %arg13: memref<1x1x384xf32, #tpu.memory_space<vmem>>, %arg14: memref<1x3x3x128xf32, #tpu.memory_space<vmem>>, %arg15: memref<1x5x5x128xf32, #tpu.memory_space<vmem>>, %arg16: memref<1x128x128xf32, #tpu.memory_space<vmem>>, %arg17: memref<1x1x128xf32, #tpu.memory_space<vmem>>, %arg18: memref<1x128x128xf32, #tpu.memory_space<vmem>>, %arg19: memref<1x1x128xf32, #tpu.memory_space<vmem>>, %arg20: memref<1x1x128xf32, #tpu.memory_space<vmem>>, %arg21: memref<1x1x128xf32, #tpu.memory_space<vmem>>, %arg22: memref<1x128x512xf32, #tpu.memory_space<vmem>>, %arg23: memref<1x1x512xf32, #tpu.memory_space<vmem>>, %arg24: memref<1x512x128xf32, #tpu.memory_space<vmem>>, %arg25: memref<1x1x128xf32, #tpu.memory_space<vmem>>, %arg26: memref<1x8x128xf32, #tpu.memory_space<vmem>>) attributes {dimension_semantics = [#tpu.dimension_semantics<parallel>, #tpu.dimension_semantics<arbitrary>], iteration_bounds = array<i64: 2, 2>, scalar_prefetch = 0 : i64, scratch_operands = 0 : i64, tpu.core_type = #tpu.core_type<tc>, window_params = [{transform_indices = @transform_0, window_bounds = array<i64: 1, 8, 128>}, {pipeline_mode = #tpu.pipeline_mode<synchronous>, transform_indices = @transform_1, window_bounds = array<i64: 128, 128>}, {pipeline_mode = #tpu.pipeline_mode<synchronous>, transform_indices = @transform_2, window_bounds = array<i64: 128, 128>}, {pipeline_mode = #tpu.pipeline_mode<synchronous>, transform_indices = @transform_3, window_bounds = array<i64: 5, 8, 8>}, {transform_indices = @transform_4, window_bounds = array<i64: 1, 1, 128>}, {transform_indices = @transform_5, window_bounds = array<i64: 1, 1, 128>}, {transform_indices = @transform_6, window_bounds = array<i64: 1, 128, 128>}, {transform_indices = @transform_7, window_bounds = array<i64: 1, 1, 128>}, {transform_indices = @transform_8, window_bounds = array<i64: 1, 128, 128>}, {transform_indices = @transform_9, window_bounds = array<i64: 1, 1, 128>}, {transform_indices = @transform_10, window_bounds = array<i64: 1, 128, 384>}, {transform_indices = @transform_11, window_bounds = array<i64: 1, 1, 384>}, {transform_indices = @transform_12, window_bounds = array<i64: 1, 3, 3, 128>}, {transform_indices = @transform_13, window_bounds = array<i64: 1, 5, 5, 128>}, {transform_indices = @transform_14, window_bounds = array<i64: 1, 128, 128>}, {transform_indices = @transform_15, window_bounds = array<i64: 1, 1, 128>}, {transform_indices = @transform_16, window_bounds = array<i64: 1, 128, 128>}, {transform_indices = @transform_17, window_bounds = array<i64: 1, 1, 128>}, {transform_indices = @transform_18, window_bounds = array<i64: 1, 1, 128>}, {transform_indices = @transform_19, window_bounds = array<i64: 1, 1, 128>}, {transform_indices = @transform_20, window_bounds = array<i64: 1, 128, 512>}, {transform_indices = @transform_21, window_bounds = array<i64: 1, 1, 512>}, {transform_indices = @transform_22, window_bounds = array<i64: 1, 512, 128>}, {transform_indices = @transform_23, window_bounds = array<i64: 1, 1, 128>}, {transform_indices = @transform_24, window_bounds = array<i64: 1, 8, 128>}]} {
    %c0_i32 = arith.constant 0 : i32
    %0 = arith.cmpi eq, %arg1, %c0_i32 : i32
    %1 = arith.extui %0 : i1 to i32
    %c0_i32_0 = arith.constant 0 : i32
    %2 = arith.cmpi ne, %1, %c0_i32_0 : i32
    scf.if %2 {
      %c0_280 = arith.constant 0 : index
      %c0_281 = arith.constant 0 : index
      %c0_282 = arith.constant 0 : index
      %364 = vector.load %arg2[%c0_280, %c0_281, %c0_282] : memref<1x8x128xf32, #tpu.memory_space<vmem>>, vector<1x8x128xf32>
      %c0_283 = arith.constant 0 : index
      %c0_284 = arith.constant 0 : index
      %c0_285 = arith.constant 0 : index
      %365 = vector.load %arg26[%c0_283, %c0_284, %c0_285] : memref<1x8x128xf32, #tpu.memory_space<vmem>>, vector<1x8x128xf32>
      tpu.vector_store %arg26[%c0_283, %c0_284, %c0_285], %364 {strides = array<i32>} : memref<1x8x128xf32, #tpu.memory_space<vmem>>, vector<1x8x128xf32>,
    } else {
    }
    %c0 = arith.constant 0 : index
    %c0_1 = arith.constant 0 : index
    %c0_2 = arith.constant 0 : index
    %3 = vector.load %arg26[%c0, %c0_1, %c0_2] : memref<1x8x128xf32, #tpu.memory_space<vmem>>, vector<1x8x128xf32>
    %4 = vector.shape_cast %3 : vector<1x8x128xf32> to vector<8x128xf32>
    %c0_3 = arith.constant 0 : index
    %c0_4 = arith.constant 0 : index
    %5 = vector.load %arg3[%c0_3, %c0_4] : memref<128x128xf32, #tpu.memory_space<vmem>>, vector<128x128xf32>
    %c0_5 = arith.constant 0 : index
    %c0_6 = arith.constant 0 : index
    %c0_7 = arith.constant 0 : index
    %6 = vector.load %arg6[%c0_5, %c0_6, %c0_7] : memref<1x1x128xf32, #tpu.memory_space<vmem>>, vector<1x1x128xf32>
    %7 = vector.shape_cast %6 : vector<1x1x128xf32> to vector<1x128xf32>
    %c0_8 = arith.constant 0 : index
    %c0_9 = arith.constant 0 : index
    %c0_10 = arith.constant 0 : index
    %8 = vector.load %arg7[%c0_8, %c0_9, %c0_10] : memref<1x1x128xf32, #tpu.memory_space<vmem>>, vector<1x1x128xf32>
    %9 = vector.shape_cast %8 : vector<1x1x128xf32> to vector<1x128xf32>
    %cst = arith.constant dense<0.000000e+00> : vector<8x128xf32>
    %10 = tpu.matmul %4, %5, %cst {dimension_numbers = #tpu.dot_dimension_numbers<[1], [0], [0], [1], [0, 0, 1, 1], [], []>} : vector<8x128xf32>, vector<128x128xf32>, vector<8x128xf32> -> vector<8x128xf32>
    %11 = arith.subf %4, %10 : vector<8x128xf32>
    %12 = arith.mulf %11, %11 : vector<8x128xf32>
    %cst_11 = arith.constant dense<0.000000e+00> : vector<8x128xf32>
    %13 = tpu.matmul %12, %5, %cst_11 {dimension_numbers = #tpu.dot_dimension_numbers<[1], [0], [0], [1], [0, 0, 1, 1], [], []>} : vector<8x128xf32>, vector<128x128xf32>, vector<8x128xf32> -> vector<8x128xf32>
    %cst_12 = arith.constant 9.99999974E-6 : f32
    %14 = vector.broadcast %cst_12 : f32 to vector<8x128xf32>
    %15 = arith.addf %13, %14 : vector<8x128xf32>
    %16 = math.rsqrt %15 : vector<8x128xf32>
    %17 = arith.mulf %11, %16 : vector<8x128xf32>
    %18 = vector.broadcast %7 : vector<1x128xf32> to vector<8x128xf32>
    %19 = arith.mulf %17, %18 : vector<8x128xf32>
    %20 = vector.broadcast %9 : vector<1x128xf32> to vector<8x128xf32>
    %21 = arith.addf %19, %20 : vector<8x128xf32>
    %c0_13 = arith.constant 0 : index
    %c0_14 = arith.constant 0 : index
    %c0_15 = arith.constant 0 : index
    %22 = vector.load %arg8[%c0_13, %c0_14, %c0_15] : memref<1x128x128xf32, #tpu.memory_space<vmem>>, vector<1x128x128xf32>
    %23 = vector.shape_cast %22 : vector<1x128x128xf32> to vector<128x128xf32>
    %cst_16 = arith.constant dense<0.000000e+00> : vector<8x128xf32>
    %24 = tpu.matmul %21, %23, %cst_16 {dimension_numbers = #tpu.dot_dimension_numbers<[1], [0], [0], [1], [0, 0, 1, 1], [], []>} : vector<8x128xf32>, vector<128x128xf32>, vector<8x128xf32> -> vector<8x128xf32>
    %c0_17 = arith.constant 0 : index
    %c0_18 = arith.constant 0 : index
    %c0_19 = arith.constant 0 : index
    %25 = vector.load %arg9[%c0_17, %c0_18, %c0_19] : memref<1x1x128xf32, #tpu.memory_space<vmem>>, vector<1x1x128xf32>
    %26 = vector.shape_cast %25 : vector<1x1x128xf32> to vector<1x128xf32>
    %27 = vector.broadcast %26 : vector<1x128xf32> to vector<8x128xf32>
    %28 = arith.addf %24, %27 : vector<8x128xf32>
    %c0_20 = arith.constant 0 : index
    %c0_21 = arith.constant 0 : index
    %c0_22 = arith.constant 0 : index
    %29 = vector.load %arg10[%c0_20, %c0_21, %c0_22] : memref<1x128x128xf32, #tpu.memory_space<vmem>>, vector<1x128x128xf32>
    %30 = vector.shape_cast %29 : vector<1x128x128xf32> to vector<128x128xf32>
    %cst_23 = arith.constant dense<0.000000e+00> : vector<8x128xf32>
    %31 = tpu.matmul %21, %30, %cst_23 {dimension_numbers = #tpu.dot_dimension_numbers<[1], [0], [0], [1], [0, 0, 1, 1], [], []>} : vector<8x128xf32>, vector<128x128xf32>, vector<8x128xf32> -> vector<8x128xf32>
    %c0_24 = arith.constant 0 : index
    %c0_25 = arith.constant 0 : index
    %c0_26 = arith.constant 0 : index
    %32 = vector.load %arg11[%c0_24, %c0_25, %c0_26] : memref<1x1x128xf32, #tpu.memory_space<vmem>>, vector<1x1x128xf32>
    %33 = vector.shape_cast %32 : vector<1x1x128xf32> to vector<1x128xf32>
    %34 = vector.broadcast %33 : vector<1x128xf32> to vector<8x128xf32>
    %35 = arith.addf %31, %34 : vector<8x128xf32>
    %c0_27 = arith.constant 0 : index
    %c0_28 = arith.constant 0 : index
    %c0_29 = arith.constant 0 : index
    %36 = vector.load %arg12[%c0_27, %c0_28, %c0_29] : memref<1x128x384xf32, #tpu.memory_space<vmem>>, vector<1x128x384xf32>
    %37 = vector.shape_cast %36 : vector<1x128x384xf32> to vector<128x384xf32>
    %cst_30 = arith.constant dense<0.000000e+00> : vector<8x384xf32>
    %38 = tpu.matmul %21, %37, %cst_30 {dimension_numbers = #tpu.dot_dimension_numbers<[1], [0], [0], [1], [0, 0, 1, 1], [], []>} : vector<8x128xf32>, vector<128x384xf32>, vector<8x384xf32> -> vector<8x384xf32>
    %c0_31 = arith.constant 0 : index
    %c0_32 = arith.constant 0 : index
    %c0_33 = arith.constant 0 : index
    %39 = vector.load %arg13[%c0_31, %c0_32, %c0_33] : memref<1x1x384xf32, #tpu.memory_space<vmem>>, vector<1x1x384xf32>
    %40 = vector.shape_cast %39 : vector<1x1x384xf32> to vector<1x384xf32>
    %41 = vector.broadcast %40 : vector<1x384xf32> to vector<8x384xf32>
    %42 = arith.addf %38, %41 : vector<8x384xf32>
    %cst_34 = arith.constant 0.000000e+00 : f32
    %43 = vector.broadcast %cst_34 : f32 to vector<8x128xf32>
    %cst_35 = arith.constant 0.000000e+00 : f32
    %44 = vector.broadcast %cst_35 : f32 to vector<8x128xf32>
    %c1 = arith.constant 1 : index
    %c0_36 = arith.constant 0 : index
    %c0_37 = arith.constant 0 : index
    %45 = vector.load %arg5[%c1, %c0_36, %c0_37] : memref<5x8x8xf32, #tpu.memory_space<vmem>>, vector<1x8x8xf32>
    %46 = vector.shape_cast %45 : vector<1x8x8xf32> to vector<8x8xf32>
    %cst_38 = arith.constant dense<0.000000e+00> : vector<8x128xf32>
    %47 = tpu.matmul %46, %35, %cst_38 {dimension_numbers = #tpu.dot_dimension_numbers<[1], [0], [0], [1], [0, 0, 1, 1], [], []>} : vector<8x8xf32>, vector<8x128xf32>, vector<8x128xf32> -> vector<8x128xf32>
    %c16_i32 = arith.constant 16 : i32
    %48 = tpu.dynamic_rotate %47 by %c16_i32 dim 1 : vector<8x128xf32>, i32 -> vector<8x128xf32>
    %c0_39 = arith.constant 0 : index
    %c0_40 = arith.constant 0 : index
    %c0_41 = arith.constant 0 : index
    %c0_42 = arith.constant 0 : index
    %49 = vector.load %arg14[%c0_39, %c0_40, %c0_41, %c0_42] : memref<1x3x3x128xf32, #tpu.memory_space<vmem>>, vector<1x1x1x128xf32>
    %50 = vector.shape_cast %49 : vector<1x1x1x128xf32> to vector<1x128xf32>
    %51 = vector.broadcast %50 : vector<1x128xf32> to vector<8x128xf32>
    %52 = arith.mulf %48, %51 : vector<8x128xf32>
    %53 = arith.addf %44, %52 : vector<8x128xf32>
    %c0_43 = arith.constant 0 : index
    %c0_44 = arith.constant 0 : index
    %c1_45 = arith.constant 1 : index
    %c0_46 = arith.constant 0 : index
    %54 = vector.load %arg14[%c0_43, %c0_44, %c1_45, %c0_46] : memref<1x3x3x128xf32, #tpu.memory_space<vmem>>, vector<1x1x1x128xf32>
    %55 = vector.shape_cast %54 : vector<1x1x1x128xf32> to vector<1x128xf32>
    %56 = vector.broadcast %55 : vector<1x128xf32> to vector<8x128xf32>
    %57 = arith.mulf %47, %56 : vector<8x128xf32>
    %58 = arith.addf %53, %57 : vector<8x128xf32>
    %c112_i32 = arith.constant 112 : i32
    %59 = tpu.dynamic_rotate %47 by %c112_i32 dim 1 : vector<8x128xf32>, i32 -> vector<8x128xf32>
    %c0_47 = arith.constant 0 : index
    %c0_48 = arith.constant 0 : index
    %c2 = arith.constant 2 : index
    %c0_49 = arith.constant 0 : index
    %60 = vector.load %arg14[%c0_47, %c0_48, %c2, %c0_49] : memref<1x3x3x128xf32, #tpu.memory_space<vmem>>, vector<1x1x1x128xf32>
    %61 = vector.shape_cast %60 : vector<1x1x1x128xf32> to vector<1x128xf32>
    %62 = vector.broadcast %61 : vector<1x128xf32> to vector<8x128xf32>
    %63 = arith.mulf %59, %62 : vector<8x128xf32>
    %64 = arith.addf %58, %63 : vector<8x128xf32>
    %c2_50 = arith.constant 2 : index
    %c0_51 = arith.constant 0 : index
    %c0_52 = arith.constant 0 : index
    %65 = vector.load %arg5[%c2_50, %c0_51, %c0_52] : memref<5x8x8xf32, #tpu.memory_space<vmem>>, vector<1x8x8xf32>
    %66 = vector.shape_cast %65 : vector<1x8x8xf32> to vector<8x8xf32>
    %cst_53 = arith.constant dense<0.000000e+00> : vector<8x128xf32>
    %67 = tpu.matmul %66, %35, %cst_53 {dimension_numbers = #tpu.dot_dimension_numbers<[1], [0], [0], [1], [0, 0, 1, 1], [], []>} : vector<8x8xf32>, vector<8x128xf32>, vector<8x128xf32> -> vector<8x128xf32>
    %c16_i32_54 = arith.constant 16 : i32
    %68 = tpu.dynamic_rotate %67 by %c16_i32_54 dim 1 : vector<8x128xf32>, i32 -> vector<8x128xf32>
    %c0_55 = arith.constant 0 : index
    %c1_56 = arith.constant 1 : index
    %c0_57 = arith.constant 0 : index
    %c0_58 = arith.constant 0 : index
    %69 = vector.load %arg14[%c0_55, %c1_56, %c0_57, %c0_58] : memref<1x3x3x128xf32, #tpu.memory_space<vmem>>, vector<1x1x1x128xf32>
    %70 = vector.shape_cast %69 : vector<1x1x1x128xf32> to vector<1x128xf32>
    %71 = vector.broadcast %70 : vector<1x128xf32> to vector<8x128xf32>
    %72 = arith.mulf %68, %71 : vector<8x128xf32>
    %73 = arith.addf %64, %72 : vector<8x128xf32>
    %c0_59 = arith.constant 0 : index
    %c1_60 = arith.constant 1 : index
    %c1_61 = arith.constant 1 : index
    %c0_62 = arith.constant 0 : index
    %74 = vector.load %arg14[%c0_59, %c1_60, %c1_61, %c0_62] : memref<1x3x3x128xf32, #tpu.memory_space<vmem>>, vector<1x1x1x128xf32>
    %75 = vector.shape_cast %74 : vector<1x1x1x128xf32> to vector<1x128xf32>
    %76 = vector.broadcast %75 : vector<1x128xf32> to vector<8x128xf32>
    %77 = arith.mulf %67, %76 : vector<8x128xf32>
    %78 = arith.addf %73, %77 : vector<8x128xf32>
    %c112_i32_63 = arith.constant 112 : i32
    %79 = tpu.dynamic_rotate %67 by %c112_i32_63 dim 1 : vector<8x128xf32>, i32 -> vector<8x128xf32>
    %c0_64 = arith.constant 0 : index
    %c1_65 = arith.constant 1 : index
    %c2_66 = arith.constant 2 : index
    %c0_67 = arith.constant 0 : index
    %80 = vector.load %arg14[%c0_64, %c1_65, %c2_66, %c0_67] : memref<1x3x3x128xf32, #tpu.memory_space<vmem>>, vector<1x1x1x128xf32>
    %81 = vector.shape_cast %80 : vector<1x1x1x128xf32> to vector<1x128xf32>
    %82 = vector.broadcast %81 : vector<1x128xf32> to vector<8x128xf32>
    %83 = arith.mulf %79, %82 : vector<8x128xf32>
    %84 = arith.addf %78, %83 : vector<8x128xf32>
    %c3 = arith.constant 3 : index
    %c0_68 = arith.constant 0 : index
    %c0_69 = arith.constant 0 : index
    %85 = vector.load %arg5[%c3, %c0_68, %c0_69] : memref<5x8x8xf32, #tpu.memory_space<vmem>>, vector<1x8x8xf32>
    %86 = vector.shape_cast %85 : vector<1x8x8xf32> to vector<8x8xf32>
    %cst_70 = arith.constant dense<0.000000e+00> : vector<8x128xf32>
    %87 = tpu.matmul %86, %35, %cst_70 {dimension_numbers = #tpu.dot_dimension_numbers<[1], [0], [0], [1], [0, 0, 1, 1], [], []>} : vector<8x8xf32>, vector<8x128xf32>, vector<8x128xf32> -> vector<8x128xf32>
    %c16_i32_71 = arith.constant 16 : i32
    %88 = tpu.dynamic_rotate %87 by %c16_i32_71 dim 1 : vector<8x128xf32>, i32 -> vector<8x128xf32>
    %c0_72 = arith.constant 0 : index
    %c2_73 = arith.constant 2 : index
    %c0_74 = arith.constant 0 : index
    %c0_75 = arith.constant 0 : index
    %89 = vector.load %arg14[%c0_72, %c2_73, %c0_74, %c0_75] : memref<1x3x3x128xf32, #tpu.memory_space<vmem>>, vector<1x1x1x128xf32>
    %90 = vector.shape_cast %89 : vector<1x1x1x128xf32> to vector<1x128xf32>
    %91 = vector.broadcast %90 : vector<1x128xf32> to vector<8x128xf32>
    %92 = arith.mulf %88, %91 : vector<8x128xf32>
    %93 = arith.addf %84, %92 : vector<8x128xf32>
    %c0_76 = arith.constant 0 : index
    %c2_77 = arith.constant 2 : index
    %c1_78 = arith.constant 1 : index
    %c0_79 = arith.constant 0 : index
    %94 = vector.load %arg14[%c0_76, %c2_77, %c1_78, %c0_79] : memref<1x3x3x128xf32, #tpu.memory_space<vmem>>, vector<1x1x1x128xf32>
    %95 = vector.shape_cast %94 : vector<1x1x1x128xf32> to vector<1x128xf32>
    %96 = vector.broadcast %95 : vector<1x128xf32> to vector<8x128xf32>
    %97 = arith.mulf %87, %96 : vector<8x128xf32>
    %98 = arith.addf %93, %97 : vector<8x128xf32>
    %c112_i32_80 = arith.constant 112 : i32
    %99 = tpu.dynamic_rotate %87 by %c112_i32_80 dim 1 : vector<8x128xf32>, i32 -> vector<8x128xf32>
    %c0_81 = arith.constant 0 : index
    %c2_82 = arith.constant 2 : index
    %c2_83 = arith.constant 2 : index
    %c0_84 = arith.constant 0 : index
    %100 = vector.load %arg14[%c0_81, %c2_82, %c2_83, %c0_84] : memref<1x3x3x128xf32, #tpu.memory_space<vmem>>, vector<1x1x1x128xf32>
    %101 = vector.shape_cast %100 : vector<1x1x1x128xf32> to vector<1x128xf32>
    %102 = vector.broadcast %101 : vector<1x128xf32> to vector<8x128xf32>
    %103 = arith.mulf %99, %102 : vector<8x128xf32>
    %104 = arith.addf %98, %103 : vector<8x128xf32>
    %cst_85 = arith.constant 5.000000e-01 : f32
    %105 = vector.broadcast %cst_85 : f32 to vector<8x128xf32>
    %106 = arith.mulf %105, %104 : vector<8x128xf32>
    %cst_86 = arith.constant 0.707106769 : f32
    %107 = vector.broadcast %cst_86 : f32 to vector<8x128xf32>
    %108 = arith.mulf %104, %107 : vector<8x128xf32>
    %109 = math.erf %108 : vector<8x128xf32>
    %cst_87 = arith.constant 1.000000e+00 : f32
    %110 = vector.broadcast %cst_87 : f32 to vector<8x128xf32>
    %111 = arith.addf %110, %109 : vector<8x128xf32>
    %112 = arith.mulf %106, %111 : vector<8x128xf32>
    %113 = vector.extract_strided_slice %42 {offsets = [0, 0], sizes = [8, 128], strides = [1, 1]} : vector<8x384xf32> to vector<8x128xf32>
    %114 = arith.mulf %112, %113 : vector<8x128xf32>
    %115 = arith.addf %43, %114 : vector<8x128xf32>
    %cst_88 = arith.constant 0.000000e+00 : f32
    %116 = vector.broadcast %cst_88 : f32 to vector<8x128xf32>
    %c0_89 = arith.constant 0 : index
    %c0_90 = arith.constant 0 : index
    %c0_91 = arith.constant 0 : index
    %117 = vector.load %arg5[%c0_89, %c0_90, %c0_91] : memref<5x8x8xf32, #tpu.memory_space<vmem>>, vector<1x8x8xf32>
    %118 = vector.shape_cast %117 : vector<1x8x8xf32> to vector<8x8xf32>
    %cst_92 = arith.constant dense<0.000000e+00> : vector<8x128xf32>
    %119 = tpu.matmul %118, %112, %cst_92 {dimension_numbers = #tpu.dot_dimension_numbers<[1], [0], [0], [1], [0, 0, 1, 1], [], []>} : vector<8x8xf32>, vector<8x128xf32>, vector<8x128xf32> -> vector<8x128xf32>
    %c32_i32 = arith.constant 32 : i32
    %120 = tpu.dynamic_rotate %119 by %c32_i32 dim 1 : vector<8x128xf32>, i32 -> vector<8x128xf32>
    %c0_93 = arith.constant 0 : index
    %c0_94 = arith.constant 0 : index
    %c0_95 = arith.constant 0 : index
    %c0_96 = arith.constant 0 : index
    %121 = vector.load %arg15[%c0_93, %c0_94, %c0_95, %c0_96] : memref<1x5x5x128xf32, #tpu.memory_space<vmem>>, vector<1x1x1x128xf32>
    %122 = vector.shape_cast %121 : vector<1x1x1x128xf32> to vector<1x128xf32>
    %123 = vector.broadcast %122 : vector<1x128xf32> to vector<8x128xf32>
    %124 = arith.mulf %120, %123 : vector<8x128xf32>
    %125 = arith.addf %116, %124 : vector<8x128xf32>
    %c16_i32_97 = arith.constant 16 : i32
    %126 = tpu.dynamic_rotate %119 by %c16_i32_97 dim 1 : vector<8x128xf32>, i32 -> vector<8x128xf32>
    %c0_98 = arith.constant 0 : index
    %c0_99 = arith.constant 0 : index
    %c1_100 = arith.constant 1 : index
    %c0_101 = arith.constant 0 : index
    %127 = vector.load %arg15[%c0_98, %c0_99, %c1_100, %c0_101] : memref<1x5x5x128xf32, #tpu.memory_space<vmem>>, vector<1x1x1x128xf32>
    %128 = vector.shape_cast %127 : vector<1x1x1x128xf32> to vector<1x128xf32>
    %129 = vector.broadcast %128 : vector<1x128xf32> to vector<8x128xf32>
    %130 = arith.mulf %126, %129 : vector<8x128xf32>
    %131 = arith.addf %125, %130 : vector<8x128xf32>
    %c0_102 = arith.constant 0 : index
    %c0_103 = arith.constant 0 : index
    %c2_104 = arith.constant 2 : index
    %c0_105 = arith.constant 0 : index
    %132 = vector.load %arg15[%c0_102, %c0_103, %c2_104, %c0_105] : memref<1x5x5x128xf32, #tpu.memory_space<vmem>>, vector<1x1x1x128xf32>
    %133 = vector.shape_cast %132 : vector<1x1x1x128xf32> to vector<1x128xf32>
    %134 = vector.broadcast %133 : vector<1x128xf32> to vector<8x128xf32>
    %135 = arith.mulf %119, %134 : vector<8x128xf32>
    %136 = arith.addf %131, %135 : vector<8x128xf32>
    %c112_i32_106 = arith.constant 112 : i32
    %137 = tpu.dynamic_rotate %119 by %c112_i32_106 dim 1 : vector<8x128xf32>, i32 -> vector<8x128xf32>
    %c0_107 = arith.constant 0 : index
    %c0_108 = arith.constant 0 : index
    %c3_109 = arith.constant 3 : index
    %c0_110 = arith.constant 0 : index
    %138 = vector.load %arg15[%c0_107, %c0_108, %c3_109, %c0_110] : memref<1x5x5x128xf32, #tpu.memory_space<vmem>>, vector<1x1x1x128xf32>
    %139 = vector.shape_cast %138 : vector<1x1x1x128xf32> to vector<1x128xf32>
    %140 = vector.broadcast %139 : vector<1x128xf32> to vector<8x128xf32>
    %141 = arith.mulf %137, %140 : vector<8x128xf32>
    %142 = arith.addf %136, %141 : vector<8x128xf32>
    %c96_i32 = arith.constant 96 : i32
    %143 = tpu.dynamic_rotate %119 by %c96_i32 dim 1 : vector<8x128xf32>, i32 -> vector<8x128xf32>
    %c0_111 = arith.constant 0 : index
    %c0_112 = arith.constant 0 : index
    %c4 = arith.constant 4 : index
    %c0_113 = arith.constant 0 : index
    %144 = vector.load %arg15[%c0_111, %c0_112, %c4, %c0_113] : memref<1x5x5x128xf32, #tpu.memory_space<vmem>>, vector<1x1x1x128xf32>
    %145 = vector.shape_cast %144 : vector<1x1x1x128xf32> to vector<1x128xf32>
    %146 = vector.broadcast %145 : vector<1x128xf32> to vector<8x128xf32>
    %147 = arith.mulf %143, %146 : vector<8x128xf32>
    %148 = arith.addf %142, %147 : vector<8x128xf32>
    %c1_114 = arith.constant 1 : index
    %c0_115 = arith.constant 0 : index
    %c0_116 = arith.constant 0 : index
    %149 = vector.load %arg5[%c1_114, %c0_115, %c0_116] : memref<5x8x8xf32, #tpu.memory_space<vmem>>, vector<1x8x8xf32>
    %150 = vector.shape_cast %149 : vector<1x8x8xf32> to vector<8x8xf32>
    %cst_117 = arith.constant dense<0.000000e+00> : vector<8x128xf32>
    %151 = tpu.matmul %150, %112, %cst_117 {dimension_numbers = #tpu.dot_dimension_numbers<[1], [0], [0], [1], [0, 0, 1, 1], [], []>} : vector<8x8xf32>, vector<8x128xf32>, vector<8x128xf32> -> vector<8x128xf32>
    %c32_i32_118 = arith.constant 32 : i32
    %152 = tpu.dynamic_rotate %151 by %c32_i32_118 dim 1 : vector<8x128xf32>, i32 -> vector<8x128xf32>
    %c0_119 = arith.constant 0 : index
    %c1_120 = arith.constant 1 : index
    %c0_121 = arith.constant 0 : index
    %c0_122 = arith.constant 0 : index
    %153 = vector.load %arg15[%c0_119, %c1_120, %c0_121, %c0_122] : memref<1x5x5x128xf32, #tpu.memory_space<vmem>>, vector<1x1x1x128xf32>
    %154 = vector.shape_cast %153 : vector<1x1x1x128xf32> to vector<1x128xf32>
    %155 = vector.broadcast %154 : vector<1x128xf32> to vector<8x128xf32>
    %156 = arith.mulf %152, %155 : vector<8x128xf32>
    %157 = arith.addf %148, %156 : vector<8x128xf32>
    %c16_i32_123 = arith.constant 16 : i32
    %158 = tpu.dynamic_rotate %151 by %c16_i32_123 dim 1 : vector<8x128xf32>, i32 -> vector<8x128xf32>
    %c0_124 = arith.constant 0 : index
    %c1_125 = arith.constant 1 : index
    %c1_126 = arith.constant 1 : index
    %c0_127 = arith.constant 0 : index
    %159 = vector.load %arg15[%c0_124, %c1_125, %c1_126, %c0_127] : memref<1x5x5x128xf32, #tpu.memory_space<vmem>>, vector<1x1x1x128xf32>
    %160 = vector.shape_cast %159 : vector<1x1x1x128xf32> to vector<1x128xf32>
    %161 = vector.broadcast %160 : vector<1x128xf32> to vector<8x128xf32>
    %162 = arith.mulf %158, %161 : vector<8x128xf32>
    %163 = arith.addf %157, %162 : vector<8x128xf32>
    %c0_128 = arith.constant 0 : index
    %c1_129 = arith.constant 1 : index
    %c2_130 = arith.constant 2 : index
    %c0_131 = arith.constant 0 : index
    %164 = vector.load %arg15[%c0_128, %c1_129, %c2_130, %c0_131] : memref<1x5x5x128xf32, #tpu.memory_space<vmem>>, vector<1x1x1x128xf32>
    %165 = vector.shape_cast %164 : vector<1x1x1x128xf32> to vector<1x128xf32>
    %166 = vector.broadcast %165 : vector<1x128xf32> to vector<8x128xf32>
    %167 = arith.mulf %151, %166 : vector<8x128xf32>
    %168 = arith.addf %163, %167 : vector<8x128xf32>
    %c112_i32_132 = arith.constant 112 : i32
    %169 = tpu.dynamic_rotate %151 by %c112_i32_132 dim 1 : vector<8x128xf32>, i32 -> vector<8x128xf32>
    %c0_133 = arith.constant 0 : index
    %c1_134 = arith.constant 1 : index
    %c3_135 = arith.constant 3 : index
    %c0_136 = arith.constant 0 : index
    %170 = vector.load %arg15[%c0_133, %c1_134, %c3_135, %c0_136] : memref<1x5x5x128xf32, #tpu.memory_space<vmem>>, vector<1x1x1x128xf32>
    %171 = vector.shape_cast %170 : vector<1x1x1x128xf32> to vector<1x128xf32>
    %172 = vector.broadcast %171 : vector<1x128xf32> to vector<8x128xf32>
    %173 = arith.mulf %169, %172 : vector<8x128xf32>
    %174 = arith.addf %168, %173 : vector<8x128xf32>
    %c96_i32_137 = arith.constant 96 : i32
    %175 = tpu.dynamic_rotate %151 by %c96_i32_137 dim 1 : vector<8x128xf32>, i32 -> vector<8x128xf32>
    %c0_138 = arith.constant 0 : index
    %c1_139 = arith.constant 1 : index
    %c4_140 = arith.constant 4 : index
    %c0_141 = arith.constant 0 : index
    %176 = vector.load %arg15[%c0_138, %c1_139, %c4_140, %c0_141] : memref<1x5x5x128xf32, #tpu.memory_space<vmem>>, vector<1x1x1x128xf32>
    %177 = vector.shape_cast %176 : vector<1x1x1x128xf32> to vector<1x128xf32>
    %178 = vector.broadcast %177 : vector<1x128xf32> to vector<8x128xf32>
    %179 = arith.mulf %175, %178 : vector<8x128xf32>
    %180 = arith.addf %174, %179 : vector<8x128xf32>
    %c2_142 = arith.constant 2 : index
    %c0_143 = arith.constant 0 : index
    %c0_144 = arith.constant 0 : index
    %181 = vector.load %arg5[%c2_142, %c0_143, %c0_144] : memref<5x8x8xf32, #tpu.memory_space<vmem>>, vector<1x8x8xf32>
    %182 = vector.shape_cast %181 : vector<1x8x8xf32> to vector<8x8xf32>
    %cst_145 = arith.constant dense<0.000000e+00> : vector<8x128xf32>
    %183 = tpu.matmul %182, %112, %cst_145 {dimension_numbers = #tpu.dot_dimension_numbers<[1], [0], [0], [1], [0, 0, 1, 1], [], []>} : vector<8x8xf32>, vector<8x128xf32>, vector<8x128xf32> -> vector<8x128xf32>
    %c32_i32_146 = arith.constant 32 : i32
    %184 = tpu.dynamic_rotate %183 by %c32_i32_146 dim 1 : vector<8x128xf32>, i32 -> vector<8x128xf32>
    %c0_147 = arith.constant 0 : index
    %c2_148 = arith.constant 2 : index
    %c0_149 = arith.constant 0 : index
    %c0_150 = arith.constant 0 : index
    %185 = vector.load %arg15[%c0_147, %c2_148, %c0_149, %c0_150] : memref<1x5x5x128xf32, #tpu.memory_space<vmem>>, vector<1x1x1x128xf32>
    %186 = vector.shape_cast %185 : vector<1x1x1x128xf32> to vector<1x128xf32>
    %187 = vector.broadcast %186 : vector<1x128xf32> to vector<8x128xf32>
    %188 = arith.mulf %184, %187 : vector<8x128xf32>
    %189 = arith.addf %180, %188 : vector<8x128xf32>
    %c16_i32_151 = arith.constant 16 : i32
    %190 = tpu.dynamic_rotate %183 by %c16_i32_151 dim 1 : vector<8x128xf32>, i32 -> vector<8x128xf32>
    %c0_152 = arith.constant 0 : index
    %c2_153 = arith.constant 2 : index
    %c1_154 = arith.constant 1 : index
    %c0_155 = arith.constant 0 : index
    %191 = vector.load %arg15[%c0_152, %c2_153, %c1_154, %c0_155] : memref<1x5x5x128xf32, #tpu.memory_space<vmem>>, vector<1x1x1x128xf32>
    %192 = vector.shape_cast %191 : vector<1x1x1x128xf32> to vector<1x128xf32>
    %193 = vector.broadcast %192 : vector<1x128xf32> to vector<8x128xf32>
    %194 = arith.mulf %190, %193 : vector<8x128xf32>
    %195 = arith.addf %189, %194 : vector<8x128xf32>
    %c0_156 = arith.constant 0 : index
    %c2_157 = arith.constant 2 : index
    %c2_158 = arith.constant 2 : index
    %c0_159 = arith.constant 0 : index
    %196 = vector.load %arg15[%c0_156, %c2_157, %c2_158, %c0_159] : memref<1x5x5x128xf32, #tpu.memory_space<vmem>>, vector<1x1x1x128xf32>
    %197 = vector.shape_cast %196 : vector<1x1x1x128xf32> to vector<1x128xf32>
    %198 = vector.broadcast %197 : vector<1x128xf32> to vector<8x128xf32>
    %199 = arith.mulf %183, %198 : vector<8x128xf32>
    %200 = arith.addf %195, %199 : vector<8x128xf32>
    %c112_i32_160 = arith.constant 112 : i32
    %201 = tpu.dynamic_rotate %183 by %c112_i32_160 dim 1 : vector<8x128xf32>, i32 -> vector<8x128xf32>
    %c0_161 = arith.constant 0 : index
    %c2_162 = arith.constant 2 : index
    %c3_163 = arith.constant 3 : index
    %c0_164 = arith.constant 0 : index
    %202 = vector.load %arg15[%c0_161, %c2_162, %c3_163, %c0_164] : memref<1x5x5x128xf32, #tpu.memory_space<vmem>>, vector<1x1x1x128xf32>
    %203 = vector.shape_cast %202 : vector<1x1x1x128xf32> to vector<1x128xf32>
    %204 = vector.broadcast %203 : vector<1x128xf32> to vector<8x128xf32>
    %205 = arith.mulf %201, %204 : vector<8x128xf32>
    %206 = arith.addf %200, %205 : vector<8x128xf32>
    %c96_i32_165 = arith.constant 96 : i32
    %207 = tpu.dynamic_rotate %183 by %c96_i32_165 dim 1 : vector<8x128xf32>, i32 -> vector<8x128xf32>
    %c0_166 = arith.constant 0 : index
    %c2_167 = arith.constant 2 : index
    %c4_168 = arith.constant 4 : index
    %c0_169 = arith.constant 0 : index
    %208 = vector.load %arg15[%c0_166, %c2_167, %c4_168, %c0_169] : memref<1x5x5x128xf32, #tpu.memory_space<vmem>>, vector<1x1x1x128xf32>
    %209 = vector.shape_cast %208 : vector<1x1x1x128xf32> to vector<1x128xf32>
    %210 = vector.broadcast %209 : vector<1x128xf32> to vector<8x128xf32>
    %211 = arith.mulf %207, %210 : vector<8x128xf32>
    %212 = arith.addf %206, %211 : vector<8x128xf32>
    %c3_170 = arith.constant 3 : index
    %c0_171 = arith.constant 0 : index
    %c0_172 = arith.constant 0 : index
    %213 = vector.load %arg5[%c3_170, %c0_171, %c0_172] : memref<5x8x8xf32, #tpu.memory_space<vmem>>, vector<1x8x8xf32>
    %214 = vector.shape_cast %213 : vector<1x8x8xf32> to vector<8x8xf32>
    %cst_173 = arith.constant dense<0.000000e+00> : vector<8x128xf32>
    %215 = tpu.matmul %214, %112, %cst_173 {dimension_numbers = #tpu.dot_dimension_numbers<[1], [0], [0], [1], [0, 0, 1, 1], [], []>} : vector<8x8xf32>, vector<8x128xf32>, vector<8x128xf32> -> vector<8x128xf32>
    %c32_i32_174 = arith.constant 32 : i32
    %216 = tpu.dynamic_rotate %215 by %c32_i32_174 dim 1 : vector<8x128xf32>, i32 -> vector<8x128xf32>
    %c0_175 = arith.constant 0 : index
    %c3_176 = arith.constant 3 : index
    %c0_177 = arith.constant 0 : index
    %c0_178 = arith.constant 0 : index
    %217 = vector.load %arg15[%c0_175, %c3_176, %c0_177, %c0_178] : memref<1x5x5x128xf32, #tpu.memory_space<vmem>>, vector<1x1x1x128xf32>
    %218 = vector.shape_cast %217 : vector<1x1x1x128xf32> to vector<1x128xf32>
    %219 = vector.broadcast %218 : vector<1x128xf32> to vector<8x128xf32>
    %220 = arith.mulf %216, %219 : vector<8x128xf32>
    %221 = arith.addf %212, %220 : vector<8x128xf32>
    %c16_i32_179 = arith.constant 16 : i32
    %222 = tpu.dynamic_rotate %215 by %c16_i32_179 dim 1 : vector<8x128xf32>, i32 -> vector<8x128xf32>
    %c0_180 = arith.constant 0 : index
    %c3_181 = arith.constant 3 : index
    %c1_182 = arith.constant 1 : index
    %c0_183 = arith.constant 0 : index
    %223 = vector.load %arg15[%c0_180, %c3_181, %c1_182, %c0_183] : memref<1x5x5x128xf32, #tpu.memory_space<vmem>>, vector<1x1x1x128xf32>
    %224 = vector.shape_cast %223 : vector<1x1x1x128xf32> to vector<1x128xf32>
    %225 = vector.broadcast %224 : vector<1x128xf32> to vector<8x128xf32>
    %226 = arith.mulf %222, %225 : vector<8x128xf32>
    %227 = arith.addf %221, %226 : vector<8x128xf32>
    %c0_184 = arith.constant 0 : index
    %c3_185 = arith.constant 3 : index
    %c2_186 = arith.constant 2 : index
    %c0_187 = arith.constant 0 : index
    %228 = vector.load %arg15[%c0_184, %c3_185, %c2_186, %c0_187] : memref<1x5x5x128xf32, #tpu.memory_space<vmem>>, vector<1x1x1x128xf32>
    %229 = vector.shape_cast %228 : vector<1x1x1x128xf32> to vector<1x128xf32>
    %230 = vector.broadcast %229 : vector<1x128xf32> to vector<8x128xf32>
    %231 = arith.mulf %215, %230 : vector<8x128xf32>
    %232 = arith.addf %227, %231 : vector<8x128xf32>
    %c112_i32_188 = arith.constant 112 : i32
    %233 = tpu.dynamic_rotate %215 by %c112_i32_188 dim 1 : vector<8x128xf32>, i32 -> vector<8x128xf32>
    %c0_189 = arith.constant 0 : index
    %c3_190 = arith.constant 3 : index
    %c3_191 = arith.constant 3 : index
    %c0_192 = arith.constant 0 : index
    %234 = vector.load %arg15[%c0_189, %c3_190, %c3_191, %c0_192] : memref<1x5x5x128xf32, #tpu.memory_space<vmem>>, vector<1x1x1x128xf32>
    %235 = vector.shape_cast %234 : vector<1x1x1x128xf32> to vector<1x128xf32>
    %236 = vector.broadcast %235 : vector<1x128xf32> to vector<8x128xf32>
    %237 = arith.mulf %233, %236 : vector<8x128xf32>
    %238 = arith.addf %232, %237 : vector<8x128xf32>
    %c96_i32_193 = arith.constant 96 : i32
    %239 = tpu.dynamic_rotate %215 by %c96_i32_193 dim 1 : vector<8x128xf32>, i32 -> vector<8x128xf32>
    %c0_194 = arith.constant 0 : index
    %c3_195 = arith.constant 3 : index
    %c4_196 = arith.constant 4 : index
    %c0_197 = arith.constant 0 : index
    %240 = vector.load %arg15[%c0_194, %c3_195, %c4_196, %c0_197] : memref<1x5x5x128xf32, #tpu.memory_space<vmem>>, vector<1x1x1x128xf32>
    %241 = vector.shape_cast %240 : vector<1x1x1x128xf32> to vector<1x128xf32>
    %242 = vector.broadcast %241 : vector<1x128xf32> to vector<8x128xf32>
    %243 = arith.mulf %239, %242 : vector<8x128xf32>
    %244 = arith.addf %238, %243 : vector<8x128xf32>
    %c4_198 = arith.constant 4 : index
    %c0_199 = arith.constant 0 : index
    %c0_200 = arith.constant 0 : index
    %245 = vector.load %arg5[%c4_198, %c0_199, %c0_200] : memref<5x8x8xf32, #tpu.memory_space<vmem>>, vector<1x8x8xf32>
    %246 = vector.shape_cast %245 : vector<1x8x8xf32> to vector<8x8xf32>
    %cst_201 = arith.constant dense<0.000000e+00> : vector<8x128xf32>
    %247 = tpu.matmul %246, %112, %cst_201 {dimension_numbers = #tpu.dot_dimension_numbers<[1], [0], [0], [1], [0, 0, 1, 1], [], []>} : vector<8x8xf32>, vector<8x128xf32>, vector<8x128xf32> -> vector<8x128xf32>
    %c32_i32_202 = arith.constant 32 : i32
    %248 = tpu.dynamic_rotate %247 by %c32_i32_202 dim 1 : vector<8x128xf32>, i32 -> vector<8x128xf32>
    %c0_203 = arith.constant 0 : index
    %c4_204 = arith.constant 4 : index
    %c0_205 = arith.constant 0 : index
    %c0_206 = arith.constant 0 : index
    %249 = vector.load %arg15[%c0_203, %c4_204, %c0_205, %c0_206] : memref<1x5x5x128xf32, #tpu.memory_space<vmem>>, vector<1x1x1x128xf32>
    %250 = vector.shape_cast %249 : vector<1x1x1x128xf32> to vector<1x128xf32>
    %251 = vector.broadcast %250 : vector<1x128xf32> to vector<8x128xf32>
    %252 = arith.mulf %248, %251 : vector<8x128xf32>
    %253 = arith.addf %244, %252 : vector<8x128xf32>
    %c16_i32_207 = arith.constant 16 : i32
    %254 = tpu.dynamic_rotate %247 by %c16_i32_207 dim 1 : vector<8x128xf32>, i32 -> vector<8x128xf32>
    %c0_208 = arith.constant 0 : index
    %c4_209 = arith.constant 4 : index
    %c1_210 = arith.constant 1 : index
    %c0_211 = arith.constant 0 : index
    %255 = vector.load %arg15[%c0_208, %c4_209, %c1_210, %c0_211] : memref<1x5x5x128xf32, #tpu.memory_space<vmem>>, vector<1x1x1x128xf32>
    %256 = vector.shape_cast %255 : vector<1x1x1x128xf32> to vector<1x128xf32>
    %257 = vector.broadcast %256 : vector<1x128xf32> to vector<8x128xf32>
    %258 = arith.mulf %254, %257 : vector<8x128xf32>
    %259 = arith.addf %253, %258 : vector<8x128xf32>
    %c0_212 = arith.constant 0 : index
    %c4_213 = arith.constant 4 : index
    %c2_214 = arith.constant 2 : index
    %c0_215 = arith.constant 0 : index
    %260 = vector.load %arg15[%c0_212, %c4_213, %c2_214, %c0_215] : memref<1x5x5x128xf32, #tpu.memory_space<vmem>>, vector<1x1x1x128xf32>
    %261 = vector.shape_cast %260 : vector<1x1x1x128xf32> to vector<1x128xf32>
    %262 = vector.broadcast %261 : vector<1x128xf32> to vector<8x128xf32>
    %263 = arith.mulf %247, %262 : vector<8x128xf32>
    %264 = arith.addf %259, %263 : vector<8x128xf32>
    %c112_i32_216 = arith.constant 112 : i32
    %265 = tpu.dynamic_rotate %247 by %c112_i32_216 dim 1 : vector<8x128xf32>, i32 -> vector<8x128xf32>
    %c0_217 = arith.constant 0 : index
    %c4_218 = arith.constant 4 : index
    %c3_219 = arith.constant 3 : index
    %c0_220 = arith.constant 0 : index
    %266 = vector.load %arg15[%c0_217, %c4_218, %c3_219, %c0_220] : memref<1x5x5x128xf32, #tpu.memory_space<vmem>>, vector<1x1x1x128xf32>
    %267 = vector.shape_cast %266 : vector<1x1x1x128xf32> to vector<1x128xf32>
    %268 = vector.broadcast %267 : vector<1x128xf32> to vector<8x128xf32>
    %269 = arith.mulf %265, %268 : vector<8x128xf32>
    %270 = arith.addf %264, %269 : vector<8x128xf32>
    %c96_i32_221 = arith.constant 96 : i32
    %271 = tpu.dynamic_rotate %247 by %c96_i32_221 dim 1 : vector<8x128xf32>, i32 -> vector<8x128xf32>
    %c0_222 = arith.constant 0 : index
    %c4_223 = arith.constant 4 : index
    %c4_224 = arith.constant 4 : index
    %c0_225 = arith.constant 0 : index
    %272 = vector.load %arg15[%c0_222, %c4_223, %c4_224, %c0_225] : memref<1x5x5x128xf32, #tpu.memory_space<vmem>>, vector<1x1x1x128xf32>
    %273 = vector.shape_cast %272 : vector<1x1x1x128xf32> to vector<1x128xf32>
    %274 = vector.broadcast %273 : vector<1x128xf32> to vector<8x128xf32>
    %275 = arith.mulf %271, %274 : vector<8x128xf32>
    %276 = arith.addf %270, %275 : vector<8x128xf32>
    %cst_226 = arith.constant 5.000000e-01 : f32
    %277 = vector.broadcast %cst_226 : f32 to vector<8x128xf32>
    %278 = arith.mulf %277, %276 : vector<8x128xf32>
    %cst_227 = arith.constant 0.707106769 : f32
    %279 = vector.broadcast %cst_227 : f32 to vector<8x128xf32>
    %280 = arith.mulf %276, %279 : vector<8x128xf32>
    %281 = math.erf %280 : vector<8x128xf32>
    %cst_228 = arith.constant 1.000000e+00 : f32
    %282 = vector.broadcast %cst_228 : f32 to vector<8x128xf32>
    %283 = arith.addf %282, %281 : vector<8x128xf32>
    %284 = arith.mulf %278, %283 : vector<8x128xf32>
    %285 = vector.extract_strided_slice %42 {offsets = [0, 128], sizes = [8, 128], strides = [1, 1]} : vector<8x384xf32> to vector<8x128xf32>
    %286 = arith.mulf %284, %285 : vector<8x128xf32>
    %287 = arith.addf %115, %286 : vector<8x128xf32>
    %c0_229 = arith.constant 0 : index
    %c0_230 = arith.constant 0 : index
    %288 = vector.load %arg4[%c0_229, %c0_230] : memref<128x128xf32, #tpu.memory_space<vmem>>, vector<128x128xf32>
    %cst_231 = arith.constant dense<0.000000e+00> : vector<8x128xf32>
    %289 = tpu.matmul %284, %288, %cst_231 {dimension_numbers = #tpu.dot_dimension_numbers<[1], [0], [0], [1], [0, 0, 1, 1], [], []>} : vector<8x128xf32>, vector<128x128xf32>, vector<8x128xf32> -> vector<8x128xf32>
    %cst_232 = arith.constant dense<0.000000e+00> : vector<128xf32>
    %290 = vector.multi_reduction <add>, %289, %cst_232 [0] : vector<8x128xf32> to vector<128xf32>
    %291 = vector.shape_cast %290 : vector<128xf32> to vector<1x128xf32>
    %cst_233 = arith.constant 8.000000e+00 : f32
    %292 = vector.broadcast %cst_233 : f32 to vector<1x128xf32>
    %293 = arith.divf %291, %292 : vector<1x128xf32>
    %cst_234 = arith.constant 5.000000e-01 : f32
    %294 = vector.broadcast %cst_234 : f32 to vector<1x128xf32>
    %295 = arith.mulf %294, %293 : vector<1x128xf32>
    %cst_235 = arith.constant 0.707106769 : f32
    %296 = vector.broadcast %cst_235 : f32 to vector<1x128xf32>
    %297 = arith.mulf %293, %296 : vector<1x128xf32>
    %298 = math.erf %297 : vector<1x128xf32>
    %cst_236 = arith.constant 1.000000e+00 : f32
    %299 = vector.broadcast %cst_236 : f32 to vector<1x128xf32>
    %300 = arith.addf %299, %298 : vector<1x128xf32>
    %301 = arith.mulf %295, %300 : vector<1x128xf32>
    %302 = vector.extract_strided_slice %42 {offsets = [0, 256], sizes = [8, 128], strides = [1, 1]} : vector<8x384xf32> to vector<8x128xf32>
    %303 = vector.broadcast %301 : vector<1x128xf32> to vector<8x128xf32>
    %304 = arith.mulf %303, %302 : vector<8x128xf32>
    %305 = arith.addf %287, %304 : vector<8x128xf32>
    %c0_237 = arith.constant 0 : index
    %c0_238 = arith.constant 0 : index
    %c0_239 = arith.constant 0 : index
    %306 = vector.load %arg16[%c0_237, %c0_238, %c0_239] : memref<1x128x128xf32, #tpu.memory_space<vmem>>, vector<1x128x128xf32>
    %307 = vector.shape_cast %306 : vector<1x128x128xf32> to vector<128x128xf32>
    %cst_240 = arith.constant dense<0.000000e+00> : vector<8x128xf32>
    %308 = tpu.matmul %305, %307, %cst_240 {dimension_numbers = #tpu.dot_dimension_numbers<[1], [0], [0], [1], [0, 0, 1, 1], [], []>} : vector<8x128xf32>, vector<128x128xf32>, vector<8x128xf32> -> vector<8x128xf32>
    %c0_241 = arith.constant 0 : index
    %c0_242 = arith.constant 0 : index
    %c0_243 = arith.constant 0 : index
    %309 = vector.load %arg17[%c0_241, %c0_242, %c0_243] : memref<1x1x128xf32, #tpu.memory_space<vmem>>, vector<1x1x128xf32>
    %310 = vector.shape_cast %309 : vector<1x1x128xf32> to vector<1x128xf32>
    %311 = vector.broadcast %310 : vector<1x128xf32> to vector<8x128xf32>
    %312 = arith.addf %308, %311 : vector<8x128xf32>
    %313 = arith.mulf %28, %312 : vector<8x128xf32>
    %c0_244 = arith.constant 0 : index
    %c0_245 = arith.constant 0 : index
    %c0_246 = arith.constant 0 : index
    %314 = vector.load %arg18[%c0_244, %c0_245, %c0_246] : memref<1x128x128xf32, #tpu.memory_space<vmem>>, vector<1x128x128xf32>
    %315 = vector.shape_cast %314 : vector<1x128x128xf32> to vector<128x128xf32>
    %cst_247 = arith.constant dense<0.000000e+00> : vector<8x128xf32>
    %316 = tpu.matmul %313, %315, %cst_247 {dimension_numbers = #tpu.dot_dimension_numbers<[1], [0], [0], [1], [0, 0, 1, 1], [], []>} : vector<8x128xf32>, vector<128x128xf32>, vector<8x128xf32> -> vector<8x128xf32>
    %c0_248 = arith.constant 0 : index
    %c0_249 = arith.constant 0 : index
    %c0_250 = arith.constant 0 : index
    %317 = vector.load %arg19[%c0_248, %c0_249, %c0_250] : memref<1x1x128xf32, #tpu.memory_space<vmem>>, vector<1x1x128xf32>
    %318 = vector.shape_cast %317 : vector<1x1x128xf32> to vector<1x128xf32>
    %319 = vector.broadcast %318 : vector<1x128xf32> to vector<8x128xf32>
    %320 = arith.addf %316, %319 : vector<8x128xf32>
    %321 = arith.addf %4, %320 : vector<8x128xf32>
    %c0_251 = arith.constant 0 : index
    %c0_252 = arith.constant 0 : index
    %c0_253 = arith.constant 0 : index
    %322 = vector.load %arg20[%c0_251, %c0_252, %c0_253] : memref<1x1x128xf32, #tpu.memory_space<vmem>>, vector<1x1x128xf32>
    %323 = vector.shape_cast %322 : vector<1x1x128xf32> to vector<1x128xf32>
    %c0_254 = arith.constant 0 : index
    %c0_255 = arith.constant 0 : index
    %c0_256 = arith.constant 0 : index
    %324 = vector.load %arg21[%c0_254, %c0_255, %c0_256] : memref<1x1x128xf32, #tpu.memory_space<vmem>>, vector<1x1x128xf32>
    %325 = vector.shape_cast %324 : vector<1x1x128xf32> to vector<1x128xf32>
    %cst_257 = arith.constant dense<0.000000e+00> : vector<8x128xf32>
    %326 = tpu.matmul %321, %5, %cst_257 {dimension_numbers = #tpu.dot_dimension_numbers<[1], [0], [0], [1], [0, 0, 1, 1], [], []>} : vector<8x128xf32>, vector<128x128xf32>, vector<8x128xf32> -> vector<8x128xf32>
    %327 = arith.subf %321, %326 : vector<8x128xf32>
    %328 = arith.mulf %327, %327 : vector<8x128xf32>
    %cst_258 = arith.constant dense<0.000000e+00> : vector<8x128xf32>
    %329 = tpu.matmul %328, %5, %cst_258 {dimension_numbers = #tpu.dot_dimension_numbers<[1], [0], [0], [1], [0, 0, 1, 1], [], []>} : vector<8x128xf32>, vector<128x128xf32>, vector<8x128xf32> -> vector<8x128xf32>
    %cst_259 = arith.constant 9.99999974E-6 : f32
    %330 = vector.broadcast %cst_259 : f32 to vector<8x128xf32>
    %331 = arith.addf %329, %330 : vector<8x128xf32>
    %332 = math.rsqrt %331 : vector<8x128xf32>
    %333 = arith.mulf %327, %332 : vector<8x128xf32>
    %334 = vector.broadcast %323 : vector<1x128xf32> to vector<8x128xf32>
    %335 = arith.mulf %333, %334 : vector<8x128xf32>
    %336 = vector.broadcast %325 : vector<1x128xf32> to vector<8x128xf32>
    %337 = arith.addf %335, %336 : vector<8x128xf32>
    %c0_260 = arith.constant 0 : index
    %c0_261 = arith.constant 0 : index
    %c0_262 = arith.constant 0 : index
    %338 = vector.load %arg22[%c0_260, %c0_261, %c0_262] : memref<1x128x512xf32, #tpu.memory_space<vmem>>, vector<1x128x512xf32>
    %339 = vector.shape_cast %338 : vector<1x128x512xf32> to vector<128x512xf32>
    %cst_263 = arith.constant dense<0.000000e+00> : vector<8x512xf32>
    %340 = tpu.matmul %337, %339, %cst_263 {dimension_numbers = #tpu.dot_dimension_numbers<[1], [0], [0], [1], [0, 0, 1, 1], [], []>} : vector<8x128xf32>, vector<128x512xf32>, vector<8x512xf32> -> vector<8x512xf32>
    %c0_264 = arith.constant 0 : index
    %c0_265 = arith.constant 0 : index
    %c0_266 = arith.constant 0 : index
    %341 = vector.load %arg23[%c0_264, %c0_265, %c0_266] : memref<1x1x512xf32, #tpu.memory_space<vmem>>, vector<1x1x512xf32>
    %342 = vector.shape_cast %341 : vector<1x1x512xf32> to vector<1x512xf32>
    %343 = vector.broadcast %342 : vector<1x512xf32> to vector<8x512xf32>
    %344 = arith.addf %340, %343 : vector<8x512xf32>
    %cst_267 = arith.constant 5.000000e-01 : f32
    %345 = vector.broadcast %cst_267 : f32 to vector<8x512xf32>
    %346 = arith.mulf %345, %344 : vector<8x512xf32>
    %cst_268 = arith.constant 0.707106769 : f32
    %347 = vector.broadcast %cst_268 : f32 to vector<8x512xf32>
    %348 = arith.mulf %344, %347 : vector<8x512xf32>
    %349 = math.erf %348 : vector<8x512xf32>
    %cst_269 = arith.constant 1.000000e+00 : f32
    %350 = vector.broadcast %cst_269 : f32 to vector<8x512xf32>
    %351 = arith.addf %350, %349 : vector<8x512xf32>
    %352 = arith.mulf %346, %351 : vector<8x512xf32>
    %c0_270 = arith.constant 0 : index
    %c0_271 = arith.constant 0 : index
    %c0_272 = arith.constant 0 : index
    %353 = vector.load %arg24[%c0_270, %c0_271, %c0_272] : memref<1x512x128xf32, #tpu.memory_space<vmem>>, vector<1x512x128xf32>
    %354 = vector.shape_cast %353 : vector<1x512x128xf32> to vector<512x128xf32>
    %cst_273 = arith.constant dense<0.000000e+00> : vector<8x128xf32>
    %355 = tpu.matmul %352, %354, %cst_273 {dimension_numbers = #tpu.dot_dimension_numbers<[1], [0], [0], [1], [0, 0, 1, 1], [], []>} : vector<8x512xf32>, vector<512x128xf32>, vector<8x128xf32> -> vector<8x128xf32>
    %c0_274 = arith.constant 0 : index
    %c0_275 = arith.constant 0 : index
    %c0_276 = arith.constant 0 : index
    %356 = vector.load %arg25[%c0_274, %c0_275, %c0_276] : memref<1x1x128xf32, #tpu.memory_space<vmem>>, vector<1x1x128xf32>
    %357 = vector.shape_cast %356 : vector<1x1x128xf32> to vector<1x128xf32>
    %358 = vector.broadcast %357 : vector<1x128xf32> to vector<8x128xf32>
    %359 = arith.addf %355, %358 : vector<8x128xf32>
    %360 = arith.addf %321, %359 : vector<8x128xf32>
    %c0_277 = arith.constant 0 : index
    %c0_278 = arith.constant 0 : index
    %c0_279 = arith.constant 0 : index
    %361 = vector.load %arg26[%c0_277, %c0_278, %c0_279] : memref<1x8x128xf32, #tpu.memory_space<vmem>>, vector<1x8x128xf32>
    %362 = vector.shape_cast %361 : vector<1x8x128xf32> to vector<8x128xf32>
    %363 = vector.shape_cast %360 : vector<8x128xf32> to vector<1x8x128xf32>
    tpu.vector_store %arg26[%c0_277, %c0_278, %c0_279], %363 {strides = array<i32>} : memref<1x8x128xf32, #tpu.memory_space<vmem>>, vector<1x8x128xf32>,
    return
  }
  func.func @transform_0(%arg0: i32, %arg1: i32) -> (i32, i32, i32) {
    %c0_i32 = arith.constant 0 : i32
    %c0_i32_0 = arith.constant 0 : i32
    %c0_i32_1 = arith.constant 0 : i32
    return %arg0, %c0_i32, %c0_i32_0 : i32, i32, i32
  }
  func.func @transform_1(%arg0: i32, %arg1: i32) -> (i32, i32) {
    %c0_i32 = arith.constant 0 : i32
    %c0_i32_0 = arith.constant 0 : i32
    %c0_i32_1 = arith.constant 0 : i32
    return %c0_i32, %c0_i32_0 : i32, i32
  }
  func.func @transform_2(%arg0: i32, %arg1: i32) -> (i32, i32) {
    %c0_i32 = arith.constant 0 : i32
    %c0_i32_0 = arith.constant 0 : i32
    %c0_i32_1 = arith.constant 0 : i32
    return %c0_i32, %c0_i32_0 : i32, i32
  }
  func.func @transform_3(%arg0: i32, %arg1: i32) -> (i32, i32, i32) {
    %c0_i32 = arith.constant 0 : i32
    %c0_i32_0 = arith.constant 0 : i32
    %c0_i32_1 = arith.constant 0 : i32
    %c0_i32_2 = arith.constant 0 : i32
    return %c0_i32, %c0_i32_0, %c0_i32_1 : i32, i32, i32
  }
  func.func @transform_4(%arg0: i32, %arg1: i32) -> (i32, i32, i32) {
    %c0_i32 = arith.constant 0 : i32
    %c0_i32_0 = arith.constant 0 : i32
    %c0_i32_1 = arith.constant 0 : i32
    return %arg1, %c0_i32, %c0_i32_0 : i32, i32, i32
  }
  func.func @transform_5(%arg0: i32, %arg1: i32) -> (i32, i32, i32) {
    %c0_i32 = arith.constant 0 : i32
    %c0_i32_0 = arith.constant 0 : i32
    %c0_i32_1 = arith.constant 0 : i32
    return %arg1, %c0_i32, %c0_i32_0 : i32, i32, i32
  }
  func.func @transform_6(%arg0: i32, %arg1: i32) -> (i32, i32, i32) {
    %c0_i32 = arith.constant 0 : i32
    %c0_i32_0 = arith.constant 0 : i32
    %c0_i32_1 = arith.constant 0 : i32
    return %arg1, %c0_i32, %c0_i32_0 : i32, i32, i32
  }
  func.func @transform_7(%arg0: i32, %arg1: i32) -> (i32, i32, i32) {
    %c0_i32 = arith.constant 0 : i32
    %c0_i32_0 = arith.constant 0 : i32
    %c0_i32_1 = arith.constant 0 : i32
    return %arg1, %c0_i32, %c0_i32_0 : i32, i32, i32
  }
  func.func @transform_8(%arg0: i32, %arg1: i32) -> (i32, i32, i32) {
    %c0_i32 = arith.constant 0 : i32
    %c0_i32_0 = arith.constant 0 : i32
    %c0_i32_1 = arith.constant 0 : i32
    return %arg1, %c0_i32, %c0_i32_0 : i32, i32, i32
  }
  func.func @transform_9(%arg0: i32, %arg1: i32) -> (i32, i32, i32) {
    %c0_i32 = arith.constant 0 : i32
    %c0_i32_0 = arith.constant 0 : i32
    %c0_i32_1 = arith.constant 0 : i32
    return %arg1, %c0_i32, %c0_i32_0 : i32, i32, i32
  }
  func.func @transform_10(%arg0: i32, %arg1: i32) -> (i32, i32, i32) {
    %c0_i32 = arith.constant 0 : i32
    %c0_i32_0 = arith.constant 0 : i32
    %c0_i32_1 = arith.constant 0 : i32
    return %arg1, %c0_i32, %c0_i32_0 : i32, i32, i32
  }
  func.func @transform_11(%arg0: i32, %arg1: i32) -> (i32, i32, i32) {
    %c0_i32 = arith.constant 0 : i32
    %c0_i32_0 = arith.constant 0 : i32
    %c0_i32_1 = arith.constant 0 : i32
    return %arg1, %c0_i32, %c0_i32_0 : i32, i32, i32
  }
  func.func @transform_12(%arg0: i32, %arg1: i32) -> (i32, i32, i32, i32) {
    %c0_i32 = arith.constant 0 : i32
    %c0_i32_0 = arith.constant 0 : i32
    %c0_i32_1 = arith.constant 0 : i32
    %c0_i32_2 = arith.constant 0 : i32
    return %arg1, %c0_i32, %c0_i32_0, %c0_i32_1 : i32, i32, i32, i32
  }
  func.func @transform_13(%arg0: i32, %arg1: i32) -> (i32, i32, i32, i32) {
    %c0_i32 = arith.constant 0 : i32
    %c0_i32_0 = arith.constant 0 : i32
    %c0_i32_1 = arith.constant 0 : i32
    %c0_i32_2 = arith.constant 0 : i32
    return %arg1, %c0_i32, %c0_i32_0, %c0_i32_1 : i32, i32, i32, i32
  }
  func.func @transform_14(%arg0: i32, %arg1: i32) -> (i32, i32, i32) {
    %c0_i32 = arith.constant 0 : i32
    %c0_i32_0 = arith.constant 0 : i32
    %c0_i32_1 = arith.constant 0 : i32
    return %arg1, %c0_i32, %c0_i32_0 : i32, i32, i32
  }
  func.func @transform_15(%arg0: i32, %arg1: i32) -> (i32, i32, i32) {
    %c0_i32 = arith.constant 0 : i32
    %c0_i32_0 = arith.constant 0 : i32
    %c0_i32_1 = arith.constant 0 : i32
    return %arg1, %c0_i32, %c0_i32_0 : i32, i32, i32
  }
  func.func @transform_16(%arg0: i32, %arg1: i32) -> (i32, i32, i32) {
    %c0_i32 = arith.constant 0 : i32
    %c0_i32_0 = arith.constant 0 : i32
    %c0_i32_1 = arith.constant 0 : i32
    return %arg1, %c0_i32, %c0_i32_0 : i32, i32, i32
  }
  func.func @transform_17(%arg0: i32, %arg1: i32) -> (i32, i32, i32) {
    %c0_i32 = arith.constant 0 : i32
    %c0_i32_0 = arith.constant 0 : i32
    %c0_i32_1 = arith.constant 0 : i32
    return %arg1, %c0_i32, %c0_i32_0 : i32, i32, i32
  }
  func.func @transform_18(%arg0: i32, %arg1: i32) -> (i32, i32, i32) {
    %c0_i32 = arith.constant 0 : i32
    %c0_i32_0 = arith.constant 0 : i32
    %c0_i32_1 = arith.constant 0 : i32
    return %arg1, %c0_i32, %c0_i32_0 : i32, i32, i32
  }
  func.func @transform_19(%arg0: i32, %arg1: i32) -> (i32, i32, i32) {
    %c0_i32 = arith.constant 0 : i32
    %c0_i32_0 = arith.constant 0 : i32
    %c0_i32_1 = arith.constant 0 : i32
    return %arg1, %c0_i32, %c0_i32_0 : i32, i32, i32
  }
  func.func @transform_20(%arg0: i32, %arg1: i32) -> (i32, i32, i32) {
    %c0_i32 = arith.constant 0 : i32
    %c0_i32_0 = arith.constant 0 : i32
    %c0_i32_1 = arith.constant 0 : i32
    return %arg1, %c0_i32, %c0_i32_0 : i32, i32, i32
  }
  func.func @transform_21(%arg0: i32, %arg1: i32) -> (i32, i32, i32) {
    %c0_i32 = arith.constant 0 : i32
    %c0_i32_0 = arith.constant 0 : i32
    %c0_i32_1 = arith.constant 0 : i32
    return %arg1, %c0_i32, %c0_i32_0 : i32, i32, i32
  }
  func.func @transform_22(%arg0: i32, %arg1: i32) -> (i32, i32, i32) {
    %c0_i32 = arith.constant 0 : i32
    %c0_i32_0 = arith.constant 0 : i32
    %c0_i32_1 = arith.constant 0 : i32
    return %arg1, %c0_i32, %c0_i32_0 : i32, i32, i32
  }
  func.func @transform_23(%arg0: i32, %arg1: i32) -> (i32, i32, i32) {
    %c0_i32 = arith.constant 0 : i32
    %c0_i32_0 = arith.constant 0 : i32
    %c0_i32_1 = arith.constant 0 : i32
    return %arg1, %c0_i32, %c0_i32_0 : i32, i32, i32
  }
  func.func @transform_24(%arg0: i32, %arg1: i32) -> (i32, i32, i32) {
    %c0_i32 = arith.constant 0 : i32
    %c0_i32_0 = arith.constant 0 : i32
    %c0_i32_1 = arith.constant 0 : i32
    return %arg0, %c0_i32, %c0_i32_0 : i32, i32, i32
  }
}

</mosaic_0001>

<llo_original>
// kernel: tpu_custom_call.1
$region0: #{tpu_custom_call.1}
  #allocation0 [shape = 'u32[]', space=smem, size = 0x4, offset = 0x4, fixed_abs, tag = 'smem constant byte address 0x4 - core index']
  #allocation1 [shape = 'u32[144,128]{1,0:T(1,128)}', space=vmem, size = 0x12000, scoped, tag = 'internal scratch']
  %s0 = inlined_call_operand.hbm [shape: f32[2,8,128], index: 0, kind: input, shape index: {}]
  %s1 = inlined_call_operand.vmem [shape: f32[128,128], index: 1, kind: input, shape index: {}]
  %s2 = inlined_call_operand.hbm [shape: f32[128,128], index: 2, kind: input, shape index: {}]
  %s3 = inlined_call_operand.vmem [shape: f32[5,8,8], index: 3, kind: input, shape index: {}]
  %s4 = inlined_call_operand.vmem [shape: f32[2,1,128], index: 4, kind: input, shape index: {}]
  %s5 = inlined_call_operand.hbm [shape: f32[2,1,128], index: 5, kind: input, shape index: {}]
  %s6 = inlined_call_operand.hbm [shape: f32[2,128,128], index: 6, kind: input, shape index: {}]
  %s7 = inlined_call_operand.hbm [shape: f32[2,1,128], index: 7, kind: input, shape index: {}]
  %s8 = inlined_call_operand.hbm [shape: f32[2,128,128], index: 8, kind: input, shape index: {}]
  %s9 = inlined_call_operand.hbm [shape: f32[2,1,128], index: 9, kind: input, shape index: {}]
  %s10 = inlined_call_operand.hbm [shape: f32[2,128,384], index: 10, kind: input, shape index: {}]
  %s11 = inlined_call_operand.hbm [shape: f32[2,1,384], index: 11, kind: input, shape index: {}]
  %s12 = inlined_call_operand.vmem [shape: f32[2,3,3,128], index: 12, kind: input, shape index: {}]
  %s13 = inlined_call_operand.vmem [shape: f32[2,5,5,128], index: 13, kind: input, shape index: {}]
  %s14 = inlined_call_operand.hbm [shape: f32[2,128,128], index: 14, kind: input, shape index: {}]
  %s15 = inlined_call_operand.hbm [shape: f32[2,1,128], index: 15, kind: input, shape index: {}]
  %s16 = inlined_call_operand.hbm [shape: f32[2,128,128], index: 16, kind: input, shape index: {}]
  %s17 = inlined_call_operand.vmem [shape: f32[2,1,128], index: 17, kind: input, shape index: {}]
  %s18 = inlined_call_operand.vmem [shape: f32[2,1,128], index: 18, kind: input, shape index: {}]
  %s19 = inlined_call_operand.vmem [shape: f32[2,1,128], index: 19, kind: input, shape index: {}]
  %s20 = inlined_call_operand.hbm [shape: f32[2,128,512], index: 20, kind: input, shape index: {}]
  %s21 = inlined_call_operand.vmem [shape: f32[2,1,512], index: 21, kind: input, shape index: {}]
  %s22 = inlined_call_operand.hbm [shape: f32[2,512,128], index: 22, kind: input, shape index: {}]
  %s23 = inlined_call_operand.vmem [shape: f32[2,1,128], index: 23, kind: input, shape index: {}]
  %s24 = inlined_call_operand.hbm [shape: f32[2,8,128], index: 24, kind: output, shape index: {}]
  %s25 = sld [smem:[#allocation0]]
  $region189: #{tpu_custom_call.1} parent=0
    _
  %s27 = ssub.s32 1, %s25
  %s28 = scalar_select 0, %s27, %s25
  $region1: #{tpu_custom_call.1} parent=0
    #allocation2 [shape = 'u8[8192]{0}', space=vmem, size = 0x2000, scoped, tag = 'input window, operand 0']
    #allocation3 [shape = 's32[2]{0}', space=sflag, size = 0x8, scoped, tag = 'scoped memory for tpu_custom_call.1']
    #allocation4 [shape = 's32[2]{0}', space=sflag, size = 0x8, scoped, tag = 'scoped memory for tpu_custom_call.1']
    #allocation5 [shape = 'u8[65536]{0}', space=vmem, size = 0x10000, scoped, tag = 'input window, operand 2, single buffered']
    #allocation6 [shape = 's32[1]{0}', space=sflag, size = 0x4, scoped, tag = 'scoped memory for tpu_custom_call.1']
    #allocation7 [shape = 'u8[1024]{0}', space=vmem, size = 0x400, scoped, tag = 'input window, operand 5']
    #allocation8 [shape = 'u8[131072]{0}', space=vmem, size = 0x20000, scoped, tag = 'input window, operand 6']
    #allocation9 [shape = 'u8[1024]{0}', space=vmem, size = 0x400, scoped, tag = 'input window, operand 7']
    #allocation10 [shape = 'u8[131072]{0}', space=vmem, size = 0x20000, scoped, tag = 'input window, operand 8']
    #allocation11 [shape = 'u8[1024]{0}', space=vmem, size = 0x400, scoped, tag = 'input window, operand 9']
    #allocation12 [shape = 'u8[393216]{0}', space=vmem, size = 0x60000, scoped, tag = 'input window, operand 10']
    #allocation13 [shape = 'u8[3072]{0}', space=vmem, size = 0xc00, scoped, tag = 'input window, operand 11']
    #allocation14 [shape = 'u8[131072]{0}', space=vmem, size = 0x20000, scoped, tag = 'input window, operand 14']
    #allocation15 [shape = 'u8[1024]{0}', space=vmem, size = 0x400, scoped, tag = 'input window, operand 15']
    #allocation16 [shape = 'u8[131072]{0}', space=vmem, size = 0x20000, scoped, tag = 'input window, operand 16']
    #allocation17 [shape = 'u8[524288]{0}', space=vmem, size = 0x80000, scoped, tag = 'input window, operand 20']
    #allocation18 [shape = 'u8[524288]{0}', space=vmem, size = 0x80000, scoped, tag = 'input window, operand 22']
    #allocation19 [shape = 'u8[8192]{0}', space=vmem, size = 0x2000, scoped, tag = 'output window, operand 0']
    %29 = vsyncpa [#allocation3], 0
    %s30 = scalar_lea.sflag [#allocation3], 1
    %31 = vsyncpa %s30, 0
    %32 = vsyncpa [#allocation6], 0
    %33 = vsyncpa [#allocation4], 0
    %s34 = scalar_lea.sflag [#allocation4], 1
    %35 = vsyncpa %s34, 0
    loop: start=0, step=1, limit=6
    $region2: #{tpu_custom_call.1} parent=1 // loop_pre_header
      _
    $region3: #{tpu_custom_call.1} parent=1 // loop_header
      %s37 = sphi 0, %s41
      %p38 = scmp.ge.s32.totalorder %s37, 6
      %s44 = sphi 0, %s56
      %s45 = sphi 0, %s52
      %s46 = sphi 0, %s44
      %s47 = sphi 0, %s45
      %s48 = sphi 0, %s46
      %s49 = sphi 0, %s47
      %s59 = sphi 0, %s61
      %s62 = sphi 0, %s59
      %s63 = sphi 0, %s62
      %s79 = sphi 0, %s63
      %s83 = sphi 0, %s83
      %s85 = sphi 0, %s83
      %s86 = sphi 0, %s85
      %s100 = sphi 0, %s86
      %s104 = sphi 0, %s104
      %s106 = sphi 0, %s104
      %s107 = sphi 0, %s106
      %s121 = sphi 0, %s107
      %s125 = sphi 0, %s125
      %s127 = sphi 0, %s125
      %s128 = sphi 0, %s127
      %s142 = sphi 0, %s128
      %s148 = sphi 0, %s150
      %s151 = sphi 0, %s148
      %s152 = sphi 0, %s151
      %s168 = sphi 0, %s152
      %s174 = sphi 0, %s176
      %s177 = sphi 0, %s174
      %s178 = sphi 0, %s177
      %s194 = sphi 0, %s178
      %s200 = sphi 0, %s202
      %s203 = sphi 0, %s200
      %s204 = sphi 0, %s203
      %s220 = sphi 0, %s204
      %s226 = sphi 0, %s228
      %s229 = sphi 0, %s226
      %s230 = sphi 0, %s229
      %s246 = sphi 0, %s230
      %s252 = sphi 0, %s254
      %s255 = sphi 0, %s252
      %s256 = sphi 0, %s255
      %s272 = sphi 0, %s256
      %s278 = sphi 0, %s280
      %s281 = sphi 0, %s278
      %s282 = sphi 0, %s281
      %s298 = sphi 0, %s282
      %s304 = sphi 0, %s306
      %s307 = sphi 0, %s304
      %s308 = sphi 0, %s307
      %s324 = sphi 0, %s308
      %s330 = sphi 0, %s332
      %s333 = sphi 0, %s330
      %s334 = sphi 0, %s333
      %s350 = sphi 0, %s334
      %s356 = sphi 0, %s358
      %s359 = sphi 0, %s356
      %s360 = sphi 0, %s359
      %s376 = sphi 0, %s360
      %s382 = sphi 0, %s384
      %s385 = sphi 0, %s382
      %s386 = sphi 0, %s385
      %s402 = sphi 0, %s386
      %s408 = sphi 0, %s410
      %s411 = sphi 0, %s408
      %s412 = sphi 0, %s411
      %s428 = sphi 0, %s412
      %s434 = sphi 0, %s436
      %s437 = sphi 0, %s434
      %s438 = sphi 0, %s437
      %s454 = sphi 0, %s438
      %s460 = sphi 0, %s462
      %s463 = sphi 0, %s460
      %s464 = sphi 0, %s463
      %s480 = sphi 0, %s464
      %s486 = sphi 0, %s488
      %s489 = sphi 0, %s486
      %s490 = sphi 0, %s489
      %s506 = sphi 0, %s490
      %s512 = sphi 0, %s514
      %s515 = sphi 0, %s512
      %s516 = sphi 0, %s515
      %s532 = sphi 0, %s516
      %s538 = sphi 0, %s540
      %s541 = sphi 0, %s538
      %s542 = sphi 0, %s541
      %s558 = sphi 0, %s542
      %s564 = sphi 0, %s566
      %s567 = sphi 0, %s564
      %s568 = sphi 0, %s567
      %s584 = sphi 0, %s568
      %s590 = sphi 0, %s592
      %s593 = sphi 0, %s590
      %s594 = sphi 0, %s593
      %s610 = sphi 0, %s594
      %s616 = sphi 0, %s618
      %s619 = sphi 0, %s616
      %s620 = sphi 0, %s619
      %s636 = sphi 0, %s620
      %s642 = sphi 0, %s644
      %s645 = sphi 0, %s642
      %s646 = sphi 0, %s645
      %s662 = sphi 0, %s646
      %s668 = sphi 0, %s670
      %s671 = sphi 0, %s668
      %s672 = sphi 0, %s671
      %s688 = sphi 0, %s672
    $region4: #{tpu_custom_call.1} parent=1 // loop_header_branch
      %40 = sbr.rel (%p38) target = $region8
    $region5: #{tpu_custom_call.1} parent=1 // loop_body
      %s42 = ssub.s32 %s37, 1
      %s43 = ssub.s32 %s37, 2
      %s50 = sadd.s32 1, %s45
      %p51 = scmp.ge.s32.totalorder %s50, 2
      %s52 = scalar_select %p51, 0, %s50
      %s53 = sadd.s32 1, %s44
      %s54 = scalar_select %p51, %s53, %s44
      %p55 = scmp.ge.s32.totalorder %s54, 2
      %s56 = scalar_select %p55, 0, %s54
      %s57 = ssub.s32 %s44, %s56
      %p58 = scmp.eq.s32.totalorder %s57, 0
      %s60 = sadd.s32 %s59, 1
      %s61 = scalar_select %p58, %s59, %s60
      %p64 = pneg %p58
      %p65 = scmp.eq.s32.totalorder %s37, 3
      %p66 = por %p64, %p65
      %p67 = scmp.ne.s32.totalorder %s59, %s62
      %p68 = scmp.eq.s32.totalorder %s37, 0
      %p69 = por %p67, %p68
      %p70 = scmp.ne.s32.totalorder %s59, %s62
      %p71 = scmp.eq.s32.totalorder %s42, 3
      %p72 = por %p70, %p71
      %p73 = scmp.ne.s32.totalorder %s62, %s63
      %p74 = scmp.eq.s32.totalorder %s42, 0
      %p75 = por %p73, %p74
      %p76 = scmp.ne.s32.totalorder %s62, %s63
      %p77 = scmp.eq.s32.totalorder %s43, 3
      %p78 = por %p76, %p77
      %p80 = scmp.ne.s32.totalorder %s63, %s79
      %p81 = scmp.eq.s32.totalorder %s43, 0
      %p82 = por %p80, %p81
      %s84 = sadd.s32 %s83, 1
      %p87 = scmp.eq.s32.totalorder %s37, 3
      %p88 = scmp.ne.s32.totalorder %s83, %s85
      %p89 = scmp.eq.s32.totalorder %s37, 0
      %p90 = por %p88, %p89
      %p91 = scmp.ne.s32.totalorder %s83, %s85
      %p92 = scmp.eq.s32.totalorder %s42, 3
      %p93 = por %p91, %p92
      %p94 = scmp.ne.s32.totalorder %s85, %s86
      %p95 = scmp.eq.s32.totalorder %s42, 0
      %p96 = por %p94, %p95
      %p97 = scmp.ne.s32.totalorder %s85, %s86
      %p98 = scmp.eq.s32.totalorder %s43, 3
      %p99 = por %p97, %p98
      %p101 = scmp.ne.s32.totalorder %s86, %s100
      %p102 = scmp.eq.s32.totalorder %s43, 0
      %p103 = por %p101, %p102
      %s105 = sadd.s32 %s104, 1
      %p108 = scmp.eq.s32.totalorder %s37, 3
      %p109 = scmp.ne.s32.totalorder %s104, %s106
      %p110 = scmp.eq.s32.totalorder %s37, 0
      %p111 = por %p109, %p110
      %p112 = scmp.ne.s32.totalorder %s104, %s106
      %p113 = scmp.eq.s32.totalorder %s42, 3
      %p114 = por %p112, %p113
      %p115 = scmp.ne.s32.totalorder %s106, %s107
      %p116 = scmp.eq.s32.totalorder %s42, 0
      %p117 = por %p115, %p116
      %p118 = scmp.ne.s32.totalorder %s106, %s107
      %p119 = scmp.eq.s32.totalorder %s43, 3
      %p120 = por %p118, %p119
      %p122 = scmp.ne.s32.totalorder %s107, %s121
      %p123 = scmp.eq.s32.totalorder %s43, 0
      %p124 = por %p122, %p123
      %s126 = sadd.s32 %s125, 1
      %p129 = scmp.eq.s32.totalorder %s37, 3
      %p130 = scmp.ne.s32.totalorder %s125, %s127
      %p131 = scmp.eq.s32.totalorder %s37, 0
      %p132 = por %p130, %p131
      %p133 = scmp.ne.s32.totalorder %s125, %s127
      %p134 = scmp.eq.s32.totalorder %s42, 3
      %p135 = por %p133, %p134
      %p136 = scmp.ne.s32.totalorder %s127, %s128
      %p137 = scmp.eq.s32.totalorder %s42, 0
      %p138 = por %p136, %p137
      %p139 = scmp.ne.s32.totalorder %s127, %s128
      %p140 = scmp.eq.s32.totalorder %s43, 3
      %p141 = por %p139, %p140
      %p143 = scmp.ne.s32.totalorder %s128, %s142
      %p144 = scmp.eq.s32.totalorder %s43, 0
      %p145 = por %p143, %p144
      %s146 = ssub.s32 %s45, %s52
      %p147 = scmp.eq.s32.totalorder %s146, 0
      %s149 = sadd.s32 %s148, 1
      %s150 = scalar_select %p147, %s148, %s149
      %p153 = pneg %p147
      %p154 = scmp.eq.s32.totalorder %s37, 3
      %p155 = por %p153, %p154
      %p156 = scmp.ne.s32.totalorder %s148, %s151
      %p157 = scmp.eq.s32.totalorder %s37, 0
      %p158 = por %p156, %p157
      %p159 = scmp.ne.s32.totalorder %s148, %s151
      %p160 = scmp.eq.s32.totalorder %s42, 3
      %p161 = por %p159, %p160
      %p162 = scmp.ne.s32.totalorder %s151, %s152
      %p163 = scmp.eq.s32.totalorder %s42, 0
      %p164 = por %p162, %p163
      %p165 = scmp.ne.s32.totalorder %s151, %s152
      %p166 = scmp.eq.s32.totalorder %s43, 3
      %p167 = por %p165, %p166
      %p169 = scmp.ne.s32.totalorder %s152, %s168
      %p170 = scmp.eq.s32.totalorder %s43, 0
      %p171 = por %p169, %p170
      %s172 = ssub.s32 %s45, %s52
      %p173 = scmp.eq.s32.totalorder %s172, 0
      %s175 = sadd.s32 %s174, 1
      %s176 = scalar_select %p173, %s174, %s175
      %p179 = pneg %p173
      %p180 = scmp.eq.s32.totalorder %s37, 3
      %p181 = por %p179, %p180
      %p182 = scmp.ne.s32.totalorder %s174, %s177
      %p183 = scmp.eq.s32.totalorder %s37, 0
      %p184 = por %p182, %p183
      %p185 = scmp.ne.s32.totalorder %s174, %s177
      %p186 = scmp.eq.s32.totalorder %s42, 3
      %p187 = por %p185, %p186
      %p188 = scmp.ne.s32.totalorder %s177, %s178
      %p189 = scmp.eq.s32.totalorder %s42, 0
      %p190 = por %p188, %p189
      %p191 = scmp.ne.s32.totalorder %s177, %s178
      %p192 = scmp.eq.s32.totalorder %s43, 3
      %p193 = por %p191, %p192
      %p195 = scmp.ne.s32.totalorder %s178, %s194
      %p196 = scmp.eq.s32.totalorder %s43, 0
      %p197 = por %p195, %p196
      %s198 = ssub.s32 %s45, %s52
      %p199 = scmp.eq.s32.totalorder %s198, 0
      %s201 = sadd.s32 %s200, 1
      %s202 = scalar_select %p199, %s200, %s201
      %p205 = pneg %p199
      %p206 = scmp.eq.s32.totalorder %s37, 3
      %p207 = por %p205, %p206
      %p208 = scmp.ne.s32.totalorder %s200, %s203
      %p209 = scmp.eq.s32.totalorder %s37, 0
      %p210 = por %p208, %p209
      %p211 = scmp.ne.s32.totalorder %s200, %s203
      %p212 = scmp.eq.s32.totalorder %s42, 3
      %p213 = por %p211, %p212
      %p214 = scmp.ne.s32.totalorder %s203, %s204
      %p215 = scmp.eq.s32.totalorder %s42, 0
      %p216 = por %p214, %p215
      %p217 = scmp.ne.s32.totalorder %s203, %s204
      %p218 = scmp.eq.s32.totalorder %s43, 3
      %p219 = por %p217, %p218
      %p221 = scmp.ne.s32.totalorder %s204, %s220
      %p222 = scmp.eq.s32.totalorder %s43, 0
      %p223 = por %p221, %p222
      %s224 = ssub.s32 %s45, %s52
      %p225 = scmp.eq.s32.totalorder %s224, 0
      %s227 = sadd.s32 %s226, 1
      %s228 = scalar_select %p225, %s226, %s227
      %p231 = pneg %p225
      %p232 = scmp.eq.s32.totalorder %s37, 3
      %p233 = por %p231, %p232
      %p234 = scmp.ne.s32.totalorder %s226, %s229
      %p235 = scmp.eq.s32.totalorder %s37, 0
      %p236 = por %p234, %p235
      %p237 = scmp.ne.s32.totalorder %s226, %s229
      %p238 = scmp.eq.s32.totalorder %s42, 3
      %p239 = por %p237, %p238
      %p240 = scmp.ne.s32.totalorder %s229, %s230
      %p241 = scmp.eq.s32.totalorder %s42, 0
      %p242 = por %p240, %p241
      %p243 = scmp.ne.s32.totalorder %s229, %s230
      %p244 = scmp.eq.s32.totalorder %s43, 3
      %p245 = por %p243, %p244
      %p247 = scmp.ne.s32.totalorder %s230, %s246
      %p248 = scmp.eq.s32.totalorder %s43, 0
      %p249 = por %p247, %p248
      %s250 = ssub.s32 %s45, %s52
      %p251 = scmp.eq.s32.totalorder %s250, 0
      %s253 = sadd.s32 %s252, 1
      %s254 = scalar_select %p251, %s252, %s253
      %p257 = pneg %p251
      %p258 = scmp.eq.s32.totalorder %s37, 3
      %p259 = por %p257, %p258
      %p260 = scmp.ne.s32.totalorder %s252, %s255
      %p261 = scmp.eq.s32.totalorder %s37, 0
      %p262 = por %p260, %p261
      %p263 = scmp.ne.s32.totalorder %s252, %s255
      %p264 = scmp.eq.s32.totalorder %s42, 3
      %p265 = por %p263, %p264
      %p266 = scmp.ne.s32.totalorder %s255, %s256
      %p267 = scmp.eq.s32.totalorder %s42, 0
      %p268 = por %p266, %p267
      %p269 = scmp.ne.s32.totalorder %s255, %s256
      %p270 = scmp.eq.s32.totalorder %s43, 3
      %p271 = por %p269, %p270
      %p273 = scmp.ne.s32.totalorder %s256, %s272
      %p274 = scmp.eq.s32.totalorder %s43, 0
      %p275 = por %p273, %p274
      %s276 = ssub.s32 %s45, %s52
      %p277 = scmp.eq.s32.totalorder %s276, 0
      %s279 = sadd.s32 %s278, 1
      %s280 = scalar_select %p277, %s278, %s279
      %p283 = pneg %p277
      %p284 = scmp.eq.s32.totalorder %s37, 3
      %p285 = por %p283, %p284
      %p286 = scmp.ne.s32.totalorder %s278, %s281
      %p287 = scmp.eq.s32.totalorder %s37, 0
      %p288 = por %p286, %p287
      %p289 = scmp.ne.s32.totalorder %s278, %s281
      %p290 = scmp.eq.s32.totalorder %s42, 3
      %p291 = por %p289, %p290
      %p292 = scmp.ne.s32.totalorder %s281, %s282
      %p293 = scmp.eq.s32.totalorder %s42, 0
      %p294 = por %p292, %p293
      %p295 = scmp.ne.s32.totalorder %s281, %s282
      %p296 = scmp.eq.s32.totalorder %s43, 3
      %p297 = por %p295, %p296
      %p299 = scmp.ne.s32.totalorder %s282, %s298
      %p300 = scmp.eq.s32.totalorder %s43, 0
      %p301 = por %p299, %p300
      %s302 = ssub.s32 %s45, %s52
      %p303 = scmp.eq.s32.totalorder %s302, 0
      %s305 = sadd.s32 %s304, 1
      %s306 = scalar_select %p303, %s304, %s305
      %p309 = pneg %p303
      %p310 = scmp.eq.s32.totalorder %s37, 3
      %p311 = por %p309, %p310
      %p312 = scmp.ne.s32.totalorder %s304, %s307
      %p313 = scmp.eq.s32.totalorder %s37, 0
      %p314 = por %p312, %p313
      %p315 = scmp.ne.s32.totalorder %s304, %s307
      %p316 = scmp.eq.s32.totalorder %s42, 3
      %p317 = por %p315, %p316
      %p318 = scmp.ne.s32.totalorder %s307, %s308
      %p319 = scmp.eq.s32.totalorder %s42, 0
      %p320 = por %p318, %p319
      %p321 = scmp.ne.s32.totalorder %s307, %s308
      %p322 = scmp.eq.s32.totalorder %s43, 3
      %p323 = por %p321, %p322
      %p325 = scmp.ne.s32.totalorder %s308, %s324
      %p326 = scmp.eq.s32.totalorder %s43, 0
      %p327 = por %p325, %p326
      %s328 = ssub.s32 %s45, %s52
      %p329 = scmp.eq.s32.totalorder %s328, 0
      %s331 = sadd.s32 %s330, 1
      %s332 = scalar_select %p329, %s330, %s331
      %p335 = pneg %p329
      %p336 = scmp.eq.s32.totalorder %s37, 3
      %p337 = por %p335, %p336
      %p338 = scmp.ne.s32.totalorder %s330, %s333
      %p339 = scmp.eq.s32.totalorder %s37, 0
      %p340 = por %p338, %p339
      %p341 = scmp.ne.s32.totalorder %s330, %s333
      %p342 = scmp.eq.s32.totalorder %s42, 3
      %p343 = por %p341, %p342
      %p344 = scmp.ne.s32.totalorder %s333, %s334
      %p345 = scmp.eq.s32.totalorder %s42, 0
      %p346 = por %p344, %p345
      %p347 = scmp.ne.s32.totalorder %s333, %s334
      %p348 = scmp.eq.s32.totalorder %s43, 3
      %p349 = por %p347, %p348
      %p351 = scmp.ne.s32.totalorder %s334, %s350
      %p352 = scmp.eq.s32.totalorder %s43, 0
      %p353 = por %p351, %p352
      %s354 = ssub.s32 %s45, %s52
      %p355 = scmp.eq.s32.totalorder %s354, 0
      %s357 = sadd.s32 %s356, 1
      %s358 = scalar_select %p355, %s356, %s357
      %p361 = pneg %p355
      %p362 = scmp.eq.s32.totalorder %s37, 3
      %p363 = por %p361, %p362
      %p364 = scmp.ne.s32.totalorder %s356, %s359
      %p365 = scmp.eq.s32.totalorder %s37, 0
      %p366 = por %p364, %p365
      %p367 = scmp.ne.s32.totalorder %s356, %s359
      %p368 = scmp.eq.s32.totalorder %s42, 3
      %p369 = por %p367, %p368
      %p370 = scmp.ne.s32.totalorder %s359, %s360
      %p371 = scmp.eq.s32.totalorder %s42, 0
      %p372 = por %p370, %p371
      %p373 = scmp.ne.s32.totalorder %s359, %s360
      %p374 = scmp.eq.s32.totalorder %s43, 3
      %p375 = por %p373, %p374
      %p377 = scmp.ne.s32.totalorder %s360, %s376
      %p378 = scmp.eq.s32.totalorder %s43, 0
      %p379 = por %p377, %p378
      %s380 = ssub.s32 %s45, %s52
      %p381 = scmp.eq.s32.totalorder %s380, 0
      %s383 = sadd.s32 %s382, 1
      %s384 = scalar_select %p381, %s382, %s383
      %p387 = pneg %p381
      %p388 = scmp.eq.s32.totalorder %s37, 3
      %p389 = por %p387, %p388
      %p390 = scmp.ne.s32.totalorder %s382, %s385
      %p391 = scmp.eq.s32.totalorder %s37, 0
      %p392 = por %p390, %p391
      %p393 = scmp.ne.s32.totalorder %s382, %s385
      %p394 = scmp.eq.s32.totalorder %s42, 3
      %p395 = por %p393, %p394
      %p396 = scmp.ne.s32.totalorder %s385, %s386
      %p397 = scmp.eq.s32.totalorder %s42, 0
      %p398 = por %p396, %p397
      %p399 = scmp.ne.s32.totalorder %s385, %s386
      %p400 = scmp.eq.s32.totalorder %s43, 3
      %p401 = por %p399, %p400
      %p403 = scmp.ne.s32.totalorder %s386, %s402
      %p404 = scmp.eq.s32.totalorder %s43, 0
      %p405 = por %p403, %p404
      %s406 = ssub.s32 %s45, %s52
      %p407 = scmp.eq.s32.totalorder %s406, 0
      %s409 = sadd.s32 %s408, 1
      %s410 = scalar_select %p407, %s408, %s409
      %p413 = pneg %p407
      %p414 = scmp.eq.s32.totalorder %s37, 3
      %p415 = por %p413, %p414
      %p416 = scmp.ne.s32.totalorder %s408, %s411
      %p417 = scmp.eq.s32.totalorder %s37, 0
      %p418 = por %p416, %p417
      %p419 = scmp.ne.s32.totalorder %s408, %s411
      %p420 = scmp.eq.s32.totalorder %s42, 3
      %p421 = por %p419, %p420
      %p422 = scmp.ne.s32.totalorder %s411, %s412
      %p423 = scmp.eq.s32.totalorder %s42, 0
      %p424 = por %p422, %p423
      %p425 = scmp.ne.s32.totalorder %s411, %s412
      %p426 = scmp.eq.s32.totalorder %s43, 3
      %p427 = por %p425, %p426
      %p429 = scmp.ne.s32.totalorder %s412, %s428
      %p430 = scmp.eq.s32.totalorder %s43, 0
      %p431 = por %p429, %p430
      %s432 = ssub.s32 %s45, %s52
      %p433 = scmp.eq.s32.totalorder %s432, 0
      %s435 = sadd.s32 %s434, 1
      %s436 = scalar_select %p433, %s434, %s435
      %p439 = pneg %p433
      %p440 = scmp.eq.s32.totalorder %s37, 3
      %p441 = por %p439, %p440
      %p442 = scmp.ne.s32.totalorder %s434, %s437
      %p443 = scmp.eq.s32.totalorder %s37, 0
      %p444 = por %p442, %p443
      %p445 = scmp.ne.s32.totalorder %s434, %s437
      %p446 = scmp.eq.s32.totalorder %s42, 3
      %p447 = por %p445, %p446
      %p448 = scmp.ne.s32.totalorder %s437, %s438
      %p449 = scmp.eq.s32.totalorder %s42, 0
      %p450 = por %p448, %p449
      %p451 = scmp.ne.s32.totalorder %s437, %s438
      %p452 = scmp.eq.s32.totalorder %s43, 3
      %p453 = por %p451, %p452
      %p455 = scmp.ne.s32.totalorder %s438, %s454
      %p456 = scmp.eq.s32.totalorder %s43, 0
      %p457 = por %p455, %p456
      %s458 = ssub.s32 %s45, %s52
      %p459 = scmp.eq.s32.totalorder %s458, 0
      %s461 = sadd.s32 %s460, 1
      %s462 = scalar_select %p459, %s460, %s461
      %p465 = pneg %p459
      %p466 = scmp.eq.s32.totalorder %s37, 3
      %p467 = por %p465, %p466
      %p468 = scmp.ne.s32.totalorder %s460, %s463
      %p469 = scmp.eq.s32.totalorder %s37, 0
      %p470 = por %p468, %p469
      %p471 = scmp.ne.s32.totalorder %s460, %s463
      %p472 = scmp.eq.s32.totalorder %s42, 3
      %p473 = por %p471, %p472
      %p474 = scmp.ne.s32.totalorder %s463, %s464
      %p475 = scmp.eq.s32.totalorder %s42, 0
      %p476 = por %p474, %p475
      %p477 = scmp.ne.s32.totalorder %s463, %s464
      %p478 = scmp.eq.s32.totalorder %s43, 3
      %p479 = por %p477, %p478
      %p481 = scmp.ne.s32.totalorder %s464, %s480
      %p482 = scmp.eq.s32.totalorder %s43, 0
      %p483 = por %p481, %p482
      %s484 = ssub.s32 %s45, %s52
      %p485 = scmp.eq.s32.totalorder %s484, 0
      %s487 = sadd.s32 %s486, 1
      %s488 = scalar_select %p485, %s486, %s487
      %p491 = pneg %p485
      %p492 = scmp.eq.s32.totalorder %s37, 3
      %p493 = por %p491, %p492
      %p494 = scmp.ne.s32.totalorder %s486, %s489
      %p495 = scmp.eq.s32.totalorder %s37, 0
      %p496 = por %p494, %p495
      %p497 = scmp.ne.s32.totalorder %s486, %s489
      %p498 = scmp.eq.s32.totalorder %s42, 3
      %p499 = por %p497, %p498
      %p500 = scmp.ne.s32.totalorder %s489, %s490
      %p501 = scmp.eq.s32.totalorder %s42, 0
      %p502 = por %p500, %p501
      %p503 = scmp.ne.s32.totalorder %s489, %s490
      %p504 = scmp.eq.s32.totalorder %s43, 3
      %p505 = por %p503, %p504
      %p507 = scmp.ne.s32.totalorder %s490, %s506
      %p508 = scmp.eq.s32.totalorder %s43, 0
      %p509 = por %p507, %p508
      %s510 = ssub.s32 %s45, %s52
      %p511 = scmp.eq.s32.totalorder %s510, 0
      %s513 = sadd.s32 %s512, 1
      %s514 = scalar_select %p511, %s512, %s513
      %p517 = pneg %p511
      %p518 = scmp.eq.s32.totalorder %s37, 3
      %p519 = por %p517, %p518
      %p520 = scmp.ne.s32.totalorder %s512, %s515
      %p521 = scmp.eq.s32.totalorder %s37, 0
      %p522 = por %p520, %p521
      %p523 = scmp.ne.s32.totalorder %s512, %s515
      %p524 = scmp.eq.s32.totalorder %s42, 3
      %p525 = por %p523, %p524
      %p526 = scmp.ne.s32.totalorder %s515, %s516
      %p527 = scmp.eq.s32.totalorder %s42, 0
      %p528 = por %p526, %p527
      %p529 = scmp.ne.s32.totalorder %s515, %s516
      %p530 = scmp.eq.s32.totalorder %s43, 3
      %p531 = por %p529, %p530
      %p533 = scmp.ne.s32.totalorder %s516, %s532
      %p534 = scmp.eq.s32.totalorder %s43, 0
      %p535 = por %p533, %p534
      %s536 = ssub.s32 %s45, %s52
      %p537 = scmp.eq.s32.totalorder %s536, 0
      %s539 = sadd.s32 %s538, 1
      %s540 = scalar_select %p537, %s538, %s539
      %p543 = pneg %p537
      %p544 = scmp.eq.s32.totalorder %s37, 3
      %p545 = por %p543, %p544
      %p546 = scmp.ne.s32.totalorder %s538, %s541
      %p547 = scmp.eq.s32.totalorder %s37, 0
      %p548 = por %p546, %p547
      %p549 = scmp.ne.s32.totalorder %s538, %s541
      %p550 = scmp.eq.s32.totalorder %s42, 3
      %p551 = por %p549, %p550
      %p552 = scmp.ne.s32.totalorder %s541, %s542
      %p553 = scmp.eq.s32.totalorder %s42, 0
      %p554 = por %p552, %p553
      %p555 = scmp.ne.s32.totalorder %s541, %s542
      %p556 = scmp.eq.s32.totalorder %s43, 3
      %p557 = por %p555, %p556
      %p559 = scmp.ne.s32.totalorder %s542, %s558
      %p560 = scmp.eq.s32.totalorder %s43, 0
      %p561 = por %p559, %p560
      %s562 = ssub.s32 %s45, %s52
      %p563 = scmp.eq.s32.totalorder %s562, 0
      %s565 = sadd.s32 %s564, 1
      %s566 = scalar_select %p563, %s564, %s565
      %p569 = pneg %p563
      %p570 = scmp.eq.s32.totalorder %s37, 3
      %p571 = por %p569, %p570
      %p572 = scmp.ne.s32.totalorder %s564, %s567
      %p573 = scmp.eq.s32.totalorder %s37, 0
      %p574 = por %p572, %p573
      %p575 = scmp.ne.s32.totalorder %s564, %s567
      %p576 = scmp.eq.s32.totalorder %s42, 3
      %p577 = por %p575, %p576
      %p578 = scmp.ne.s32.totalorder %s567, %s568
      %p579 = scmp.eq.s32.totalorder %s42, 0
      %p580 = por %p578, %p579
      %p581 = scmp.ne.s32.totalorder %s567, %s568
      %p582 = scmp.eq.s32.totalorder %s43, 3
      %p583 = por %p581, %p582
      %p585 = scmp.ne.s32.totalorder %s568, %s584
      %p586 = scmp.eq.s32.totalorder %s43, 0
      %p587 = por %p585, %p586
      %s588 = ssub.s32 %s45, %s52
      %p589 = scmp.eq.s32.totalorder %s588, 0
      %s591 = sadd.s32 %s590, 1
      %s592 = scalar_select %p589, %s590, %s591
      %p595 = pneg %p589
      %p596 = scmp.eq.s32.totalorder %s37, 3
      %p597 = por %p595, %p596
      %p598 = scmp.ne.s32.totalorder %s590, %s593
      %p599 = scmp.eq.s32.totalorder %s37, 0
      %p600 = por %p598, %p599
      %p601 = scmp.ne.s32.totalorder %s590, %s593
      %p602 = scmp.eq.s32.totalorder %s42, 3
      %p603 = por %p601, %p602
      %p604 = scmp.ne.s32.totalorder %s593, %s594
      %p605 = scmp.eq.s32.totalorder %s42, 0
      %p606 = por %p604, %p605
      %p607 = scmp.ne.s32.totalorder %s593, %s594
      %p608 = scmp.eq.s32.totalorder %s43, 3
      %p609 = por %p607, %p608
      %p611 = scmp.ne.s32.totalorder %s594, %s610
      %p612 = scmp.eq.s32.totalorder %s43, 0
      %p613 = por %p611, %p612
      %s614 = ssub.s32 %s45, %s52
      %p615 = scmp.eq.s32.totalorder %s614, 0
      %s617 = sadd.s32 %s616, 1
      %s618 = scalar_select %p615, %s616, %s617
      %p621 = pneg %p615
      %p622 = scmp.eq.s32.totalorder %s37, 3
      %p623 = por %p621, %p622
      %p624 = scmp.ne.s32.totalorder %s616, %s619
      %p625 = scmp.eq.s32.totalorder %s37, 0
      %p626 = por %p624, %p625
      %p627 = scmp.ne.s32.totalorder %s616, %s619
      %p628 = scmp.eq.s32.totalorder %s42, 3
      %p629 = por %p627, %p628
      %p630 = scmp.ne.s32.totalorder %s619, %s620
      %p631 = scmp.eq.s32.totalorder %s42, 0
      %p632 = por %p630, %p631
      %p633 = scmp.ne.s32.totalorder %s619, %s620
      %p634 = scmp.eq.s32.totalorder %s43, 3
      %p635 = por %p633, %p634
      %p637 = scmp.ne.s32.totalorder %s620, %s636
      %p638 = scmp.eq.s32.totalorder %s43, 0
      %p639 = por %p637, %p638
      %s640 = ssub.s32 %s45, %s52
      %p641 = scmp.eq.s32.totalorder %s640, 0
      %s643 = sadd.s32 %s642, 1
      %s644 = scalar_select %p641, %s642, %s643
      %p647 = pneg %p641
      %p648 = scmp.eq.s32.totalorder %s37, 3
      %p649 = por %p647, %p648
      %p650 = scmp.ne.s32.totalorder %s642, %s645
      %p651 = scmp.eq.s32.totalorder %s37, 0
      %p652 = por %p650, %p651
      %p653 = scmp.ne.s32.totalorder %s642, %s645
      %p654 = scmp.eq.s32.totalorder %s42, 3
      %p655 = por %p653, %p654
      %p656 = scmp.ne.s32.totalorder %s645, %s646
      %p657 = scmp.eq.s32.totalorder %s42, 0
      %p658 = por %p656, %p657
      %p659 = scmp.ne.s32.totalorder %s645, %s646
      %p660 = scmp.eq.s32.totalorder %s43, 3
      %p661 = por %p659, %p660
      %p663 = scmp.ne.s32.totalorder %s646, %s662
      %p664 = scmp.eq.s32.totalorder %s43, 0
      %p665 = por %p663, %p664
      %s666 = ssub.s32 %s44, %s56
      %p667 = scmp.eq.s32.totalorder %s666, 0
      %s669 = sadd.s32 %s668, 1
      %s670 = scalar_select %p667, %s668, %s669
      %p673 = pneg %p667
      %p674 = scmp.eq.s32.totalorder %s37, 3
      %p675 = por %p673, %p674
      %p676 = scmp.ne.s32.totalorder %s668, %s671
      %p677 = scmp.eq.s32.totalorder %s37, 0
      %p678 = por %p676, %p677
      %p679 = scmp.ne.s32.totalorder %s668, %s671
      %p680 = scmp.eq.s32.totalorder %s42, 3
      %p681 = por %p679, %p680
      %p682 = scmp.ne.s32.totalorder %s671, %s672
      %p683 = scmp.eq.s32.totalorder %s42, 0
      %p684 = por %p682, %p683
      %p685 = scmp.ne.s32.totalorder %s671, %s672
      %p686 = scmp.eq.s32.totalorder %s43, 3
      %p687 = por %p685, %p686
      %p689 = scmp.ne.s32.totalorder %s672, %s688
      %p690 = scmp.eq.s32.totalorder %s43, 0
      %p691 = por %p689, %p690
      %p692 = scmp.le.s32.totalorder 1, %s37
      %p693 = scmp.lt.s32.totalorder %s37, 5
      %p694 = pnand %p692, %p693
      %p695 = pneg %p694
      // Predicated region
      $region9: #{tpu_custom_call.1} parent=5 // pred_check
        _
      $region10: #{tpu_custom_call.1} parent=5 // pred_check_branch
        %697 = sbr.rel (%p694) target = $region12
      $region11: #{tpu_custom_call.1} parent=5 // pred_region
        %s698 = ssub.s32 %s37, 1
        // Predicated region
        $region13: #{tpu_custom_call.1} parent=11 // pred_check
          %p699 = pneg %p96
        $region14: #{tpu_custom_call.1} parent=11 // pred_check_branch
          %701 = sbr.rel (%p699) target = $region16
        $region15: #{tpu_custom_call.1} parent=11 // pred_region
          _
        $region16: #{tpu_custom_call.1} parent=11 // pred_fallthru
          _
        // Predicated region
        $region17: #{tpu_custom_call.1} parent=11 // pred_check
          %p702 = pneg %p117
        $region18: #{tpu_custom_call.1} parent=11 // pred_check_branch
          %704 = sbr.rel (%p702) target = $region20
        $region19: #{tpu_custom_call.1} parent=11 // pred_region
          %s706 = ssub.s32 2048, 2048
          %707 = vsyncadd [#allocation6], %s706
          %s708 = sshll.u32 [#allocation5], 4
          %s709 = int_to_ptr.vmem [resolvable:$true] %s708
          %714 = dma.hbm_to_vmem [thread:$0]  %s2, 2048, %s709, [#allocation6], 128, 128, 8
        $region20: #{tpu_custom_call.1} parent=11 // pred_fallthru
          _
        // Predicated region
        $region21: #{tpu_custom_call.1} parent=11 // pred_check
          %p715 = pneg %p138
        $region22: #{tpu_custom_call.1} parent=11 // pred_check_branch
          %717 = sbr.rel (%p715) target = $region24
        $region23: #{tpu_custom_call.1} parent=11 // pred_region
          _
        $region24: #{tpu_custom_call.1} parent=11 // pred_fallthru
          _
      $region12: #{tpu_custom_call.1} parent=5 // pred_fallthru
        _
      %p718 = scmp.lt.s32.totalorder %s37, 4
      // Predicated region
      $region25: #{tpu_custom_call.1} parent=5 // pred_check
        %p719 = pneg %p718
      $region26: #{tpu_custom_call.1} parent=5 // pred_check_branch
        %721 = sbr.rel (%p719) target = $region28
      $region27: #{tpu_custom_call.1} parent=5 // pred_region
        // Predicated region
        $region29: #{tpu_custom_call.1} parent=27 // pred_check
          %p722 = pneg %p69
        $region30: #{tpu_custom_call.1} parent=27 // pred_check_branch
          %724 = sbr.rel (%p722) target = $region32
        $region31: #{tpu_custom_call.1} parent=27 // pred_region
          %s725 = sand.u32 %s37, 1
          %s726 = scalar_lea.sflag [#allocation3], %s725
          %s727 = sand.u32 %s59, 1
          %s728 = smul.addr %s727, 8
          %s729 = scalar_lea.vmem [#allocation2], %s728
          %s731 = ssub.s32 128, 128
          %732 = vsyncadd %s726, %s731
          %s733 = smul.addr %s44, 128
          %s734 = scalar_lea.hbm %s0, %s733
          %s736 = sshll.u32 %s729, 4
          %s737 = int_to_ptr.vmem [resolvable:$true] %s736
          %739 = dma.hbm_to_vmem [thread:$0]  %s734, 128, %s737, %s726
        $region32: #{tpu_custom_call.1} parent=27 // pred_fallthru
          _
        // Predicated region
        $region33: #{tpu_custom_call.1} parent=27 // pred_check
          %p740 = pneg %p158
        $region34: #{tpu_custom_call.1} parent=27 // pred_check_branch
          %742 = sbr.rel (%p740) target = $region36
        $region35: #{tpu_custom_call.1} parent=27 // pred_region
          %p743 = scmp.lt.s32.totalorder %s45, 1
          %s744 = scalar_select %p743, %s45, 1
          %s745 = scalar_lea.vmem %s4, %s744
        $region36: #{tpu_custom_call.1} parent=27 // pred_fallthru
          _
        // Predicated region
        $region37: #{tpu_custom_call.1} parent=27 // pred_check
          %p746 = pneg %p184
        $region38: #{tpu_custom_call.1} parent=27 // pred_check_branch
          %748 = sbr.rel (%p746) target = $region40
        $region39: #{tpu_custom_call.1} parent=27 // pred_region
          %s749 = sand.u32 %s37, 1
          %s750 = scalar_lea.sflag [#allocation3], %s749
          %s751 = sand.u32 %s174, 1
          %s752 = scalar_lea.vmem [#allocation7], %s751
          %s754 = ssub.s32 16, 16
          %755 = vsyncadd %s750, %s754
          %s756 = smul.addr %s45, 16
          %s757 = scalar_lea.hbm %s5, %s756
          %s759 = sshll.u32 %s752, 4
          %s760 = int_to_ptr.vmem [resolvable:$true] %s759
          %762 = dma.hbm_to_vmem [thread:$0]  %s757, 16, %s760, %s750
        $region40: #{tpu_custom_call.1} parent=27 // pred_fallthru
          _
        // Predicated region
        $region41: #{tpu_custom_call.1} parent=27 // pred_check
          %p763 = pneg %p210
        $region42: #{tpu_custom_call.1} parent=27 // pred_check_branch
          %765 = sbr.rel (%p763) target = $region44
        $region43: #{tpu_custom_call.1} parent=27 // pred_region
          %s766 = sand.u32 %s37, 1
          %s767 = scalar_lea.sflag [#allocation3], %s766
          %s768 = sand.u32 %s200, 1
          %s769 = smul.addr %s768, 128
          %s770 = scalar_lea.vmem [#allocation8], %s769
          %s772 = ssub.s32 2048, 2048
          %773 = vsyncadd %s767, %s772
          %s774 = smul.addr %s45, 16
          %s775 = smul.addr %s774, 128
          %s776 = scalar_lea.hbm %s6, %s775
          %s777 = sshll.u32 %s770, 4
          %s778 = int_to_ptr.vmem [resolvable:$true] %s777
          %783 = dma.hbm_to_vmem [thread:$0]  %s776, 2048, %s778, %s767, 128, 128, 8
        $region44: #{tpu_custom_call.1} parent=27 // pred_fallthru
          _
        // Predicated region
        $region45: #{tpu_custom_call.1} parent=27 // pred_check
          %p784 = pneg %p236
        $region46: #{tpu_custom_call.1} parent=27 // pred_check_branch
          %786 = sbr.rel (%p784) target = $region48
        $region47: #{tpu_custom_call.1} parent=27 // pred_region
          %s787 = sand.u32 %s37, 1
          %s788 = scalar_lea.sflag [#allocation3], %s787
          %s789 = sand.u32 %s226, 1
          %s790 = scalar_lea.vmem [#allocation9], %s789
          %s792 = ssub.s32 16, 16
          %793 = vsyncadd %s788, %s792
          %s794 = smul.addr %s45, 16
          %s795 = scalar_lea.hbm %s7, %s794
          %s797 = sshll.u32 %s790, 4
          %s798 = int_to_ptr.vmem [resolvable:$true] %s797
          %800 = dma.hbm_to_vmem [thread:$0]  %s795, 16, %s798, %s788
        $region48: #{tpu_custom_call.1} parent=27 // pred_fallthru
          _
        // Predicated region
        $region49: #{tpu_custom_call.1} parent=27 // pred_check
          %p801 = pneg %p262
        $region50: #{tpu_custom_call.1} parent=27 // pred_check_branch
          %803 = sbr.rel (%p801) target = $region52
        $region51: #{tpu_custom_call.1} parent=27 // pred_region
          %s804 = sand.u32 %s37, 1
          %s805 = scalar_lea.sflag [#allocation3], %s804
          %s806 = sand.u32 %s252, 1
          %s807 = smul.addr %s806, 128
          %s808 = scalar_lea.vmem [#allocation10], %s807
          %s810 = ssub.s32 2048, 2048
          %811 = vsyncadd %s805, %s810
          %s812 = smul.addr %s45, 16
          %s813 = smul.addr %s812, 128
          %s814 = scalar_lea.hbm %s8, %s813
          %s815 = sshll.u32 %s808, 4
          %s816 = int_to_ptr.vmem [resolvable:$true] %s815
          %821 = dma.hbm_to_vmem [thread:$0]  %s814, 2048, %s816, %s805, 128, 128, 8
        $region52: #{tpu_custom_call.1} parent=27 // pred_fallthru
          _
        // Predicated region
        $region53: #{tpu_custom_call.1} parent=27 // pred_check
          %p822 = pneg %p288
        $region54: #{tpu_custom_call.1} parent=27 // pred_check_branch
          %824 = sbr.rel (%p822) target = $region56
        $region55: #{tpu_custom_call.1} parent=27 // pred_region
          %s825 = sand.u32 %s37, 1
          %s826 = scalar_lea.sflag [#allocation3], %s825
          %s827 = sand.u32 %s278, 1
          %s828 = scalar_lea.vmem [#allocation11], %s827
          %s830 = ssub.s32 16, 16
          %831 = vsyncadd %s826, %s830
          %s832 = smul.addr %s45, 16
          %s833 = scalar_lea.hbm %s9, %s832
          %s835 = sshll.u32 %s828, 4
          %s836 = int_to_ptr.vmem [resolvable:$true] %s835
          %838 = dma.hbm_to_vmem [thread:$0]  %s833, 16, %s836, %s826
        $region56: #{tpu_custom_call.1} parent=27 // pred_fallthru
          _
        // Predicated region
        $region57: #{tpu_custom_call.1} parent=27 // pred_check
          %p839 = pneg %p314
        $region58: #{tpu_custom_call.1} parent=27 // pred_check_branch
          %841 = sbr.rel (%p839) target = $region60
        $region59: #{tpu_custom_call.1} parent=27 // pred_region
          %s842 = sand.u32 %s37, 1
          %s843 = scalar_lea.sflag [#allocation3], %s842
          %s844 = sand.u32 %s304, 1
          %s845 = smul.addr %s844, 384
          %s846 = scalar_lea.vmem [#allocation12], %s845
          %s848 = ssub.s32 6144, 6144
          %849 = vsyncadd %s843, %s848
          %s850 = smul.addr %s45, 48
          %s851 = smul.addr %s850, 128
          %s852 = scalar_lea.hbm %s10, %s851
          %s853 = sshll.u32 %s846, 4
          %s854 = int_to_ptr.vmem [resolvable:$true] %s853
          %859 = dma.hbm_to_vmem [thread:$0]  %s852, 6144, %s854, %s843, 384, 384, 24
        $region60: #{tpu_custom_call.1} parent=27 // pred_fallthru
          _
        // Predicated region
        $region61: #{tpu_custom_call.1} parent=27 // pred_check
          %p860 = pneg %p340
        $region62: #{tpu_custom_call.1} parent=27 // pred_check_branch
          %862 = sbr.rel (%p860) target = $region64
        $region63: #{tpu_custom_call.1} parent=27 // pred_region
          %s863 = sand.u32 %s37, 1
          %s864 = scalar_lea.sflag [#allocation3], %s863
          %s865 = sand.u32 %s330, 1
          %s866 = smul.addr %s865, 3
          %s867 = scalar_lea.vmem [#allocation13], %s866
          %s869 = ssub.s32 48, 48
          %870 = vsyncadd %s864, %s869
          %s871 = smul.addr %s45, 3
          %s872 = smul.addr %s871, 16
          %s873 = scalar_lea.hbm %s11, %s872
          %s875 = sshll.u32 %s867, 4
          %s876 = int_to_ptr.vmem [resolvable:$true] %s875
          %878 = dma.hbm_to_vmem [thread:$0]  %s873, 48, %s876, %s864
        $region64: #{tpu_custom_call.1} parent=27 // pred_fallthru
          _
        // Predicated region
        $region65: #{tpu_custom_call.1} parent=27 // pred_check
          %p879 = pneg %p366
        $region66: #{tpu_custom_call.1} parent=27 // pred_check_branch
          %881 = sbr.rel (%p879) target = $region68
        $region67: #{tpu_custom_call.1} parent=27 // pred_region
          %p882 = scmp.lt.s32.totalorder %s45, 1
          %s883 = scalar_select %p882, %s45, 1
          %s884 = smul.addr %s883, 3
          %s885 = smul.addr %s884, 4
          %s886 = scalar_lea.vmem %s12, %s885
        $region68: #{tpu_custom_call.1} parent=27 // pred_fallthru
          _
        // Predicated region
        $region69: #{tpu_custom_call.1} parent=27 // pred_check
          %p887 = pneg %p392
        $region70: #{tpu_custom_call.1} parent=27 // pred_check_branch
          %889 = sbr.rel (%p887) target = $region72
        $region71: #{tpu_custom_call.1} parent=27 // pred_region
          %p890 = scmp.lt.s32.totalorder %s45, 1
          %s891 = scalar_select %p890, %s45, 1
          %s892 = smul.addr %s891, 5
          %s893 = smul.addr %s892, 8
          %s894 = scalar_lea.vmem %s13, %s893
        $region72: #{tpu_custom_call.1} parent=27 // pred_fallthru
          _
        // Predicated region
        $region73: #{tpu_custom_call.1} parent=27 // pred_check
          %p895 = pneg %p418
        $region74: #{tpu_custom_call.1} parent=27 // pred_check_branch
          %897 = sbr.rel (%p895) target = $region76
        $region75: #{tpu_custom_call.1} parent=27 // pred_region
          %s898 = sand.u32 %s37, 1
          %s899 = scalar_lea.sflag [#allocation3], %s898
          %s900 = sand.u32 %s408, 1
          %s901 = smul.addr %s900, 128
          %s902 = scalar_lea.vmem [#allocation14], %s901
          %s904 = ssub.s32 2048, 2048
          %905 = vsyncadd %s899, %s904
          %s906 = smul.addr %s45, 16
          %s907 = smul.addr %s906, 128
          %s908 = scalar_lea.hbm %s14, %s907
          %s909 = sshll.u32 %s902, 4
          %s910 = int_to_ptr.vmem [resolvable:$true] %s909
          %915 = dma.hbm_to_vmem [thread:$0]  %s908, 2048, %s910, %s899, 128, 128, 8
        $region76: #{tpu_custom_call.1} parent=27 // pred_fallthru
          _
        // Predicated region
        $region77: #{tpu_custom_call.1} parent=27 // pred_check
          %p916 = pneg %p444
        $region78: #{tpu_custom_call.1} parent=27 // pred_check_branch
          %918 = sbr.rel (%p916) target = $region80
        $region79: #{tpu_custom_call.1} parent=27 // pred_region
          %s919 = sand.u32 %s37, 1
          %s920 = scalar_lea.sflag [#allocation3], %s919
          %s921 = sand.u32 %s434, 1
          %s922 = scalar_lea.vmem [#allocation15], %s921
          %s924 = ssub.s32 16, 16
          %925 = vsyncadd %s920, %s924
          %s926 = smul.addr %s45, 16
          %s927 = scalar_lea.hbm %s15, %s926
          %s929 = sshll.u32 %s922, 4
          %s930 = int_to_ptr.vmem [resolvable:$true] %s929
          %932 = dma.hbm_to_vmem [thread:$0]  %s927, 16, %s930, %s920
        $region80: #{tpu_custom_call.1} parent=27 // pred_fallthru
          _
        // Predicated region
        $region81: #{tpu_custom_call.1} parent=27 // pred_check
          %p933 = pneg %p470
        $region82: #{tpu_custom_call.1} parent=27 // pred_check_branch
          %935 = sbr.rel (%p933) target = $region84
        $region83: #{tpu_custom_call.1} parent=27 // pred_region
          %s936 = sand.u32 %s37, 1
          %s937 = scalar_lea.sflag [#allocation3], %s936
          %s938 = sand.u32 %s460, 1
          %s939 = smul.addr %s938, 128
          %s940 = scalar_lea.vmem [#allocation16], %s939
          %s942 = ssub.s32 2048, 2048
          %943 = vsyncadd %s937, %s942
          %s944 = smul.addr %s45, 16
          %s945 = smul.addr %s944, 128
          %s946 = scalar_lea.hbm %s16, %s945
          %s947 = sshll.u32 %s940, 4
          %s948 = int_to_ptr.vmem [resolvable:$true] %s947
          %953 = dma.hbm_to_vmem [thread:$0]  %s946, 2048, %s948, %s937, 128, 128, 8
        $region84: #{tpu_custom_call.1} parent=27 // pred_fallthru
          _
        // Predicated region
        $region85: #{tpu_custom_call.1} parent=27 // pred_check
          %p954 = pneg %p496
        $region86: #{tpu_custom_call.1} parent=27 // pred_check_branch
          %956 = sbr.rel (%p954) target = $region88
        $region87: #{tpu_custom_call.1} parent=27 // pred_region
          %p957 = scmp.lt.s32.totalorder %s45, 1
          %s958 = scalar_select %p957, %s45, 1
          %s959 = scalar_lea.vmem %s17, %s958
        $region88: #{tpu_custom_call.1} parent=27 // pred_fallthru
          _
        // Predicated region
        $region89: #{tpu_custom_call.1} parent=27 // pred_check
          %p960 = pneg %p522
        $region90: #{tpu_custom_call.1} parent=27 // pred_check_branch
          %962 = sbr.rel (%p960) target = $region92
        $region91: #{tpu_custom_call.1} parent=27 // pred_region
          %p963 = scmp.lt.s32.totalorder %s45, 1
          %s964 = scalar_select %p963, %s45, 1
          %s965 = scalar_lea.vmem %s18, %s964
        $region92: #{tpu_custom_call.1} parent=27 // pred_fallthru
          _
        // Predicated region
        $region93: #{tpu_custom_call.1} parent=27 // pred_check
          %p966 = pneg %p548
        $region94: #{tpu_custom_call.1} parent=27 // pred_check_branch
          %968 = sbr.rel (%p966) target = $region96
        $region95: #{tpu_custom_call.1} parent=27 // pred_region
          %p969 = scmp.lt.s32.totalorder %s45, 1
          %s970 = scalar_select %p969, %s45, 1
          %s971 = scalar_lea.vmem %s19, %s970
        $region96: #{tpu_custom_call.1} parent=27 // pred_fallthru
          _
        // Predicated region
        $region97: #{tpu_custom_call.1} parent=27 // pred_check
          %p972 = pneg %p574
        $region98: #{tpu_custom_call.1} parent=27 // pred_check_branch
          %974 = sbr.rel (%p972) target = $region100
        $region99: #{tpu_custom_call.1} parent=27 // pred_region
          %s975 = sand.u32 %s37, 1
          %s976 = scalar_lea.sflag [#allocation3], %s975
          %s977 = sand.u32 %s564, 1
          %s978 = smul.addr %s977, 512
          %s979 = scalar_lea.vmem [#allocation17], %s978
          %s981 = ssub.s32 8192, 8192
          %982 = vsyncadd %s976, %s981
          %s983 = smul.addr %s45, 64
          %s984 = smul.addr %s983, 128
          %s985 = scalar_lea.hbm %s20, %s984
          %s986 = sshll.u32 %s979, 4
          %s987 = int_to_ptr.vmem [resolvable:$true] %s986
          %992 = dma.hbm_to_vmem [thread:$0]  %s985, 8192, %s987, %s976, 512, 512, 32
        $region100: #{tpu_custom_call.1} parent=27 // pred_fallthru
          _
        // Predicated region
        $region101: #{tpu_custom_call.1} parent=27 // pred_check
          %p993 = pneg %p600
        $region102: #{tpu_custom_call.1} parent=27 // pred_check_branch
          %995 = sbr.rel (%p993) target = $region104
        $region103: #{tpu_custom_call.1} parent=27 // pred_region
          %p996 = scmp.lt.s32.totalorder %s45, 1
          %s997 = scalar_select %p996, %s45, 1
          %s998 = smul.addr %s997, 4
          %s999 = scalar_lea.vmem %s21, %s998
        $region104: #{tpu_custom_call.1} parent=27 // pred_fallthru
          _
        // Predicated region
        $region105: #{tpu_custom_call.1} parent=27 // pred_check
          %p1000 = pneg %p626
        $region106: #{tpu_custom_call.1} parent=27 // pred_check_branch
          %1002 = sbr.rel (%p1000) target = $region108
        $region107: #{tpu_custom_call.1} parent=27 // pred_region
          %s1003 = sand.u32 %s37, 1
          %s1004 = scalar_lea.sflag [#allocation3], %s1003
          %s1005 = sand.u32 %s616, 1
          %s1006 = smul.addr %s1005, 512
          %s1007 = scalar_lea.vmem [#allocation18], %s1006
          %s1009 = ssub.s32 8192, 8192
          %1010 = vsyncadd %s1004, %s1009
          %s1011 = smul.addr %s45, 64
          %s1012 = smul.addr %s1011, 128
          %s1013 = scalar_lea.hbm %s22, %s1012
          %s1014 = sshll.u32 %s1007, 4
          %s1015 = int_to_ptr.vmem [resolvable:$true] %s1014
          %1020 = dma.hbm_to_vmem [thread:$0]  %s1013, 8192, %s1015, %s1004, 128, 128, 8
        $region108: #{tpu_custom_call.1} parent=27 // pred_fallthru
          _
        // Predicated region
        $region109: #{tpu_custom_call.1} parent=27 // pred_check
          %p1021 = pneg %p652
        $region110: #{tpu_custom_call.1} parent=27 // pred_check_branch
          %1023 = sbr.rel (%p1021) target = $region112
        $region111: #{tpu_custom_call.1} parent=27 // pred_region
          %p1024 = scmp.lt.s32.totalorder %s45, 1
          %s1025 = scalar_select %p1024, %s45, 1
          %s1026 = scalar_lea.vmem %s23, %s1025
        $region112: #{tpu_custom_call.1} parent=27 // pred_fallthru
          _
      $region28: #{tpu_custom_call.1} parent=5 // pred_fallthru
        _
      %p1027 = scmp.le.s32.totalorder 1, %s37
      %p1028 = scmp.lt.s32.totalorder %s37, 5
      %p1029 = pnand %p1027, %p1028
      %p1030 = pneg %p1029
      // Predicated region
      $region113: #{tpu_custom_call.1} parent=5 // pred_check
        _
      $region114: #{tpu_custom_call.1} parent=5 // pred_check_branch
        %1032 = sbr.rel (%p1029) target = $region116
      $region115: #{tpu_custom_call.1} parent=5 // pred_region
        %s1033 = ssub.s32 %s37, 1
        %s1034 = sand.u32 %s42, 1
        %s1035 = scalar_lea.sflag [#allocation3], %s1034
        %s1036 = sand.u32 %s62, 1
        %s1037 = smul.addr %s1036, 8
        %s1038 = scalar_lea.vmem [#allocation2], %s1037
        // Predicated region
        $region117: #{tpu_custom_call.1} parent=115 // pred_check
          %p1039 = pneg %p75
        $region118: #{tpu_custom_call.1} parent=115 // pred_check_branch
          %1041 = sbr.rel (%p1039) target = $region120
        $region119: #{tpu_custom_call.1} parent=115 // pred_region
          %1042 = dma.done %s1035, 128
        $region120: #{tpu_custom_call.1} parent=115 // pred_fallthru
          _
        // Predicated region
        $region121: #{tpu_custom_call.1} parent=115 // pred_check
          %p1043 = pneg %p117
        $region122: #{tpu_custom_call.1} parent=115 // pred_check_branch
          %1045 = sbr.rel (%p1043) target = $region124
        $region123: #{tpu_custom_call.1} parent=115 // pred_region
          %1046 = dma.done [#allocation6], 2048
        $region124: #{tpu_custom_call.1} parent=115 // pred_fallthru
          _
        %s1047 = sand.u32 %s42, 1
        %s1048 = scalar_lea.sflag [#allocation3], %s1047
        %s1049 = sand.u32 %s177, 1
        %s1050 = scalar_lea.vmem [#allocation7], %s1049
        // Predicated region
        $region125: #{tpu_custom_call.1} parent=115 // pred_check
          %p1051 = pneg %p190
        $region126: #{tpu_custom_call.1} parent=115 // pred_check_branch
          %1053 = sbr.rel (%p1051) target = $region128
        $region127: #{tpu_custom_call.1} parent=115 // pred_region
          %1054 = dma.done %s1048, 16
        $region128: #{tpu_custom_call.1} parent=115 // pred_fallthru
          _
        %s1055 = sand.u32 %s42, 1
        %s1056 = scalar_lea.sflag [#allocation3], %s1055
        %s1057 = sand.u32 %s203, 1
        %s1058 = smul.addr %s1057, 128
        %s1059 = scalar_lea.vmem [#allocation8], %s1058
        // Predicated region
        $region129: #{tpu_custom_call.1} parent=115 // pred_check
          %p1060 = pneg %p216
        $region130: #{tpu_custom_call.1} parent=115 // pred_check_branch
          %1062 = sbr.rel (%p1060) target = $region132
        $region131: #{tpu_custom_call.1} parent=115 // pred_region
          %1063 = dma.done %s1056, 2048
        $region132: #{tpu_custom_call.1} parent=115 // pred_fallthru
          _
        %s1064 = sand.u32 %s42, 1
        %s1065 = scalar_lea.sflag [#allocation3], %s1064
        %s1066 = sand.u32 %s229, 1
        %s1067 = scalar_lea.vmem [#allocation9], %s1066
        // Predicated region
        $region133: #{tpu_custom_call.1} parent=115 // pred_check
          %p1068 = pneg %p242
        $region134: #{tpu_custom_call.1} parent=115 // pred_check_branch
          %1070 = sbr.rel (%p1068) target = $region136
        $region135: #{tpu_custom_call.1} parent=115 // pred_region
          %1071 = dma.done %s1065, 16
        $region136: #{tpu_custom_call.1} parent=115 // pred_fallthru
          _
        %s1072 = sand.u32 %s42, 1
        %s1073 = scalar_lea.sflag [#allocation3], %s1072
        %s1074 = sand.u32 %s255, 1
        %s1075 = smul.addr %s1074, 128
        %s1076 = scalar_lea.vmem [#allocation10], %s1075
        // Predicated region
        $region137: #{tpu_custom_call.1} parent=115 // pred_check
          %p1077 = pneg %p268
        $region138: #{tpu_custom_call.1} parent=115 // pred_check_branch
          %1079 = sbr.rel (%p1077) target = $region140
        $region139: #{tpu_custom_call.1} parent=115 // pred_region
          %1080 = dma.done %s1073, 2048
        $region140: #{tpu_custom_call.1} parent=115 // pred_fallthru
          _
        %s1081 = sand.u32 %s42, 1
        %s1082 = scalar_lea.sflag [#allocation3], %s1081
        %s1083 = sand.u32 %s281, 1
        %s1084 = scalar_lea.vmem [#allocation11], %s1083
        // Predicated region
        $region141: #{tpu_custom_call.1} parent=115 // pred_check
          %p1085 = pneg %p294
        $region142: #{tpu_custom_call.1} parent=115 // pred_check_branch
          %1087 = sbr.rel (%p1085) target = $region144
        $region143: #{tpu_custom_call.1} parent=115 // pred_region
          %1088 = dma.done %s1082, 16
        $region144: #{tpu_custom_call.1} parent=115 // pred_fallthru
          _
        %s1089 = sand.u32 %s42, 1
        %s1090 = scalar_lea.sflag [#allocation3], %s1089
        %s1091 = sand.u32 %s307, 1
        %s1092 = smul.addr %s1091, 384
        %s1093 = scalar_lea.vmem [#allocation12], %s1092
        // Predicated region
        $region145: #{tpu_custom_call.1} parent=115 // pred_check
          %p1094 = pneg %p320
        $region146: #{tpu_custom_call.1} parent=115 // pred_check_branch
          %1096 = sbr.rel (%p1094) target = $region148
        $region147: #{tpu_custom_call.1} parent=115 // pred_region
          %1097 = dma.done %s1090, 6144
        $region148: #{tpu_custom_call.1} parent=115 // pred_fallthru
          _
        %s1098 = sand.u32 %s42, 1
        %s1099 = scalar_lea.sflag [#allocation3], %s1098
        %s1100 = sand.u32 %s333, 1
        %s1101 = smul.addr %s1100, 3
        %s1102 = scalar_lea.vmem [#allocation13], %s1101
        // Predicated region
        $region149: #{tpu_custom_call.1} parent=115 // pred_check
          %p1103 = pneg %p346
        $region150: #{tpu_custom_call.1} parent=115 // pred_check_branch
          %1105 = sbr.rel (%p1103) target = $region152
        $region151: #{tpu_custom_call.1} parent=115 // pred_region
          %1106 = dma.done %s1099, 48
        $region152: #{tpu_custom_call.1} parent=115 // pred_fallthru
          _
        %s1107 = sand.u32 %s42, 1
        %s1108 = scalar_lea.sflag [#allocation3], %s1107
        %s1109 = sand.u32 %s411, 1
        %s1110 = smul.addr %s1109, 128
        %s1111 = scalar_lea.vmem [#allocation14], %s1110
        // Predicated region
        $region153: #{tpu_custom_call.1} parent=115 // pred_check
          %p1112 = pneg %p424
        $region154: #{tpu_custom_call.1} parent=115 // pred_check_branch
          %1114 = sbr.rel (%p1112) target = $region156
        $region155: #{tpu_custom_call.1} parent=115 // pred_region
          %1115 = dma.done %s1108, 2048
        $region156: #{tpu_custom_call.1} parent=115 // pred_fallthru
          _
        %s1116 = sand.u32 %s42, 1
        %s1117 = scalar_lea.sflag [#allocation3], %s1116
        %s1118 = sand.u32 %s437, 1
        %s1119 = scalar_lea.vmem [#allocation15], %s1118
        // Predicated region
        $region157: #{tpu_custom_call.1} parent=115 // pred_check
          %p1120 = pneg %p450
        $region158: #{tpu_custom_call.1} parent=115 // pred_check_branch
          %1122 = sbr.rel (%p1120) target = $region160
        $region159: #{tpu_custom_call.1} parent=115 // pred_region
          %1123 = dma.done %s1117, 16
        $region160: #{tpu_custom_call.1} parent=115 // pred_fallthru
          _
        %s1124 = sand.u32 %s42, 1
        %s1125 = scalar_lea.sflag [#allocation3], %s1124
        %s1126 = sand.u32 %s463, 1
        %s1127 = smul.addr %s1126, 128
        %s1128 = scalar_lea.vmem [#allocation16], %s1127
        // Predicated region
        $region161: #{tpu_custom_call.1} parent=115 // pred_check
          %p1129 = pneg %p476
        $region162: #{tpu_custom_call.1} parent=115 // pred_check_branch
          %1131 = sbr.rel (%p1129) target = $region164
        $region163: #{tpu_custom_call.1} parent=115 // pred_region
          %1132 = dma.done %s1125, 2048
        $region164: #{tpu_custom_call.1} parent=115 // pred_fallthru
          _
        %s1133 = sand.u32 %s42, 1
        %s1134 = scalar_lea.sflag [#allocation3], %s1133
        %s1135 = sand.u32 %s567, 1
        %s1136 = smul.addr %s1135, 512
        %s1137 = scalar_lea.vmem [#allocation17], %s1136
        // Predicated region
        $region165: #{tpu_custom_call.1} parent=115 // pred_check
          %p1138 = pneg %p580
        $region166: #{tpu_custom_call.1} parent=115 // pred_check_branch
          %1140 = sbr.rel (%p1138) target = $region168
        $region167: #{tpu_custom_call.1} parent=115 // pred_region
          %1141 = dma.done %s1134, 8192
        $region168: #{tpu_custom_call.1} parent=115 // pred_fallthru
          _
        %s1142 = sand.u32 %s42, 1
        %s1143 = scalar_lea.sflag [#allocation3], %s1142
        %s1144 = sand.u32 %s619, 1
        %s1145 = smul.addr %s1144, 512
        %s1146 = scalar_lea.vmem [#allocation18], %s1145
        // Predicated region
        $region169: #{tpu_custom_call.1} parent=115 // pred_check
          %p1147 = pneg %p632
        $region170: #{tpu_custom_call.1} parent=115 // pred_check_branch
          %1149 = sbr.rel (%p1147) target = $region172
        $region171: #{tpu_custom_call.1} parent=115 // pred_region
          %1150 = dma.done %s1143, 8192
        $region172: #{tpu_custom_call.1} parent=115 // pred_fallthru
          _
        %s1151 = sand.u32 %s42, 1
        %s1152 = scalar_lea.sflag [#allocation3], %s1151
        %s1153 = sand.u32 %s62, 1
        %s1154 = smul.addr %s1153, 8
        %s1155 = scalar_lea.vmem [#allocation2], %s1154
        %p1156 = pneg %p75
        %p1157 = pneg %p72
        %p1158 = pneg %p96
        %p1159 = pneg %p93
        %p1160 = pneg %p117
        %p1161 = pneg %p114
        %p1162 = pneg %p138
        %p1163 = pneg %p135
        %p1164 = scmp.lt.s32.totalorder %s47, 1
        %s1165 = scalar_select %p1164, %s47, 1
        %s1166 = scalar_lea.vmem %s4, %s1165
        %p1167 = pneg %p164
        %p1168 = pneg %p161
        %s1169 = sand.u32 %s42, 1
        %s1170 = scalar_lea.sflag [#allocation3], %s1169
        %s1171 = sand.u32 %s177, 1
        %s1172 = scalar_lea.vmem [#allocation7], %s1171
        %p1173 = pneg %p190
        %p1174 = pneg %p187
        %s1175 = sand.u32 %s42, 1
        %s1176 = scalar_lea.sflag [#allocation3], %s1175
        %s1177 = sand.u32 %s203, 1
        %s1178 = smul.addr %s1177, 128
        %s1179 = scalar_lea.vmem [#allocation8], %s1178
        %p1180 = pneg %p216
        %p1181 = pneg %p213
        %s1182 = sand.u32 %s42, 1
        %s1183 = scalar_lea.sflag [#allocation3], %s1182
        %s1184 = sand.u32 %s229, 1
        %s1185 = scalar_lea.vmem [#allocation9], %s1184
        %p1186 = pneg %p242
        %p1187 = pneg %p239
        %s1188 = sand.u32 %s42, 1
        %s1189 = scalar_lea.sflag [#allocation3], %s1188
        %s1190 = sand.u32 %s255, 1
        %s1191 = smul.addr %s1190, 128
        %s1192 = scalar_lea.vmem [#allocation10], %s1191
        %p1193 = pneg %p268
        %p1194 = pneg %p265
        %s1195 = sand.u32 %s42, 1
        %s1196 = scalar_lea.sflag [#allocation3], %s1195
        %s1197 = sand.u32 %s281, 1
        %s1198 = scalar_lea.vmem [#allocation11], %s1197
        %p1199 = pneg %p294
        %p1200 = pneg %p291
        %s1201 = sand.u32 %s42, 1
        %s1202 = scalar_lea.sflag [#allocation3], %s1201
        %s1203 = sand.u32 %s307, 1
        %s1204 = smul.addr %s1203, 384
        %s1205 = scalar_lea.vmem [#allocation12], %s1204
        %p1206 = pneg %p320
        %p1207 = pneg %p317
        %s1208 = sand.u32 %s42, 1
        %s1209 = scalar_lea.sflag [#allocation3], %s1208
        %s1210 = sand.u32 %s333, 1
        %s1211 = smul.addr %s1210, 3
        %s1212 = scalar_lea.vmem [#allocation13], %s1211
        %p1213 = pneg %p346
        %p1214 = pneg %p343
        %p1215 = scmp.lt.s32.totalorder %s47, 1
        %s1216 = scalar_select %p1215, %s47, 1
        %s1217 = smul.addr %s1216, 3
        %s1218 = smul.addr %s1217, 4
        %s1219 = scalar_lea.vmem %s12, %s1218
        %p1220 = pneg %p372
        %p1221 = pneg %p369
        %p1222 = scmp.lt.s32.totalorder %s47, 1
        %s1223 = scalar_select %p1222, %s47, 1
        %s1224 = smul.addr %s1223, 5
        %s1225 = smul.addr %s1224, 8
        %s1226 = scalar_lea.vmem %s13, %s1225
        %p1227 = pneg %p398
        %p1228 = pneg %p395
        %s1229 = sand.u32 %s42, 1
        %s1230 = scalar_lea.sflag [#allocation3], %s1229
        %s1231 = sand.u32 %s411, 1
        %s1232 = smul.addr %s1231, 128
        %s1233 = scalar_lea.vmem [#allocation14], %s1232
        %p1234 = pneg %p424
        %p1235 = pneg %p421
        %s1236 = sand.u32 %s42, 1
        %s1237 = scalar_lea.sflag [#allocation3], %s1236
        %s1238 = sand.u32 %s437, 1
        %s1239 = scalar_lea.vmem [#allocation15], %s1238
        %p1240 = pneg %p450
        %p1241 = pneg %p447
        %s1242 = sand.u32 %s42, 1
        %s1243 = scalar_lea.sflag [#allocation3], %s1242
        %s1244 = sand.u32 %s463, 1
        %s1245 = smul.addr %s1244, 128
        %s1246 = scalar_lea.vmem [#allocation16], %s1245
        %p1247 = pneg %p476
        %p1248 = pneg %p473
        %p1249 = scmp.lt.s32.totalorder %s47, 1
        %s1250 = scalar_select %p1249, %s47, 1
        %s1251 = scalar_lea.vmem %s17, %s1250
        %p1252 = pneg %p502
        %p1253 = pneg %p499
        %p1254 = scmp.lt.s32.totalorder %s47, 1
        %s1255 = scalar_select %p1254, %s47, 1
        %s1256 = scalar_lea.vmem %s18, %s1255
        %p1257 = pneg %p528
        %p1258 = pneg %p525
        %p1259 = scmp.lt.s32.totalorder %s47, 1
        %s1260 = scalar_select %p1259, %s47, 1
        %s1261 = scalar_lea.vmem %s19, %s1260
        %p1262 = pneg %p554
        %p1263 = pneg %p551
        %s1264 = sand.u32 %s42, 1
        %s1265 = scalar_lea.sflag [#allocation3], %s1264
        %s1266 = sand.u32 %s567, 1
        %s1267 = smul.addr %s1266, 512
        %s1268 = scalar_lea.vmem [#allocation17], %s1267
        %p1269 = pneg %p580
        %p1270 = pneg %p577
        %p1271 = scmp.lt.s32.totalorder %s47, 1
        %s1272 = scalar_select %p1271, %s47, 1
        %s1273 = smul.addr %s1272, 4
        %s1274 = scalar_lea.vmem %s21, %s1273
        %p1275 = pneg %p606
        %p1276 = pneg %p603
        %s1277 = sand.u32 %s42, 1
        %s1278 = scalar_lea.sflag [#allocation3], %s1277
        %s1279 = sand.u32 %s619, 1
        %s1280 = smul.addr %s1279, 512
        %s1281 = scalar_lea.vmem [#allocation18], %s1280
        %p1282 = pneg %p632
        %p1283 = pneg %p629
        %p1284 = scmp.lt.s32.totalorder %s47, 1
        %s1285 = scalar_select %p1284, %s47, 1
        %s1286 = scalar_lea.vmem %s23, %s1285
        %p1287 = pneg %p658
        %p1288 = pneg %p655
        %p1289 = pneg %p684
        %p1290 = pneg %p681
        %s1291 = sand.u32 %s671, 1
        %s1292 = scalar_lea.sflag [#allocation4], %s1291
        %s1293 = sand.u32 %s671, 1
        %s1294 = smul.addr %s1293, 8
        %s1295 = scalar_lea.vmem [#allocation19], %s1294
        %p1296 = scmp.lt.s32.totalorder %s47, 1
        %s1297 = scalar_select %p1296, %s47, 1
        %s1298 = scalar_lea.vmem %s4, %s1297
        %p1299 = scmp.lt.s32.totalorder %s47, 1
        %s1300 = scalar_select %p1299, %s47, 1
        %s1301 = smul.addr %s1300, 3
        %s1302 = smul.addr %s1301, 4
        %s1303 = scalar_lea.vmem %s12, %s1302
        %p1304 = scmp.lt.s32.totalorder %s47, 1
        %s1305 = scalar_select %p1304, %s47, 1
        %s1306 = smul.addr %s1305, 5
        %s1307 = smul.addr %s1306, 8
        %s1308 = scalar_lea.vmem %s13, %s1307
        %p1309 = scmp.lt.s32.totalorder %s47, 1
        %s1310 = scalar_select %p1309, %s47, 1
        %s1311 = scalar_lea.vmem %s17, %s1310
        %p1312 = scmp.lt.s32.totalorder %s47, 1
        %s1313 = scalar_select %p1312, %s47, 1
        %s1314 = scalar_lea.vmem %s18, %s1313
        %p1315 = scmp.lt.s32.totalorder %s47, 1
        %s1316 = scalar_select %p1315, %s47, 1
        %s1317 = scalar_lea.vmem %s19, %s1316
        %p1318 = scmp.lt.s32.totalorder %s47, 1
        %s1319 = scalar_select %p1318, %s47, 1
        %s1320 = smul.addr %s1319, 4
        %s1321 = scalar_lea.vmem %s21, %s1320
        %p1322 = scmp.lt.s32.totalorder %s47, 1
        %s1323 = scalar_select %p1322, %s47, 1
        %s1324 = scalar_lea.vmem %s23, %s1323
        %p1325 = scmp.eq.s32.totalorder %s47, 0
        // Predicated region
        $region173: #{tpu_custom_call.1} parent=115 // pred_check
          %p1326 = pneg %p1325
        $region174: #{tpu_custom_call.1} parent=115 // pred_check_branch
          %1328 = sbr.rel (%p1326) target = $region176
        $region175: #{tpu_custom_call.1} parent=115 // pred_region
          %v1329 = vld [vmem:[%s1038] sm:$0xff]
          %1330 = vst [vmem:[%s1295] sm:$0xff] %v1329
        $region176: #{tpu_custom_call.1} parent=115 // pred_fallthru
          _
        %v1331 = vld [vmem:[%s1295] sm:$0xff]
        %v1332 = vld [vmem:[%s1] sm:$0xff]
        %v1333 = vld [vmem:[%s1 + $0x8] sm:$0xff]
        %v1334 = vld [vmem:[%s1 + $0x10] sm:$0xff]
        %v1335 = vld [vmem:[%s1 + $0x18] sm:$0xff]
        %v1336 = vld [vmem:[%s1 + $0x20] sm:$0xff]
        %v1337 = vld [vmem:[%s1 + $0x28] sm:$0xff]
        %v1338 = vld [vmem:[%s1 + $0x30] sm:$0xff]
        %v1339 = vld [vmem:[%s1 + $0x38] sm:$0xff]
        %v1340 = vld [vmem:[%s1 + $0x40] sm:$0xff]
        %v1341 = vld [vmem:[%s1 + $0x48] sm:$0xff]
        %v1342 = vld [vmem:[%s1 + $0x50] sm:$0xff]
        %v1343 = vld [vmem:[%s1 + $0x58] sm:$0xff]
        %v1344 = vld [vmem:[%s1 + $0x60] sm:$0xff]
        %v1345 = vld [vmem:[%s1 + $0x68] sm:$0xff]
        %v1346 = vld [vmem:[%s1 + $0x70] sm:$0xff]
        %v1347 = vld [vmem:[%s1 + $0x78] sm:$0xff]
        %v1348 = vld [vmem:[%s1298] sm:$0x1]
        %v1349 = vld [vmem:[%s1050] sm:$0x1]
        %1350 = vmatprep.subr.mxu0 0.0
        %1351 = vmatpush1.msra.mxu0 %v1332
        %1352 = vmatprep.subr.mxu0 0.0
        %1353 = vmatpush1.msra.mxu0 %v1333
        %1354 = vmatprep.subr.mxu0 0.0
        %1355 = vmatpush1.msra.mxu0 %v1334
        %1356 = vmatprep.subr.mxu0 0.0
        %1357 = vmatpush1.msra.mxu0 %v1335
        %1358 = vmatprep.subr.mxu0 0.0
        %1359 = vmatpush1.msra.mxu0 %v1336
        %1360 = vmatprep.subr.mxu0 0.0
        %1361 = vmatpush1.msra.mxu0 %v1337
        %1362 = vmatprep.subr.mxu0 0.0
        %1363 = vmatpush1.msra.mxu0 %v1338
        %1364 = vmatprep.subr.mxu0 0.0
        %1365 = vmatpush1.msra.mxu0 %v1339
        %1366 = vmatprep.subr.mxu0 0.0
        %1367 = vmatpush1.msra.mxu0 %v1340
        %1368 = vmatprep.subr.mxu0 0.0
        %1369 = vmatpush1.msra.mxu0 %v1341
        %1370 = vmatprep.subr.mxu0 0.0
        %1371 = vmatpush1.msra.mxu0 %v1342
        %1372 = vmatprep.subr.mxu0 0.0
        %1373 = vmatpush1.msra.mxu0 %v1343
        %1374 = vmatprep.subr.mxu0 0.0
        %1375 = vmatpush1.msra.mxu0 %v1344
        %1376 = vmatprep.subr.mxu0 0.0
        %1377 = vmatpush1.msra.mxu0 %v1345
        %1378 = vmatprep.subr.mxu0 0.0
        %1379 = vmatpush1.msra.mxu0 %v1346
        %1380 = vmatprep.subr.mxu0 0.0
        %1381 = vmatpush1.msra.mxu0 %v1347
        %1382 = vmatprep.subr.mxu0 0.0
        %1383 = vmatpush1.msra.mxu0 0.0
        %1384 = vmatprep.subr.mxu0 0.0
        %1385 = vmatpush1.msra.mxu0 0.0
        %1386 = vmatprep.subr.mxu0 0.0
        %1387 = vmatpush1.msra.mxu0 0.0
        %1388 = vmatprep.subr.mxu0 0.0
        %1389 = vmatpush1.msra.mxu0 0.0
        %1390 = vmatprep.subr.mxu0 0.0
        %1391 = vmatpush1.msra.mxu0 0.0
        %1392 = vmatprep.subr.mxu0 0.0
        %1393 = vmatpush1.msra.mxu0 0.0
        %1394 = vmatprep.subr.mxu0 0.0
        %1395 = vmatpush1.msra.mxu0 0.0
        %1396 = vmatprep.subr.mxu0 0.0
        %1397 = vmatpush1.msra.mxu0 0.0
        %1398 = vmatprep.subr.mxu0 0.0
        %1399 = vmatpush1.msra.mxu0 0.0
        %1400 = vmatprep.subr.mxu0 0.0
        %1401 = vmatpush1.msra.mxu0 0.0
        %1402 = vmatprep.subr.mxu0 0.0
        %1403 = vmatpush1.msra.mxu0 0.0
        %1404 = vmatprep.subr.mxu0 0.0
        %1405 = vmatpush1.msra.mxu0 0.0
        %1406 = vmatprep.subr.mxu0 0.0
        %1407 = vmatpush1.msra.mxu0 0.0
        %1408 = vmatprep.subr.mxu0 0.0
        %1409 = vmatpush1.msra.mxu0 0.0
        %1410 = vmatprep.subr.mxu0 0.0
        %1411 = vmatpush1.msra.mxu0 0.0
        %1412 = vmatprep.subr.mxu0 0.0
        %1413 = vmatpush1.msra.mxu0 0.0
        %1414 = vmatprep.mubr.f32.mxu0 0.0
        %1415 = vmatmul.mubr.f32.gmra.mrb[0].mxu0 %v1331
        %v1416 = vpop.f32.mrb[0].mxu0
        %v1417 = vadd.f32 0.0, %v1416
        %v1418 = vpop.f32.mrb[0].mxu0
        %1419 = vdwg.mxu0
        %v1420 = vsub.f32 %v1331, %v1417
        %v1421 = vmul.f32 %v1420, %v1420
        %1422 = vmatprep.subr.mxu0 0.0
        %1423 = vmatpush1.msra.mxu0 %v1332
        %1424 = vmatprep.subr.mxu0 0.0
        %1425 = vmatpush1.msra.mxu0 %v1333
        %1426 = vmatprep.subr.mxu0 0.0
        %1427 = vmatpush1.msra.mxu0 %v1334
        %1428 = vmatprep.subr.mxu0 0.0
        %1429 = vmatpush1.msra.mxu0 %v1335
        %1430 = vmatprep.subr.mxu0 0.0
        %1431 = vmatpush1.msra.mxu0 %v1336
        %1432 = vmatprep.subr.mxu0 0.0
        %1433 = vmatpush1.msra.mxu0 %v1337
        %1434 = vmatprep.subr.mxu0 0.0
        %1435 = vmatpush1.msra.mxu0 %v1338
        %1436 = vmatprep.subr.mxu0 0.0
        %1437 = vmatpush1.msra.mxu0 %v1339
        %1438 = vmatprep.subr.mxu0 0.0
        %1439 = vmatpush1.msra.mxu0 %v1340
        %1440 = vmatprep.subr.mxu0 0.0
        %1441 = vmatpush1.msra.mxu0 %v1341
        %1442 = vmatprep.subr.mxu0 0.0
        %1443 = vmatpush1.msra.mxu0 %v1342
        %1444 = vmatprep.subr.mxu0 0.0
        %1445 = vmatpush1.msra.mxu0 %v1343
        %1446 = vmatprep.subr.mxu0 0.0
        %1447 = vmatpush1.msra.mxu0 %v1344
        %1448 = vmatprep.subr.mxu0 0.0
        %1449 = vmatpush1.msra.mxu0 %v1345
        %1450 = vmatprep.subr.mxu0 0.0
        %1451 = vmatpush1.msra.mxu0 %v1346
        %1452 = vmatprep.subr.mxu0 0.0
        %1453 = vmatpush1.msra.mxu0 %v1347
        %1454 = vmatprep.subr.mxu0 0.0
        %1455 = vmatpush1.msra.mxu0 0.0
        %1456 = vmatprep.subr.mxu0 0.0
        %1457 = vmatpush1.msra.mxu0 0.0
        %1458 = vmatprep.subr.mxu0 0.0
        %1459 = vmatpush1.msra.mxu0 0.0
        %1460 = vmatprep.subr.mxu0 0.0
        %1461 = vmatpush1.msra.mxu0 0.0
        %1462 = vmatprep.subr.mxu0 0.0
        %1463 = vmatpush1.msra.mxu0 0.0
        %1464 = vmatprep.subr.mxu0 0.0
        %1465 = vmatpush1.msra.mxu0 0.0
        %1466 = vmatprep.subr.mxu0 0.0
        %1467 = vmatpush1.msra.mxu0 0.0
        %1468 = vmatprep.subr.mxu0 0.0
        %1469 = vmatpush1.msra.mxu0 0.0
        %1470 = vmatprep.subr.mxu0 0.0
        %1471 = vmatpush1.msra.mxu0 0.0
        %1472 = vmatprep.subr.mxu0 0.0
        %1473 = vmatpush1.msra.mxu0 0.0
        %1474 = vmatprep.subr.mxu0 0.0
        %1475 = vmatpush1.msra.mxu0 0.0
        %1476 = vmatprep.subr.mxu0 0.0
        %1477 = vmatpush1.msra.mxu0 0.0
        %1478 = vmatprep.subr.mxu0 0.0
        %1479 = vmatpush1.msra.mxu0 0.0
        %1480 = vmatprep.subr.mxu0 0.0
        %1481 = vmatpush1.msra.mxu0 0.0
        %1482 = vmatprep.subr.mxu0 0.0
        %1483 = vmatpush1.msra.mxu0 0.0
        %1484 = vmatprep.subr.mxu0 0.0
        %1485 = vmatpush1.msra.mxu0 0.0
        %1486 = vmatprep.mubr.f32.mxu0 0.0
        %1487 = vmatmul.mubr.f32.gmra.mrb[0].mxu0 %v1421
        %v1488 = vpop.f32.mrb[0].mxu0
        %v1489 = vadd.f32 1e-05, %v1488
        %v1490 = vpop.f32.mrb[0].mxu0
        %1491 = vdwg.mxu0
        %v1492 = vrsqrt.pop %v1489
        %v1493 = vmul.f32 %v1420, %v1492
        %v1495 = vlaneseq
        %v1496 = vshrl.u32 %v1495, 7
        %v1497 = vsub.s32 0, %v1496
        %v1498 = vrot.slane %v1348, %v1497
        %v1500 = vmul.f32 %v1493, %v1498
        %v1502 = vlaneseq
        %v1503 = vshrl.u32 %v1502, 7
        %v1504 = vsub.s32 0, %v1503
        %v1505 = vrot.slane %v1349, %v1504
        %v1507 = vadd.f32 %v1500, %v1505
        %v1508 = vld [vmem:[%s1059] sm:$0xff]
        %v1509 = vld [vmem:[%s1059 + $0x8] sm:$0xff]
        %v1510 = vld [vmem:[%s1059 + $0x10] sm:$0xff]
        %v1511 = vld [vmem:[%s1059 + $0x18] sm:$0xff]
        %v1512 = vld [vmem:[%s1059 + $0x20] sm:$0xff]
        %v1513 = vld [vmem:[%s1059 + $0x28] sm:$0xff]
        %v1514 = vld [vmem:[%s1059 + $0x30] sm:$0xff]
        %v1515 = vld [vmem:[%s1059 + $0x38] sm:$0xff]
        %v1516 = vld [vmem:[%s1059 + $0x40] sm:$0xff]
        %v1517 = vld [vmem:[%s1059 + $0x48] sm:$0xff]
        %v1518 = vld [vmem:[%s1059 + $0x50] sm:$0xff]
        %v1519 = vld [vmem:[%s1059 + $0x58] sm:$0xff]
        %v1520 = vld [vmem:[%s1059 + $0x60] sm:$0xff]
        %v1521 = vld [vmem:[%s1059 + $0x68] sm:$0xff]
        %v1522 = vld [vmem:[%s1059 + $0x70] sm:$0xff]
        %v1523 = vld [vmem:[%s1059 + $0x78] sm:$0xff]
        %v1524 = vld [vmem:[%s1067] sm:$0x1]
        %v1526 = vlaneseq
        %v1527 = vshrl.u32 %v1526, 7
        %v1528 = vsub.s32 0, %v1527
        %v1529 = vrot.slane %v1524, %v1528
        %1531 = vmatprep.subr.mxu0 0.0
        %1532 = vmatpush1.msra.mxu0 %v1508
        %1533 = vmatprep.subr.mxu0 0.0
        %1534 = vmatpush1.msra.mxu0 %v1509
        %1535 = vmatprep.subr.mxu0 0.0
        %1536 = vmatpush1.msra.mxu0 %v1510
        %1537 = vmatprep.subr.mxu0 0.0
        %1538 = vmatpush1.msra.mxu0 %v1511
        %1539 = vmatprep.subr.mxu0 0.0
        %1540 = vmatpush1.msra.mxu0 %v1512
        %1541 = vmatprep.subr.mxu0 0.0
        %1542 = vmatpush1.msra.mxu0 %v1513
        %1543 = vmatprep.subr.mxu0 0.0
        %1544 = vmatpush1.msra.mxu0 %v1514
        %1545 = vmatprep.subr.mxu0 0.0
        %1546 = vmatpush1.msra.mxu0 %v1515
        %1547 = vmatprep.subr.mxu0 0.0
        %1548 = vmatpush1.msra.mxu0 %v1516
        %1549 = vmatprep.subr.mxu0 0.0
        %1550 = vmatpush1.msra.mxu0 %v1517
        %1551 = vmatprep.subr.mxu0 0.0
        %1552 = vmatpush1.msra.mxu0 %v1518
        %1553 = vmatprep.subr.mxu0 0.0
        %1554 = vmatpush1.msra.mxu0 %v1519
        %1555 = vmatprep.subr.mxu0 0.0
        %1556 = vmatpush1.msra.mxu0 %v1520
        %1557 = vmatprep.subr.mxu0 0.0
        %1558 = vmatpush1.msra.mxu0 %v1521
        %1559 = vmatprep.subr.mxu0 0.0
        %1560 = vmatpush1.msra.mxu0 %v1522
        %1561 = vmatprep.subr.mxu0 0.0
        %1562 = vmatpush1.msra.mxu0 %v1523
        %1563 = vmatprep.subr.mxu0 0.0
        %1564 = vmatpush1.msra.mxu0 0.0
        %1565 = vmatprep.subr.mxu0 0.0
        %1566 = vmatpush1.msra.mxu0 0.0
        %1567 = vmatprep.subr.mxu0 0.0
        %1568 = vmatpush1.msra.mxu0 0.0
        %1569 = vmatprep.subr.mxu0 0.0
        %1570 = vmatpush1.msra.mxu0 0.0
        %1571 = vmatprep.subr.mxu0 0.0
        %1572 = vmatpush1.msra.mxu0 0.0
        %1573 = vmatprep.subr.mxu0 0.0
        %1574 = vmatpush1.msra.mxu0 0.0
        %1575 = vmatprep.subr.mxu0 0.0
        %1576 = vmatpush1.msra.mxu0 0.0
        %1577 = vmatprep.subr.mxu0 0.0
        %1578 = vmatpush1.msra.mxu0 0.0
        %1579 = vmatprep.subr.mxu0 0.0
        %1580 = vmatpush1.msra.mxu0 0.0
        %1581 = vmatprep.subr.mxu0 0.0
        %1582 = vmatpush1.msra.mxu0 0.0
        %1583 = vmatprep.subr.mxu0 0.0
        %1584 = vmatpush1.msra.mxu0 0.0
        %1585 = vmatprep.subr.mxu0 0.0
        %1586 = vmatpush1.msra.mxu0 0.0
        %1587 = vmatprep.subr.mxu0 0.0
        %1588 = vmatpush1.msra.mxu0 0.0
        %1589 = vmatprep.subr.mxu0 0.0
        %1590 = vmatpush1.msra.mxu0 0.0
        %1591 = vmatprep.subr.mxu0 0.0
        %1592 = vmatpush1.msra.mxu0 0.0
        %1593 = vmatprep.subr.mxu0 0.0
        %1594 = vmatpush1.msra.mxu0 0.0
        %1595 = vmatprep.mubr.f32.mxu0 0.0
        %1596 = vmatmul.mubr.f32.gmra.mrb[0].mxu0 %v1507
        %v1597 = vpop.f32.mrb[0].mxu0
        %v1598 = vadd.f32 %v1529, %v1597
        %v1599 = vpop.f32.mrb[0].mxu0
        %1600 = vdwg.mxu0
        %v1601 = vld [vmem:[%s1076] sm:$0xff]
        %v1602 = vld [vmem:[%s1076 + $0x8] sm:$0xff]
        %v1603 = vld [vmem:[%s1076 + $0x10] sm:$0xff]
        %v1604 = vld [vmem:[%s1076 + $0x18] sm:$0xff]
        %v1605 = vld [vmem:[%s1076 + $0x20] sm:$0xff]
        %v1606 = vld [vmem:[%s1076 + $0x28] sm:$0xff]
        %v1607 = vld [vmem:[%s1076 + $0x30] sm:$0xff]
        %v1608 = vld [vmem:[%s1076 + $0x38] sm:$0xff]
        %v1609 = vld [vmem:[%s1076 + $0x40] sm:$0xff]
        %v1610 = vld [vmem:[%s1076 + $0x48] sm:$0xff]
        %v1611 = vld [vmem:[%s1076 + $0x50] sm:$0xff]
        %v1612 = vld [vmem:[%s1076 + $0x58] sm:$0xff]
        %v1613 = vld [vmem:[%s1076 + $0x60] sm:$0xff]
        %v1614 = vld [vmem:[%s1076 + $0x68] sm:$0xff]
        %v1615 = vld [vmem:[%s1076 + $0x70] sm:$0xff]
        %v1616 = vld [vmem:[%s1076 + $0x78] sm:$0xff]
        %v1617 = vld [vmem:[%s1084] sm:$0x1]
        %v1619 = vlaneseq
        %v1620 = vshrl.u32 %v1619, 7
        %v1621 = vsub.s32 0, %v1620
        %v1622 = vrot.slane %v1617, %v1621
        %1624 = vmatprep.subr.mxu0 0.0
        %1625 = vmatpush1.msra.mxu0 %v1601
        %1626 = vmatprep.subr.mxu0 0.0
        %1627 = vmatpush1.msra.mxu0 %v1602
        %1628 = vmatprep.subr.mxu0 0.0
        %1629 = vmatpush1.msra.mxu0 %v1603
        %1630 = vmatprep.subr.mxu0 0.0
        %1631 = vmatpush1.msra.mxu0 %v1604
        %1632 = vmatprep.subr.mxu0 0.0
        %1633 = vmatpush1.msra.mxu0 %v1605
        %1634 = vmatprep.subr.mxu0 0.0
        %1635 = vmatpush1.msra.mxu0 %v1606
        %1636 = vmatprep.subr.mxu0 0.0
        %1637 = vmatpush1.msra.mxu0 %v1607
        %1638 = vmatprep.subr.mxu0 0.0
        %1639 = vmatpush1.msra.mxu0 %v1608
        %1640 = vmatprep.subr.mxu0 0.0
        %1641 = vmatpush1.msra.mxu0 %v1609
        %1642 = vmatprep.subr.mxu0 0.0
        %1643 = vmatpush1.msra.mxu0 %v1610
        %1644 = vmatprep.subr.mxu0 0.0
        %1645 = vmatpush1.msra.mxu0 %v1611
        %1646 = vmatprep.subr.mxu0 0.0
        %1647 = vmatpush1.msra.mxu0 %v1612
        %1648 = vmatprep.subr.mxu0 0.0
        %1649 = vmatpush1.msra.mxu0 %v1613
        %1650 = vmatprep.subr.mxu0 0.0
        %1651 = vmatpush1.msra.mxu0 %v1614
        %1652 = vmatprep.subr.mxu0 0.0
        %1653 = vmatpush1.msra.mxu0 %v1615
        %1654 = vmatprep.subr.mxu0 0.0
        %1655 = vmatpush1.msra.mxu0 %v1616
        %1656 = vmatprep.subr.mxu0 0.0
        %1657 = vmatpush1.msra.mxu0 0.0
        %1658 = vmatprep.subr.mxu0 0.0
        %1659 = vmatpush1.msra.mxu0 0.0
        %1660 = vmatprep.subr.mxu0 0.0
        %1661 = vmatpush1.msra.mxu0 0.0
        %1662 = vmatprep.subr.mxu0 0.0
        %1663 = vmatpush1.msra.mxu0 0.0
        %1664 = vmatprep.subr.mxu0 0.0
        %1665 = vmatpush1.msra.mxu0 0.0
        %1666 = vmatprep.subr.mxu0 0.0
        %1667 = vmatpush1.msra.mxu0 0.0
        %1668 = vmatprep.subr.mxu0 0.0
        %1669 = vmatpush1.msra.mxu0 0.0
        %1670 = vmatprep.subr.mxu0 0.0
        %1671 = vmatpush1.msra.mxu0 0.0
        %1672 = vmatprep.subr.mxu0 0.0
        %1673 = vmatpush1.msra.mxu0 0.0
        %1674 = vmatprep.subr.mxu0 0.0
        %1675 = vmatpush1.msra.mxu0 0.0
        %1676 = vmatprep.subr.mxu0 0.0
        %1677 = vmatpush1.msra.mxu0 0.0
        %1678 = vmatprep.subr.mxu0 0.0
        %1679 = vmatpush1.msra.mxu0 0.0
        %1680 = vmatprep.subr.mxu0 0.0
        %1681 = vmatpush1.msra.mxu0 0.0
        %1682 = vmatprep.subr.mxu0 0.0
        %1683 = vmatpush1.msra.mxu0 0.0
        %1684 = vmatprep.subr.mxu0 0.0
        %1685 = vmatpush1.msra.mxu0 0.0
        %1686 = vmatprep.subr.mxu0 0.0
        %1687 = vmatpush1.msra.mxu0 0.0
        %1688 = vmatprep.mubr.f32.mxu0 0.0
        %1689 = vmatmul.mubr.f32.gmra.mrb[0].mxu0 %v1507
        %v1690 = vpop.f32.mrb[0].mxu0
        %v1691 = vadd.f32 %v1622, %v1690
        %v1692 = vpop.f32.mrb[0].mxu0
        %1693 = vdwg.mxu0
        %v1694 = vld [vmem:[%s1093] sm:$0xff]
        %v1695 = vld [vmem:[%s1093 + $0x8] sm:$0xff]
        %v1696 = vld [vmem:[%s1093 + $0x10] sm:$0xff]
        %v1697 = vld [vmem:[%s1093 + $0x18] sm:$0xff]
        %v1698 = vld [vmem:[%s1093 + $0x20] sm:$0xff]
        %v1699 = vld [vmem:[%s1093 + $0x28] sm:$0xff]
        %v1700 = vld [vmem:[%s1093 + $0x30] sm:$0xff]
        %v1701 = vld [vmem:[%s1093 + $0x38] sm:$0xff]
        %v1702 = vld [vmem:[%s1093 + $0x40] sm:$0xff]
        %v1703 = vld [vmem:[%s1093 + $0x48] sm:$0xff]
        %v1704 = vld [vmem:[%s1093 + $0x50] sm:$0xff]
        %v1705 = vld [vmem:[%s1093 + $0x58] sm:$0xff]
        %v1706 = vld [vmem:[%s1093 + $0x60] sm:$0xff]
        %v1707 = vld [vmem:[%s1093 + $0x68] sm:$0xff]
        %v1708 = vld [vmem:[%s1093 + $0x70] sm:$0xff]
        %v1709 = vld [vmem:[%s1093 + $0x78] sm:$0xff]
        %v1710 = vld [vmem:[%s1093 + $0x80] sm:$0xff]
        %v1711 = vld [vmem:[%s1093 + $0x88] sm:$0xff]
        %v1712 = vld [vmem:[%s1093 + $0x90] sm:$0xff]
        %v1713 = vld [vmem:[%s1093 + $0x98] sm:$0xff]
        %v1714 = vld [vmem:[%s1093 + $0xa0] sm:$0xff]
        %v1715 = vld [vmem:[%s1093 + $0xa8] sm:$0xff]
        %v1716 = vld [vmem:[%s1093 + $0xb0] sm:$0xff]
        %v1717 = vld [vmem:[%s1093 + $0xb8] sm:$0xff]
        %v1718 = vld [vmem:[%s1093 + $0xc0] sm:$0xff]
        %v1719 = vld [vmem:[%s1093 + $0xc8] sm:$0xff]
        %v1720 = vld [vmem:[%s1093 + $0xd0] sm:$0xff]
        %v1721 = vld [vmem:[%s1093 + $0xd8] sm:$0xff]
        %v1722 = vld [vmem:[%s1093 + $0xe0] sm:$0xff]
        %v1723 = vld [vmem:[%s1093 + $0xe8] sm:$0xff]
        %v1724 = vld [vmem:[%s1093 + $0xf0] sm:$0xff]
        %v1725 = vld [vmem:[%s1093 + $0xf8] sm:$0xff]
        %v1726 = vld [vmem:[%s1093 + $0x100] sm:$0xff]
        %v1727 = vld [vmem:[%s1093 + $0x108] sm:$0xff]
        %v1728 = vld [vmem:[%s1093 + $0x110] sm:$0xff]
        %v1729 = vld [vmem:[%s1093 + $0x118] sm:$0xff]
        %v1730 = vld [vmem:[%s1093 + $0x120] sm:$0xff]
        %v1731 = vld [vmem:[%s1093 + $0x128] sm:$0xff]
        %v1732 = vld [vmem:[%s1093 + $0x130] sm:$0xff]
        %v1733 = vld [vmem:[%s1093 + $0x138] sm:$0xff]
        %v1734 = vld [vmem:[%s1093 + $0x140] sm:$0xff]
        %v1735 = vld [vmem:[%s1093 + $0x148] sm:$0xff]
        %v1736 = vld [vmem:[%s1093 + $0x150] sm:$0xff]
        %v1737 = vld [vmem:[%s1093 + $0x158] sm:$0xff]
        %v1738 = vld [vmem:[%s1093 + $0x160] sm:$0xff]
        %v1739 = vld [vmem:[%s1093 + $0x168] sm:$0xff]
        %v1740 = vld [vmem:[%s1093 + $0x170] sm:$0xff]
        %v1741 = vld [vmem:[%s1093 + $0x178] sm:$0xff]
        %v1742 = vld [vmem:[%s1102] sm:$0x7]
        %v1744 = vlaneseq
        %v1745 = vshrl.u32 %v1744, 7
        %v1746 = vsub.s32 0, %v1745
        %v1747 = vrot.slane %v1742, %v1746
        %v1748 = vlaneseq
        %v1749 = vshrl.u32 %v1748, 7
        %v1750 = vsub.s32 1, %v1749
        %v1751 = vrot.slane %v1742, %v1750
        %v1752 = vlaneseq
        %v1753 = vshrl.u32 %v1752, 7
        %v1754 = vsub.s32 2, %v1753
        %v1755 = vrot.slane %v1742, %v1754
        %1759 = vmatprep.subr.mxu0 %v1695
        %1760 = vmatpush1.msra.mxu0 %v1694
        %1761 = vmatprep.subr.mxu0 %v1698
        %1762 = vmatpush1.msra.mxu0 %v1697
        %1763 = vmatprep.subr.mxu0 %v1701
        %1764 = vmatpush1.msra.mxu0 %v1700
        %1765 = vmatprep.subr.mxu0 %v1704
        %1766 = vmatpush1.msra.mxu0 %v1703
        %1767 = vmatprep.subr.mxu0 %v1707
        %1768 = vmatpush1.msra.mxu0 %v1706
        %1769 = vmatprep.subr.mxu0 %v1710
        %1770 = vmatpush1.msra.mxu0 %v1709
        %1771 = vmatprep.subr.mxu0 %v1713
        %1772 = vmatpush1.msra.mxu0 %v1712
        %1773 = vmatprep.subr.mxu0 %v1716
        %1774 = vmatpush1.msra.mxu0 %v1715
        %1775 = vmatprep.subr.mxu0 %v1719
        %1776 = vmatpush1.msra.mxu0 %v1718
        %1777 = vmatprep.subr.mxu0 %v1722
        %1778 = vmatpush1.msra.mxu0 %v1721
        %1779 = vmatprep.subr.mxu0 %v1725
        %1780 = vmatpush1.msra.mxu0 %v1724
        %1781 = vmatprep.subr.mxu0 %v1728
        %1782 = vmatpush1.msra.mxu0 %v1727
        %1783 = vmatprep.subr.mxu0 %v1731
        %1784 = vmatpush1.msra.mxu0 %v1730
        %1785 = vmatprep.subr.mxu0 %v1734
        %1786 = vmatpush1.msra.mxu0 %v1733
        %1787 = vmatprep.subr.mxu0 %v1737
        %1788 = vmatpush1.msra.mxu0 %v1736
        %1789 = vmatprep.subr.mxu0 %v1740
        %1790 = vmatpush1.msra.mxu0 %v1739
        %1791 = vmatprep.subr.mxu0 0.0
        %1792 = vmatpush1.msra.mxu0 0.0
        %1793 = vmatprep.subr.mxu0 0.0
        %1794 = vmatpush1.msra.mxu0 0.0
        %1795 = vmatprep.subr.mxu0 0.0
        %1796 = vmatpush1.msra.mxu0 0.0
        %1797 = vmatprep.subr.mxu0 0.0
        %1798 = vmatpush1.msra.mxu0 0.0
        %1799 = vmatprep.subr.mxu0 0.0
        %1800 = vmatpush1.msra.mxu0 0.0
        %1801 = vmatprep.subr.mxu0 0.0
        %1802 = vmatpush1.msra.mxu0 0.0
        %1803 = vmatprep.subr.mxu0 0.0
        %1804 = vmatpush1.msra.mxu0 0.0
        %1805 = vmatprep.subr.mxu0 0.0
        %1806 = vmatpush1.msra.mxu0 0.0
        %1807 = vmatprep.subr.mxu0 0.0
        %1808 = vmatpush1.msra.mxu0 0.0
        %1809 = vmatprep.subr.mxu0 0.0
        %1810 = vmatpush1.msra.mxu0 0.0
        %1811 = vmatprep.subr.mxu0 0.0
        %1812 = vmatpush1.msra.mxu0 0.0
        %1813 = vmatprep.subr.mxu0 0.0
        %1814 = vmatpush1.msra.mxu0 0.0
        %1815 = vmatprep.subr.mxu0 0.0
        %1816 = vmatpush1.msra.mxu0 0.0
        %1817 = vmatprep.subr.mxu0 0.0
        %1818 = vmatpush1.msra.mxu0 0.0
        %1819 = vmatprep.subr.mxu0 0.0
        %1820 = vmatpush1.msra.mxu0 0.0
        %1821 = vmatprep.subr.mxu0 0.0
        %1822 = vmatpush1.msra.mxu0 0.0
        %1823 = vmatprep.mubr.f32.mxu0 0.0
        %1824 = vmatmul.mubr.f32.gmra.mrb[0].mxu0 %v1507
        %v1825 = vpop.f32.mrb[0].mxu0
        %v1826 = vadd.f32 %v1747, %v1825
        %v1827 = vpop.f32.mrb[0].mxu0
        %v1828 = vadd.f32 %v1751, %v1827
        %1829 = vdwg.mxu0
        %1830 = vmatprep.subr.mxu0 0.0
        %1831 = vmatpush1.msra.mxu0 %v1696
        %1832 = vmatprep.subr.mxu0 0.0
        %1833 = vmatpush1.msra.mxu0 %v1699
        %1834 = vmatprep.subr.mxu0 0.0
        %1835 = vmatpush1.msra.mxu0 %v1702
        %1836 = vmatprep.subr.mxu0 0.0
        %1837 = vmatpush1.msra.mxu0 %v1705
        %1838 = vmatprep.subr.mxu0 0.0
        %1839 = vmatpush1.msra.mxu0 %v1708
        %1840 = vmatprep.subr.mxu0 0.0
        %1841 = vmatpush1.msra.mxu0 %v1711
        %1842 = vmatprep.subr.mxu0 0.0
        %1843 = vmatpush1.msra.mxu0 %v1714
        %1844 = vmatprep.subr.mxu0 0.0
        %1845 = vmatpush1.msra.mxu0 %v1717
        %1846 = vmatprep.subr.mxu0 0.0
        %1847 = vmatpush1.msra.mxu0 %v1720
        %1848 = vmatprep.subr.mxu0 0.0
        %1849 = vmatpush1.msra.mxu0 %v1723
        %1850 = vmatprep.subr.mxu0 0.0
        %1851 = vmatpush1.msra.mxu0 %v1726
        %1852 = vmatprep.subr.mxu0 0.0
        %1853 = vmatpush1.msra.mxu0 %v1729
        %1854 = vmatprep.subr.mxu0 0.0
        %1855 = vmatpush1.msra.mxu0 %v1732
        %1856 = vmatprep.subr.mxu0 0.0
        %1857 = vmatpush1.msra.mxu0 %v1735
        %1858 = vmatprep.subr.mxu0 0.0
        %1859 = vmatpush1.msra.mxu0 %v1738
        %1860 = vmatprep.subr.mxu0 0.0
        %1861 = vmatpush1.msra.mxu0 %v1741
        %1862 = vmatprep.subr.mxu0 0.0
        %1863 = vmatpush1.msra.mxu0 0.0
        %1864 = vmatprep.subr.mxu0 0.0
        %1865 = vmatpush1.msra.mxu0 0.0
        %1866 = vmatprep.subr.mxu0 0.0
        %1867 = vmatpush1.msra.mxu0 0.0
        %1868 = vmatprep.subr.mxu0 0.0
        %1869 = vmatpush1.msra.mxu0 0.0
        %1870 = vmatprep.subr.mxu0 0.0
        %1871 = vmatpush1.msra.mxu0 0.0
        %1872 = vmatprep.subr.mxu0 0.0
        %1873 = vmatpush1.msra.mxu0 0.0
        %1874 = vmatprep.subr.mxu0 0.0
        %1875 = vmatpush1.msra.mxu0 0.0
        %1876 = vmatprep.subr.mxu0 0.0
        %1877 = vmatpush1.msra.mxu0 0.0
        %1878 = vmatprep.subr.mxu0 0.0
        %1879 = vmatpush1.msra.mxu0 0.0
        %1880 = vmatprep.subr.mxu0 0.0
        %1881 = vmatpush1.msra.mxu0 0.0
        %1882 = vmatprep.subr.mxu0 0.0
        %1883 = vmatpush1.msra.mxu0 0.0
        %1884 = vmatprep.subr.mxu0 0.0
        %1885 = vmatpush1.msra.mxu0 0.0
        %1886 = vmatprep.subr.mxu0 0.0
        %1887 = vmatpush1.msra.mxu0 0.0
        %1888 = vmatprep.subr.mxu0 0.0
        %1889 = vmatpush1.msra.mxu0 0.0
        %1890 = vmatprep.subr.mxu0 0.0
        %1891 = vmatpush1.msra.mxu0 0.0
        %1892 = vmatprep.subr.mxu0 0.0
        %1893 = vmatpush1.msra.mxu0 0.0
        %1894 = vmatprep.mubr.f32.mxu0 0.0
        %1895 = vmatmul.mubr.f32.gmra.mrb[0].mxu0 %v1507
        %v1896 = vpop.f32.mrb[0].mxu0
        %v1897 = vadd.f32 %v1755, %v1896
        %v1898 = vpop.f32.mrb[0].mxu0
        %1899 = vdwg.mxu0
        %s1900 = scalar_lea.vmem %s3, 8
        %v1901 = vld [vmem:[%s1900] sm:$0xff]
        %vm1902 = vcmask 64512
        %v1904 = vsel %vm1902, %v1901, 0
        %1906 = vmatprep.subr.mxu0 0.0
        %1907 = vmatpush1.msra.mxu0 %v1691
        %1908 = vmatprep.subr.mxu0 0.0
        %1909 = vmatpush1.msra.mxu0 0.0
        %1910 = vmatprep.subr.mxu0 0.0
        %1911 = vmatpush1.msra.mxu0 0.0
        %1912 = vmatprep.subr.mxu0 0.0
        %1913 = vmatpush1.msra.mxu0 0.0
        %1914 = vmatprep.subr.mxu0 0.0
        %1915 = vmatpush1.msra.mxu0 0.0
        %1916 = vmatprep.subr.mxu0 0.0
        %1917 = vmatpush1.msra.mxu0 0.0
        %1918 = vmatprep.subr.mxu0 0.0
        %1919 = vmatpush1.msra.mxu0 0.0
        %1920 = vmatprep.subr.mxu0 0.0
        %1921 = vmatpush1.msra.mxu0 0.0
        %1922 = vmatprep.subr.mxu0 0.0
        %1923 = vmatpush1.msra.mxu0 0.0
        %1924 = vmatprep.subr.mxu0 0.0
        %1925 = vmatpush1.msra.mxu0 0.0
        %1926 = vmatprep.subr.mxu0 0.0
        %1927 = vmatpush1.msra.mxu0 0.0
        %1928 = vmatprep.subr.mxu0 0.0
        %1929 = vmatpush1.msra.mxu0 0.0
        %1930 = vmatprep.subr.mxu0 0.0
        %1931 = vmatpush1.msra.mxu0 0.0
        %1932 = vmatprep.subr.mxu0 0.0
        %1933 = vmatpush1.msra.mxu0 0.0
        %1934 = vmatprep.subr.mxu0 0.0
        %1935 = vmatpush1.msra.mxu0 0.0
        %1936 = vmatprep.subr.mxu0 0.0
        %1937 = vmatpush1.msra.mxu0 0.0
        %1938 = vmatprep.subr.mxu0 0.0
        %1939 = vmatpush1.msra.mxu0 0.0
        %1940 = vmatprep.subr.mxu0 0.0
        %1941 = vmatpush1.msra.mxu0 0.0
        %1942 = vmatprep.subr.mxu0 0.0
        %1943 = vmatpush1.msra.mxu0 0.0
        %1944 = vmatprep.subr.mxu0 0.0
        %1945 = vmatpush1.msra.mxu0 0.0
        %1946 = vmatprep.subr.mxu0 0.0
        %1947 = vmatpush1.msra.mxu0 0.0
        %1948 = vmatprep.subr.mxu0 0.0
        %1949 = vmatpush1.msra.mxu0 0.0
        %1950 = vmatprep.subr.mxu0 0.0
        %1951 = vmatpush1.msra.mxu0 0.0
        %1952 = vmatprep.subr.mxu0 0.0
        %1953 = vmatpush1.msra.mxu0 0.0
        %1954 = vmatprep.subr.mxu0 0.0
        %1955 = vmatpush1.msra.mxu0 0.0
        %1956 = vmatprep.subr.mxu0 0.0
        %1957 = vmatpush1.msra.mxu0 0.0
        %1958 = vmatprep.subr.mxu0 0.0
        %1959 = vmatpush1.msra.mxu0 0.0
        %1960 = vmatprep.subr.mxu0 0.0
        %1961 = vmatpush1.msra.mxu0 0.0
        %1962 = vmatprep.subr.mxu0 0.0
        %1963 = vmatpush1.msra.mxu0 0.0
        %1964 = vmatprep.subr.mxu0 0.0
        %1965 = vmatpush1.msra.mxu0 0.0
        %1966 = vmatprep.subr.mxu0 0.0
        %1967 = vmatpush1.msra.mxu0 0.0
        %1968 = vmatprep.subr.mxu0 0.0
        %1969 = vmatpush1.msra.mxu0 0.0
        %1970 = vmatprep.mubr.f32.mxu0 0.0
        %1971 = vmatmul.mubr.f32.gmra.mrb[0].mxu0 %v1904
        %v1972 = vpop.f32.mrb[0].mxu0
        %v1973 = vadd.f32 0.0, %v1972
        %v1974 = vpop.f32.mrb[0].mxu0
        %1975 = vdwg.mxu0
        %1976 = vrot.lane.b32.xlu0 %v1973, 16
        %v1977 = vpop.permute.xlu0 %1976
        %v1978 = vld [vmem:[%s1303] sm:$0x1]
        %v1979 = vlaneseq
        %v1980 = vshrl.u32 %v1979, 7
        %v1981 = vsub.s32 0, %v1980
        %v1982 = vrot.slane %v1978, %v1981
        %v1983 = vmul.f32 %v1977, %v1982
        %v1984 = vadd.f32 %v1983, 0.0
        %v1985 = vld [vmem:[%s1303 + $0x1] sm:$0x1]
        %v1986 = vlaneseq
        %v1987 = vshrl.u32 %v1986, 7
        %v1988 = vsub.s32 0, %v1987
        %v1989 = vrot.slane %v1985, %v1988
        %v1990 = vmul.f32 %v1973, %v1989
        %v1991 = vadd.f32 %v1984, %v1990
        %1992 = vrot.lane.b32.xlu0 %v1973, 112
        %v1993 = vpop.permute.xlu0 %1992
        %v1994 = vld [vmem:[%s1303 + $0x2] sm:$0x1]
        %v1995 = vlaneseq
        %v1996 = vshrl.u32 %v1995, 7
        %v1997 = vsub.s32 0, %v1996
        %v1998 = vrot.slane %v1994, %v1997
        %v1999 = vmul.f32 %v1993, %v1998
        %v2000 = vadd.f32 %v1991, %v1999
        %s2001 = scalar_lea.vmem %s3, 16
        %v2002 = vld [vmem:[%s2001] sm:$0xff]
        %v2004 = vsel %vm1902, %v2002, 0
        %2006 = vmatprep.subr.mxu0 0.0
        %2007 = vmatpush1.msra.mxu0 %v1691
        %2008 = vmatprep.subr.mxu0 0.0
        %2009 = vmatpush1.msra.mxu0 0.0
        %2010 = vmatprep.subr.mxu0 0.0
        %2011 = vmatpush1.msra.mxu0 0.0
        %2012 = vmatprep.subr.mxu0 0.0
        %2013 = vmatpush1.msra.mxu0 0.0
        %2014 = vmatprep.subr.mxu0 0.0
        %2015 = vmatpush1.msra.mxu0 0.0
        %2016 = vmatprep.subr.mxu0 0.0
        %2017 = vmatpush1.msra.mxu0 0.0
        %2018 = vmatprep.subr.mxu0 0.0
        %2019 = vmatpush1.msra.mxu0 0.0
        %2020 = vmatprep.subr.mxu0 0.0
        %2021 = vmatpush1.msra.mxu0 0.0
        %2022 = vmatprep.subr.mxu0 0.0
        %2023 = vmatpush1.msra.mxu0 0.0
        %2024 = vmatprep.subr.mxu0 0.0
        %2025 = vmatpush1.msra.mxu0 0.0
        %2026 = vmatprep.subr.mxu0 0.0
        %2027 = vmatpush1.msra.mxu0 0.0
        %2028 = vmatprep.subr.mxu0 0.0
        %2029 = vmatpush1.msra.mxu0 0.0
        %2030 = vmatprep.subr.mxu0 0.0
        %2031 = vmatpush1.msra.mxu0 0.0
        %2032 = vmatprep.subr.mxu0 0.0
        %2033 = vmatpush1.msra.mxu0 0.0
        %2034 = vmatprep.subr.mxu0 0.0
        %2035 = vmatpush1.msra.mxu0 0.0
        %2036 = vmatprep.subr.mxu0 0.0
        %2037 = vmatpush1.msra.mxu0 0.0
        %2038 = vmatprep.subr.mxu0 0.0
        %2039 = vmatpush1.msra.mxu0 0.0
        %2040 = vmatprep.subr.mxu0 0.0
        %2041 = vmatpush1.msra.mxu0 0.0
        %2042 = vmatprep.subr.mxu0 0.0
        %2043 = vmatpush1.msra.mxu0 0.0
        %2044 = vmatprep.subr.mxu0 0.0
        %2045 = vmatpush1.msra.mxu0 0.0
        %2046 = vmatprep.subr.mxu0 0.0
        %2047 = vmatpush1.msra.mxu0 0.0
        %2048 = vmatprep.subr.mxu0 0.0
        %2049 = vmatpush1.msra.mxu0 0.0
        %2050 = vmatprep.subr.mxu0 0.0
        %2051 = vmatpush1.msra.mxu0 0.0
        %2052 = vmatprep.subr.mxu0 0.0
        %2053 = vmatpush1.msra.mxu0 0.0
        %2054 = vmatprep.subr.mxu0 0.0
        %2055 = vmatpush1.msra.mxu0 0.0
        %2056 = vmatprep.subr.mxu0 0.0
        %2057 = vmatpush1.msra.mxu0 0.0
        %2058 = vmatprep.subr.mxu0 0.0
        %2059 = vmatpush1.msra.mxu0 0.0
        %2060 = vmatprep.subr.mxu0 0.0
        %2061 = vmatpush1.msra.mxu0 0.0
        %2062 = vmatprep.subr.mxu0 0.0
        %2063 = vmatpush1.msra.mxu0 0.0
        %2064 = vmatprep.subr.mxu0 0.0
        %2065 = vmatpush1.msra.mxu0 0.0
        %2066 = vmatprep.subr.mxu0 0.0
        %2067 = vmatpush1.msra.mxu0 0.0
        %2068 = vmatprep.subr.mxu0 0.0
        %2069 = vmatpush1.msra.mxu0 0.0
        %2070 = vmatprep.mubr.f32.mxu0 0.0
        %2071 = vmatmul.mubr.f32.gmra.mrb[0].mxu0 %v2004
        %v2072 = vpop.f32.mrb[0].mxu0
        %v2073 = vadd.f32 0.0, %v2072
        %v2074 = vpop.f32.mrb[0].mxu0
        %2075 = vdwg.mxu0
        %2076 = vrot.lane.b32.xlu0 %v2073, 16
        %v2077 = vpop.permute.xlu0 %2076
        %s2078 = scalar_lea.vmem %s1303, 4
        %v2079 = vld [vmem:[%s2078] sm:$0x1]
        %v2080 = vlaneseq
        %v2081 = vshrl.u32 %v2080, 7
        %v2082 = vsub.s32 0, %v2081
        %v2083 = vrot.slane %v2079, %v2082
        %v2084 = vmul.f32 %v2077, %v2083
        %v2085 = vadd.f32 %v2000, %v2084
        %v2086 = vld [vmem:[%s2078 + $0x1] sm:$0x1]
        %v2087 = vlaneseq
        %v2088 = vshrl.u32 %v2087, 7
        %v2089 = vsub.s32 0, %v2088
        %v2090 = vrot.slane %v2086, %v2089
        %v2091 = vmul.f32 %v2073, %v2090
        %v2092 = vadd.f32 %v2085, %v2091
        %2093 = vrot.lane.b32.xlu0 %v2073, 112
        %v2094 = vpop.permute.xlu0 %2093
        %v2095 = vld [vmem:[%s2078 + $0x2] sm:$0x1]
        %v2096 = vlaneseq
        %v2097 = vshrl.u32 %v2096, 7
        %v2098 = vsub.s32 0, %v2097
        %v2099 = vrot.slane %v2095, %v2098
        %v2100 = vmul.f32 %v2094, %v2099
        %v2101 = vadd.f32 %v2092, %v2100
        %s2102 = scalar_lea.vmem %s3, 24
        %v2103 = vld [vmem:[%s2102] sm:$0xff]
        %v2105 = vsel %vm1902, %v2103, 0
        %2107 = vmatprep.subr.mxu0 0.0
        %2108 = vmatpush1.msra.mxu0 %v1691
        %2109 = vmatprep.subr.mxu0 0.0
        %2110 = vmatpush1.msra.mxu0 0.0
        %2111 = vmatprep.subr.mxu0 0.0
        %2112 = vmatpush1.msra.mxu0 0.0
        %2113 = vmatprep.subr.mxu0 0.0
        %2114 = vmatpush1.msra.mxu0 0.0
        %2115 = vmatprep.subr.mxu0 0.0
        %2116 = vmatpush1.msra.mxu0 0.0
        %2117 = vmatprep.subr.mxu0 0.0
        %2118 = vmatpush1.msra.mxu0 0.0
        %2119 = vmatprep.subr.mxu0 0.0
        %2120 = vmatpush1.msra.mxu0 0.0
        %2121 = vmatprep.subr.mxu0 0.0
        %2122 = vmatpush1.msra.mxu0 0.0
        %2123 = vmatprep.subr.mxu0 0.0
        %2124 = vmatpush1.msra.mxu0 0.0
        %2125 = vmatprep.subr.mxu0 0.0
        %2126 = vmatpush1.msra.mxu0 0.0
        %2127 = vmatprep.subr.mxu0 0.0
        %2128 = vmatpush1.msra.mxu0 0.0
        %2129 = vmatprep.subr.mxu0 0.0
        %2130 = vmatpush1.msra.mxu0 0.0
        %2131 = vmatprep.subr.mxu0 0.0
        %2132 = vmatpush1.msra.mxu0 0.0
        %2133 = vmatprep.subr.mxu0 0.0
        %2134 = vmatpush1.msra.mxu0 0.0
        %2135 = vmatprep.subr.mxu0 0.0
        %2136 = vmatpush1.msra.mxu0 0.0
        %2137 = vmatprep.subr.mxu0 0.0
        %2138 = vmatpush1.msra.mxu0 0.0
        %2139 = vmatprep.subr.mxu0 0.0
        %2140 = vmatpush1.msra.mxu0 0.0
        %2141 = vmatprep.subr.mxu0 0.0
        %2142 = vmatpush1.msra.mxu0 0.0
        %2143 = vmatprep.subr.mxu0 0.0
        %2144 = vmatpush1.msra.mxu0 0.0
        %2145 = vmatprep.subr.mxu0 0.0
        %2146 = vmatpush1.msra.mxu0 0.0
        %2147 = vmatprep.subr.mxu0 0.0
        %2148 = vmatpush1.msra.mxu0 0.0
        %2149 = vmatprep.subr.mxu0 0.0
        %2150 = vmatpush1.msra.mxu0 0.0
        %2151 = vmatprep.subr.mxu0 0.0
        %2152 = vmatpush1.msra.mxu0 0.0
        %2153 = vmatprep.subr.mxu0 0.0
        %2154 = vmatpush1.msra.mxu0 0.0
        %2155 = vmatprep.subr.mxu0 0.0
        %2156 = vmatpush1.msra.mxu0 0.0
        %2157 = vmatprep.subr.mxu0 0.0
        %2158 = vmatpush1.msra.mxu0 0.0
        %2159 = vmatprep.subr.mxu0 0.0
        %2160 = vmatpush1.msra.mxu0 0.0
        %2161 = vmatprep.subr.mxu0 0.0
        %2162 = vmatpush1.msra.mxu0 0.0
        %2163 = vmatprep.subr.mxu0 0.0
        %2164 = vmatpush1.msra.mxu0 0.0
        %2165 = vmatprep.subr.mxu0 0.0
        %2166 = vmatpush1.msra.mxu0 0.0
        %2167 = vmatprep.subr.mxu0 0.0
        %2168 = vmatpush1.msra.mxu0 0.0
        %2169 = vmatprep.subr.mxu0 0.0
        %2170 = vmatpush1.msra.mxu0 0.0
        %2171 = vmatprep.mubr.f32.mxu0 0.0
        %2172 = vmatmul.mubr.f32.gmra.mrb[0].mxu0 %v2105
        %v2173 = vpop.f32.mrb[0].mxu0
        %v2174 = vadd.f32 0.0, %v2173
        %v2175 = vpop.f32.mrb[0].mxu0
        %2176 = vdwg.mxu0
        %2177 = vrot.lane.b32.xlu0 %v2174, 16
        %v2178 = vpop.permute.xlu0 %2177
        %s2179 = scalar_lea.vmem %s1303, 8
        %v2180 = vld [vmem:[%s2179] sm:$0x1]
        %v2181 = vlaneseq
        %v2182 = vshrl.u32 %v2181, 7
        %v2183 = vsub.s32 0, %v2182
        %v2184 = vrot.slane %v2180, %v2183
        %v2185 = vmul.f32 %v2178, %v2184
        %v2186 = vadd.f32 %v2101, %v2185
        %v2187 = vld [vmem:[%s2179 + $0x1] sm:$0x1]
        %v2188 = vlaneseq
        %v2189 = vshrl.u32 %v2188, 7
        %v2190 = vsub.s32 0, %v2189
        %v2191 = vrot.slane %v2187, %v2190
        %v2192 = vmul.f32 %v2174, %v2191
        %v2193 = vadd.f32 %v2186, %v2192
        %2194 = vrot.lane.b32.xlu0 %v2174, 112
        %v2195 = vpop.permute.xlu0 %2194
        %v2196 = vld [vmem:[%s2179 + $0x2] sm:$0x1]
        %v2197 = vlaneseq
        %v2198 = vshrl.u32 %v2197, 7
        %v2199 = vsub.s32 0, %v2198
        %v2200 = vrot.slane %v2196, %v2199
        %v2201 = vmul.f32 %v2195, %v2200
        %v2202 = vadd.f32 %v2193, %v2201
        %v2203 = vmul.f32 %v2202, 0.5
        %v2204 = vmul.f32 %v2202, 0.70710677
        %v2205 = verf.f32.pop %v2204
        %v2206 = vadd.f32 %v2205, 1.0
        %v2207 = vmul.f32 %v2203, %v2206
        %v2208 = vmul.f32 %v2207, %v1826
        %v2209 = vadd.f32 %v2208, 0.0
        %v2210 = vld [vmem:[%s3] sm:$0xff]
        %v2212 = vsel %vm1902, %v2210, 0
        %2214 = vmatprep.subr.mxu0 0.0
        %2215 = vmatpush1.msra.mxu0 %v2207
        %2216 = vmatprep.subr.mxu0 0.0
        %2217 = vmatpush1.msra.mxu0 0.0
        %2218 = vmatprep.subr.mxu0 0.0
        %2219 = vmatpush1.msra.mxu0 0.0
        %2220 = vmatprep.subr.mxu0 0.0
        %2221 = vmatpush1.msra.mxu0 0.0
        %2222 = vmatprep.subr.mxu0 0.0
        %2223 = vmatpush1.msra.mxu0 0.0
        %2224 = vmatprep.subr.mxu0 0.0
        %2225 = vmatpush1.msra.mxu0 0.0
        %2226 = vmatprep.subr.mxu0 0.0
        %2227 = vmatpush1.msra.mxu0 0.0
        %2228 = vmatprep.subr.mxu0 0.0
        %2229 = vmatpush1.msra.mxu0 0.0
        %2230 = vmatprep.subr.mxu0 0.0
        %2231 = vmatpush1.msra.mxu0 0.0
        %2232 = vmatprep.subr.mxu0 0.0
        %2233 = vmatpush1.msra.mxu0 0.0
        %2234 = vmatprep.subr.mxu0 0.0
        %2235 = vmatpush1.msra.mxu0 0.0
        %2236 = vmatprep.subr.mxu0 0.0
        %2237 = vmatpush1.msra.mxu0 0.0
        %2238 = vmatprep.subr.mxu0 0.0
        %2239 = vmatpush1.msra.mxu0 0.0
        %2240 = vmatprep.subr.mxu0 0.0
        %2241 = vmatpush1.msra.mxu0 0.0
        %2242 = vmatprep.subr.mxu0 0.0
        %2243 = vmatpush1.msra.mxu0 0.0
        %2244 = vmatprep.subr.mxu0 0.0
        %2245 = vmatpush1.msra.mxu0 0.0
        %2246 = vmatprep.subr.mxu0 0.0
        %2247 = vmatpush1.msra.mxu0 0.0
        %2248 = vmatprep.subr.mxu0 0.0
        %2249 = vmatpush1.msra.mxu0 0.0
        %2250 = vmatprep.subr.mxu0 0.0
        %2251 = vmatpush1.msra.mxu0 0.0
        %2252 = vmatprep.subr.mxu0 0.0
        %2253 = vmatpush1.msra.mxu0 0.0
        %2254 = vmatprep.subr.mxu0 0.0
        %2255 = vmatpush1.msra.mxu0 0.0
        %2256 = vmatprep.subr.mxu0 0.0
        %2257 = vmatpush1.msra.mxu0 0.0
        %2258 = vmatprep.subr.mxu0 0.0
        %2259 = vmatpush1.msra.mxu0 0.0
        %2260 = vmatprep.subr.mxu0 0.0
        %2261 = vmatpush1.msra.mxu0 0.0
        %2262 = vmatprep.subr.mxu0 0.0
        %2263 = vmatpush1.msra.mxu0 0.0
        %2264 = vmatprep.subr.mxu0 0.0
        %2265 = vmatpush1.msra.mxu0 0.0
        %2266 = vmatprep.subr.mxu0 0.0
        %2267 = vmatpush1.msra.mxu0 0.0
        %2268 = vmatprep.subr.mxu0 0.0
        %2269 = vmatpush1.msra.mxu0 0.0
        %2270 = vmatprep.subr.mxu0 0.0
        %2271 = vmatpush1.msra.mxu0 0.0
        %2272 = vmatprep.subr.mxu0 0.0
        %2273 = vmatpush1.msra.mxu0 0.0
        %2274 = vmatprep.subr.mxu0 0.0
        %2275 = vmatpush1.msra.mxu0 0.0
        %2276 = vmatprep.subr.mxu0 0.0
        %2277 = vmatpush1.msra.mxu0 0.0
        %2278 = vmatprep.mubr.f32.mxu0 0.0
        %2279 = vmatmul.mubr.f32.gmra.mrb[0].mxu0 %v2212
        %v2280 = vpop.f32.mrb[0].mxu0
        %v2281 = vadd.f32 0.0, %v2280
        %v2282 = vpop.f32.mrb[0].mxu0
        %2283 = vdwg.mxu0
        %2284 = vrot.lane.b32.xlu0 %v2281, 32
        %v2285 = vpop.permute.xlu0 %2284
        %v2286 = vld [vmem:[%s1308] sm:$0x1]
        %v2287 = vlaneseq
        %v2288 = vshrl.u32 %v2287, 7
        %v2289 = vsub.s32 0, %v2288
        %v2290 = vrot.slane %v2286, %v2289
        %v2291 = vmul.f32 %v2285, %v2290
        %v2292 = vadd.f32 %v2291, 0.0
        %2293 = vrot.lane.b32.xlu0 %v2281, 16
        %v2294 = vpop.permute.xlu0 %2293
        %v2295 = vld [vmem:[%s1308 + $0x1] sm:$0x1]
        %v2296 = vlaneseq
        %v2297 = vshrl.u32 %v2296, 7
        %v2298 = vsub.s32 0, %v2297
        %v2299 = vrot.slane %v2295, %v2298
        %v2300 = vmul.f32 %v2294, %v2299
        %v2301 = vadd.f32 %v2292, %v2300
        %v2302 = vld [vmem:[%s1308 + $0x2] sm:$0x1]
        %v2303 = vlaneseq
        %v2304 = vshrl.u32 %v2303, 7
        %v2305 = vsub.s32 0, %v2304
        %v2306 = vrot.slane %v2302, %v2305
        %v2307 = vmul.f32 %v2281, %v2306
        %v2308 = vadd.f32 %v2301, %v2307
        %2309 = vrot.lane.b32.xlu0 %v2281, 112
        %v2310 = vpop.permute.xlu0 %2309
        %v2311 = vld [vmem:[%s1308 + $0x3] sm:$0x1]
        %v2312 = vlaneseq
        %v2313 = vshrl.u32 %v2312, 7
        %v2314 = vsub.s32 0, %v2313
        %v2315 = vrot.slane %v2311, %v2314
        %v2316 = vmul.f32 %v2310, %v2315
        %v2317 = vadd.f32 %v2308, %v2316
        %2318 = vrot.lane.b32.xlu0 %v2281, 96
        %v2319 = vpop.permute.xlu0 %2318
        %v2320 = vld [vmem:[%s1308 + $0x4] sm:$0x1]
        %v2321 = vlaneseq
        %v2322 = vshrl.u32 %v2321, 7
        %v2323 = vsub.s32 0, %v2322
        %v2324 = vrot.slane %v2320, %v2323
        %v2325 = vmul.f32 %v2319, %v2324
        %v2326 = vadd.f32 %v2317, %v2325
        %2327 = vmatprep.subr.mxu0 0.0
        %2328 = vmatpush1.msra.mxu0 %v2207
        %2329 = vmatprep.subr.mxu0 0.0
        %2330 = vmatpush1.msra.mxu0 0.0
        %2331 = vmatprep.subr.mxu0 0.0
        %2332 = vmatpush1.msra.mxu0 0.0
        %2333 = vmatprep.subr.mxu0 0.0
        %2334 = vmatpush1.msra.mxu0 0.0
        %2335 = vmatprep.subr.mxu0 0.0
        %2336 = vmatpush1.msra.mxu0 0.0
        %2337 = vmatprep.subr.mxu0 0.0
        %2338 = vmatpush1.msra.mxu0 0.0
        %2339 = vmatprep.subr.mxu0 0.0
        %2340 = vmatpush1.msra.mxu0 0.0
        %2341 = vmatprep.subr.mxu0 0.0
        %2342 = vmatpush1.msra.mxu0 0.0
        %2343 = vmatprep.subr.mxu0 0.0
        %2344 = vmatpush1.msra.mxu0 0.0
        %2345 = vmatprep.subr.mxu0 0.0
        %2346 = vmatpush1.msra.mxu0 0.0
        %2347 = vmatprep.subr.mxu0 0.0
        %2348 = vmatpush1.msra.mxu0 0.0
        %2349 = vmatprep.subr.mxu0 0.0
        %2350 = vmatpush1.msra.mxu0 0.0
        %2351 = vmatprep.subr.mxu0 0.0
        %2352 = vmatpush1.msra.mxu0 0.0
        %2353 = vmatprep.subr.mxu0 0.0
        %2354 = vmatpush1.msra.mxu0 0.0
        %2355 = vmatprep.subr.mxu0 0.0
        %2356 = vmatpush1.msra.mxu0 0.0
        %2357 = vmatprep.subr.mxu0 0.0
        %2358 = vmatpush1.msra.mxu0 0.0
        %2359 = vmatprep.subr.mxu0 0.0
        %2360 = vmatpush1.msra.mxu0 0.0
        %2361 = vmatprep.subr.mxu0 0.0
        %2362 = vmatpush1.msra.mxu0 0.0
        %2363 = vmatprep.subr.mxu0 0.0
        %2364 = vmatpush1.msra.mxu0 0.0
        %2365 = vmatprep.subr.mxu0 0.0
        %2366 = vmatpush1.msra.mxu0 0.0
        %2367 = vmatprep.subr.mxu0 0.0
        %2368 = vmatpush1.msra.mxu0 0.0
        %2369 = vmatprep.subr.mxu0 0.0
        %2370 = vmatpush1.msra.mxu0 0.0
        %2371 = vmatprep.subr.mxu0 0.0
        %2372 = vmatpush1.msra.mxu0 0.0
        %2373 = vmatprep.subr.mxu0 0.0
        %2374 = vmatpush1.msra.mxu0 0.0
        %2375 = vmatprep.subr.mxu0 0.0
        %2376 = vmatpush1.msra.mxu0 0.0
        %2377 = vmatprep.subr.mxu0 0.0
        %2378 = vmatpush1.msra.mxu0 0.0
        %2379 = vmatprep.subr.mxu0 0.0
        %2380 = vmatpush1.msra.mxu0 0.0
        %2381 = vmatprep.subr.mxu0 0.0
        %2382 = vmatpush1.msra.mxu0 0.0
        %2383 = vmatprep.subr.mxu0 0.0
        %2384 = vmatpush1.msra.mxu0 0.0
        %2385 = vmatprep.subr.mxu0 0.0
        %2386 = vmatpush1.msra.mxu0 0.0
        %2387 = vmatprep.subr.mxu0 0.0
        %2388 = vmatpush1.msra.mxu0 0.0
        %2389 = vmatprep.subr.mxu0 0.0
        %2390 = vmatpush1.msra.mxu0 0.0
        %2391 = vmatprep.mubr.f32.mxu0 0.0
        %2392 = vmatmul.mubr.f32.gmra.mrb[0].mxu0 %v1904
        %v2393 = vpop.f32.mrb[0].mxu0
        %v2394 = vadd.f32 0.0, %v2393
        %v2395 = vpop.f32.mrb[0].mxu0
        %2396 = vdwg.mxu0
        %2397 = vrot.lane.b32.xlu0 %v2394, 32
        %v2398 = vpop.permute.xlu0 %2397
        %s2399 = scalar_lea.vmem %s1308, 8
        %v2400 = vld [vmem:[%s2399] sm:$0x1]
        %v2401 = vlaneseq
        %v2402 = vshrl.u32 %v2401, 7
        %v2403 = vsub.s32 0, %v2402
        %v2404 = vrot.slane %v2400, %v2403
        %v2405 = vmul.f32 %v2398, %v2404
        %v2406 = vadd.f32 %v2326, %v2405
        %2407 = vrot.lane.b32.xlu0 %v2394, 16
        %v2408 = vpop.permute.xlu0 %2407
        %v2409 = vld [vmem:[%s2399 + $0x1] sm:$0x1]
        %v2410 = vlaneseq
        %v2411 = vshrl.u32 %v2410, 7
        %v2412 = vsub.s32 0, %v2411
        %v2413 = vrot.slane %v2409, %v2412
        %v2414 = vmul.f32 %v2408, %v2413
        %v2415 = vadd.f32 %v2406, %v2414
        %v2416 = vld [vmem:[%s2399 + $0x2] sm:$0x1]
        %v2417 = vlaneseq
        %v2418 = vshrl.u32 %v2417, 7
        %v2419 = vsub.s32 0, %v2418
        %v2420 = vrot.slane %v2416, %v2419
        %v2421 = vmul.f32 %v2394, %v2420
        %v2422 = vadd.f32 %v2415, %v2421
        %2423 = vrot.lane.b32.xlu0 %v2394, 112
        %v2424 = vpop.permute.xlu0 %2423
        %v2425 = vld [vmem:[%s2399 + $0x3] sm:$0x1]
        %v2426 = vlaneseq
        %v2427 = vshrl.u32 %v2426, 7
        %v2428 = vsub.s32 0, %v2427
        %v2429 = vrot.slane %v2425, %v2428
        %v2430 = vmul.f32 %v2424, %v2429
        %v2431 = vadd.f32 %v2422, %v2430
        %2432 = vrot.lane.b32.xlu0 %v2394, 96
        %v2433 = vpop.permute.xlu0 %2432
        %v2434 = vld [vmem:[%s2399 + $0x4] sm:$0x1]
        %v2435 = vlaneseq
        %v2436 = vshrl.u32 %v2435, 7
        %v2437 = vsub.s32 0, %v2436
        %v2438 = vrot.slane %v2434, %v2437
        %v2439 = vmul.f32 %v2433, %v2438
        %v2440 = vadd.f32 %v2431, %v2439
        %2441 = vmatprep.subr.mxu0 0.0
        %2442 = vmatpush1.msra.mxu0 %v2207
        %2443 = vmatprep.subr.mxu0 0.0
        %2444 = vmatpush1.msra.mxu0 0.0
        %2445 = vmatprep.subr.mxu0 0.0
        %2446 = vmatpush1.msra.mxu0 0.0
        %2447 = vmatprep.subr.mxu0 0.0
        %2448 = vmatpush1.msra.mxu0 0.0
        %2449 = vmatprep.subr.mxu0 0.0
        %2450 = vmatpush1.msra.mxu0 0.0
        %2451 = vmatprep.subr.mxu0 0.0
        %2452 = vmatpush1.msra.mxu0 0.0
        %2453 = vmatprep.subr.mxu0 0.0
        %2454 = vmatpush1.msra.mxu0 0.0
        %2455 = vmatprep.subr.mxu0 0.0
        %2456 = vmatpush1.msra.mxu0 0.0
        %2457 = vmatprep.subr.mxu0 0.0
        %2458 = vmatpush1.msra.mxu0 0.0
        %2459 = vmatprep.subr.mxu0 0.0
        %2460 = vmatpush1.msra.mxu0 0.0
        %2461 = vmatprep.subr.mxu0 0.0
        %2462 = vmatpush1.msra.mxu0 0.0
        %2463 = vmatprep.subr.mxu0 0.0
        %2464 = vmatpush1.msra.mxu0 0.0
        %2465 = vmatprep.subr.mxu0 0.0
        %2466 = vmatpush1.msra.mxu0 0.0
        %2467 = vmatprep.subr.mxu0 0.0
        %2468 = vmatpush1.msra.mxu0 0.0
        %2469 = vmatprep.subr.mxu0 0.0
        %2470 = vmatpush1.msra.mxu0 0.0
        %2471 = vmatprep.subr.mxu0 0.0
        %2472 = vmatpush1.msra.mxu0 0.0
        %2473 = vmatprep.subr.mxu0 0.0
        %2474 = vmatpush1.msra.mxu0 0.0
        %2475 = vmatprep.subr.mxu0 0.0
        %2476 = vmatpush1.msra.mxu0 0.0
        %2477 = vmatprep.subr.mxu0 0.0
        %2478 = vmatpush1.msra.mxu0 0.0
        %2479 = vmatprep.subr.mxu0 0.0
        %2480 = vmatpush1.msra.mxu0 0.0
        %2481 = vmatprep.subr.mxu0 0.0
        %2482 = vmatpush1.msra.mxu0 0.0
        %2483 = vmatprep.subr.mxu0 0.0
        %2484 = vmatpush1.msra.mxu0 0.0
        %2485 = vmatprep.subr.mxu0 0.0
        %2486 = vmatpush1.msra.mxu0 0.0
        %2487 = vmatprep.subr.mxu0 0.0
        %2488 = vmatpush1.msra.mxu0 0.0
        %2489 = vmatprep.subr.mxu0 0.0
        %2490 = vmatpush1.msra.mxu0 0.0
        %2491 = vmatprep.subr.mxu0 0.0
        %2492 = vmatpush1.msra.mxu0 0.0
        %2493 = vmatprep.subr.mxu0 0.0
        %2494 = vmatpush1.msra.mxu0 0.0
        %2495 = vmatprep.subr.mxu0 0.0
        %2496 = vmatpush1.msra.mxu0 0.0
        %2497 = vmatprep.subr.mxu0 0.0
        %2498 = vmatpush1.msra.mxu0 0.0
        %2499 = vmatprep.subr.mxu0 0.0
        %2500 = vmatpush1.msra.mxu0 0.0
        %2501 = vmatprep.subr.mxu0 0.0
        %2502 = vmatpush1.msra.mxu0 0.0
        %2503 = vmatprep.subr.mxu0 0.0
        %2504 = vmatpush1.msra.mxu0 0.0
        %2505 = vmatprep.mubr.f32.mxu0 0.0
        %2506 = vmatmul.mubr.f32.gmra.mrb[0].mxu0 %v2004
        %v2507 = vpop.f32.mrb[0].mxu0
        %v2508 = vadd.f32 0.0, %v2507
        %v2509 = vpop.f32.mrb[0].mxu0
        %2510 = vdwg.mxu0
        %2511 = vrot.lane.b32.xlu0 %v2508, 32
        %v2512 = vpop.permute.xlu0 %2511
        %s2513 = scalar_lea.vmem %s1308, 16
        %v2514 = vld [vmem:[%s2513] sm:$0x1]
        %v2515 = vlaneseq
        %v2516 = vshrl.u32 %v2515, 7
        %v2517 = vsub.s32 0, %v2516
        %v2518 = vrot.slane %v2514, %v2517
        %v2519 = vmul.f32 %v2512, %v2518
        %v2520 = vadd.f32 %v2440, %v2519
        %2521 = vrot.lane.b32.xlu0 %v2508, 16
        %v2522 = vpop.permute.xlu0 %2521
        %v2523 = vld [vmem:[%s2513 + $0x1] sm:$0x1]
        %v2524 = vlaneseq
        %v2525 = vshrl.u32 %v2524, 7
        %v2526 = vsub.s32 0, %v2525
        %v2527 = vrot.slane %v2523, %v2526
        %v2528 = vmul.f32 %v2522, %v2527
        %v2529 = vadd.f32 %v2520, %v2528
        %v2530 = vld [vmem:[%s2513 + $0x2] sm:$0x1]
        %v2531 = vlaneseq
        %v2532 = vshrl.u32 %v2531, 7
        %v2533 = vsub.s32 0, %v2532
        %v2534 = vrot.slane %v2530, %v2533
        %v2535 = vmul.f32 %v2508, %v2534
        %v2536 = vadd.f32 %v2529, %v2535
        %2537 = vrot.lane.b32.xlu0 %v2508, 112
        %v2538 = vpop.permute.xlu0 %2537
        %v2539 = vld [vmem:[%s2513 + $0x3] sm:$0x1]
        %v2540 = vlaneseq
        %v2541 = vshrl.u32 %v2540, 7
        %v2542 = vsub.s32 0, %v2541
        %v2543 = vrot.slane %v2539, %v2542
        %v2544 = vmul.f32 %v2538, %v2543
        %v2545 = vadd.f32 %v2536, %v2544
        %2546 = vrot.lane.b32.xlu0 %v2508, 96
        %v2547 = vpop.permute.xlu0 %2546
        %v2548 = vld [vmem:[%s2513 + $0x4] sm:$0x1]
        %v2549 = vlaneseq
        %v2550 = vshrl.u32 %v2549, 7
        %v2551 = vsub.s32 0, %v2550
        %v2552 = vrot.slane %v2548, %v2551
        %v2553 = vmul.f32 %v2547, %v2552
        %v2554 = vadd.f32 %v2545, %v2553
        %2555 = vmatprep.subr.mxu0 0.0
        %2556 = vmatpush1.msra.mxu0 %v2207
        %2557 = vmatprep.subr.mxu0 0.0
        %2558 = vmatpush1.msra.mxu0 0.0
        %2559 = vmatprep.subr.mxu0 0.0
        %2560 = vmatpush1.msra.mxu0 0.0
        %2561 = vmatprep.subr.mxu0 0.0
        %2562 = vmatpush1.msra.mxu0 0.0
        %2563 = vmatprep.subr.mxu0 0.0
        %2564 = vmatpush1.msra.mxu0 0.0
        %2565 = vmatprep.subr.mxu0 0.0
        %2566 = vmatpush1.msra.mxu0 0.0
        %2567 = vmatprep.subr.mxu0 0.0
        %2568 = vmatpush1.msra.mxu0 0.0
        %2569 = vmatprep.subr.mxu0 0.0
        %2570 = vmatpush1.msra.mxu0 0.0
        %2571 = vmatprep.subr.mxu0 0.0
        %2572 = vmatpush1.msra.mxu0 0.0
        %2573 = vmatprep.subr.mxu0 0.0
        %2574 = vmatpush1.msra.mxu0 0.0
        %2575 = vmatprep.subr.mxu0 0.0
        %2576 = vmatpush1.msra.mxu0 0.0
        %2577 = vmatprep.subr.mxu0 0.0
        %2578 = vmatpush1.msra.mxu0 0.0
        %2579 = vmatprep.subr.mxu0 0.0
        %2580 = vmatpush1.msra.mxu0 0.0
        %2581 = vmatprep.subr.mxu0 0.0
        %2582 = vmatpush1.msra.mxu0 0.0
        %2583 = vmatprep.subr.mxu0 0.0
        %2584 = vmatpush1.msra.mxu0 0.0
        %2585 = vmatprep.subr.mxu0 0.0
        %2586 = vmatpush1.msra.mxu0 0.0
        %2587 = vmatprep.subr.mxu0 0.0
        %2588 = vmatpush1.msra.mxu0 0.0
        %2589 = vmatprep.subr.mxu0 0.0
        %2590 = vmatpush1.msra.mxu0 0.0
        %2591 = vmatprep.subr.mxu0 0.0
        %2592 = vmatpush1.msra.mxu0 0.0
        %2593 = vmatprep.subr.mxu0 0.0
        %2594 = vmatpush1.msra.mxu0 0.0
        %2595 = vmatprep.subr.mxu0 0.0
        %2596 = vmatpush1.msra.mxu0 0.0
        %2597 = vmatprep.subr.mxu0 0.0
        %2598 = vmatpush1.msra.mxu0 0.0
        %2599 = vmatprep.subr.mxu0 0.0
        %2600 = vmatpush1.msra.mxu0 0.0
        %2601 = vmatprep.subr.mxu0 0.0
        %2602 = vmatpush1.msra.mxu0 0.0
        %2603 = vmatprep.subr.mxu0 0.0
        %2604 = vmatpush1.msra.mxu0 0.0
        %2605 = vmatprep.subr.mxu0 0.0
        %2606 = vmatpush1.msra.mxu0 0.0
        %2607 = vmatprep.subr.mxu0 0.0
        %2608 = vmatpush1.msra.mxu0 0.0
        %2609 = vmatprep.subr.mxu0 0.0
        %2610 = vmatpush1.msra.mxu0 0.0
        %2611 = vmatprep.subr.mxu0 0.0
        %2612 = vmatpush1.msra.mxu0 0.0
        %2613 = vmatprep.subr.mxu0 0.0
        %2614 = vmatpush1.msra.mxu0 0.0
        %2615 = vmatprep.subr.mxu0 0.0
        %2616 = vmatpush1.msra.mxu0 0.0
        %2617 = vmatprep.subr.mxu0 0.0
        %2618 = vmatpush1.msra.mxu0 0.0
        %2619 = vmatprep.mubr.f32.mxu0 0.0
        %2620 = vmatmul.mubr.f32.gmra.mrb[0].mxu0 %v2105
        %v2621 = vpop.f32.mrb[0].mxu0
        %v2622 = vadd.f32 0.0, %v2621
        %v2623 = vpop.f32.mrb[0].mxu0
        %2624 = vdwg.mxu0
        %2625 = vrot.lane.b32.xlu0 %v2622, 32
        %v2626 = vpop.permute.xlu0 %2625
        %s2627 = scalar_lea.vmem %s1308, 24
        %v2628 = vld [vmem:[%s2627] sm:$0x1]
        %v2629 = vlaneseq
        %v2630 = vshrl.u32 %v2629, 7
        %v2631 = vsub.s32 0, %v2630
        %v2632 = vrot.slane %v2628, %v2631
        %v2633 = vmul.f32 %v2626, %v2632
        %v2634 = vadd.f32 %v2554, %v2633
        %2635 = vrot.lane.b32.xlu0 %v2622, 16
        %v2636 = vpop.permute.xlu0 %2635
        %v2637 = vld [vmem:[%s2627 + $0x1] sm:$0x1]
        %v2638 = vlaneseq
        %v2639 = vshrl.u32 %v2638, 7
        %v2640 = vsub.s32 0, %v2639
        %v2641 = vrot.slane %v2637, %v2640
        %v2642 = vmul.f32 %v2636, %v2641
        %v2643 = vadd.f32 %v2634, %v2642
        %v2644 = vld [vmem:[%s2627 + $0x2] sm:$0x1]
        %v2645 = vlaneseq
        %v2646 = vshrl.u32 %v2645, 7
        %v2647 = vsub.s32 0, %v2646
        %v2648 = vrot.slane %v2644, %v2647
        %v2649 = vmul.f32 %v2622, %v2648
        %v2650 = vadd.f32 %v2643, %v2649
        %2651 = vrot.lane.b32.xlu0 %v2622, 112
        %v2652 = vpop.permute.xlu0 %2651
        %v2653 = vld [vmem:[%s2627 + $0x3] sm:$0x1]
        %v2654 = vlaneseq
        %v2655 = vshrl.u32 %v2654, 7
        %v2656 = vsub.s32 0, %v2655
        %v2657 = vrot.slane %v2653, %v2656
        %v2658 = vmul.f32 %v2652, %v2657
        %v2659 = vadd.f32 %v2650, %v2658
        %2660 = vrot.lane.b32.xlu0 %v2622, 96
        %v2661 = vpop.permute.xlu0 %2660
        %v2662 = vld [vmem:[%s2627 + $0x4] sm:$0x1]
        %v2663 = vlaneseq
        %v2664 = vshrl.u32 %v2663, 7
        %v2665 = vsub.s32 0, %v2664
        %v2666 = vrot.slane %v2662, %v2665
        %v2667 = vmul.f32 %v2661, %v2666
        %v2668 = vadd.f32 %v2659, %v2667
        %s2669 = scalar_lea.vmem %s3, 32
        %v2670 = vld [vmem:[%s2669] sm:$0xff]
        %v2672 = vsel %vm1902, %v2670, 0
        %2674 = vmatprep.subr.mxu0 0.0
        %2675 = vmatpush1.msra.mxu0 %v2207
        %2676 = vmatprep.subr.mxu0 0.0
        %2677 = vmatpush1.msra.mxu0 0.0
        %2678 = vmatprep.subr.mxu0 0.0
        %2679 = vmatpush1.msra.mxu0 0.0
        %2680 = vmatprep.subr.mxu0 0.0
        %2681 = vmatpush1.msra.mxu0 0.0
        %2682 = vmatprep.subr.mxu0 0.0
        %2683 = vmatpush1.msra.mxu0 0.0
        %2684 = vmatprep.subr.mxu0 0.0
        %2685 = vmatpush1.msra.mxu0 0.0
        %2686 = vmatprep.subr.mxu0 0.0
        %2687 = vmatpush1.msra.mxu0 0.0
        %2688 = vmatprep.subr.mxu0 0.0
        %2689 = vmatpush1.msra.mxu0 0.0
        %2690 = vmatprep.subr.mxu0 0.0
        %2691 = vmatpush1.msra.mxu0 0.0
        %2692 = vmatprep.subr.mxu0 0.0
        %2693 = vmatpush1.msra.mxu0 0.0
        %2694 = vmatprep.subr.mxu0 0.0
        %2695 = vmatpush1.msra.mxu0 0.0
        %2696 = vmatprep.subr.mxu0 0.0
        %2697 = vmatpush1.msra.mxu0 0.0
        %2698 = vmatprep.subr.mxu0 0.0
        %2699 = vmatpush1.msra.mxu0 0.0
        %2700 = vmatprep.subr.mxu0 0.0
        %2701 = vmatpush1.msra.mxu0 0.0
        %2702 = vmatprep.subr.mxu0 0.0
        %2703 = vmatpush1.msra.mxu0 0.0
        %2704 = vmatprep.subr.mxu0 0.0
        %2705 = vmatpush1.msra.mxu0 0.0
        %2706 = vmatprep.subr.mxu0 0.0
        %2707 = vmatpush1.msra.mxu0 0.0
        %2708 = vmatprep.subr.mxu0 0.0
        %2709 = vmatpush1.msra.mxu0 0.0
        %2710 = vmatprep.subr.mxu0 0.0
        %2711 = vmatpush1.msra.mxu0 0.0
        %2712 = vmatprep.subr.mxu0 0.0
        %2713 = vmatpush1.msra.mxu0 0.0
        %2714 = vmatprep.subr.mxu0 0.0
        %2715 = vmatpush1.msra.mxu0 0.0
        %2716 = vmatprep.subr.mxu0 0.0
        %2717 = vmatpush1.msra.mxu0 0.0
        %2718 = vmatprep.subr.mxu0 0.0
        %2719 = vmatpush1.msra.mxu0 0.0
        %2720 = vmatprep.subr.mxu0 0.0
        %2721 = vmatpush1.msra.mxu0 0.0
        %2722 = vmatprep.subr.mxu0 0.0
        %2723 = vmatpush1.msra.mxu0 0.0
        %2724 = vmatprep.subr.mxu0 0.0
        %2725 = vmatpush1.msra.mxu0 0.0
        %2726 = vmatprep.subr.mxu0 0.0
        %2727 = vmatpush1.msra.mxu0 0.0
        %2728 = vmatprep.subr.mxu0 0.0
        %2729 = vmatpush1.msra.mxu0 0.0
        %2730 = vmatprep.subr.mxu0 0.0
        %2731 = vmatpush1.msra.mxu0 0.0
        %2732 = vmatprep.subr.mxu0 0.0
        %2733 = vmatpush1.msra.mxu0 0.0
        %2734 = vmatprep.subr.mxu0 0.0
        %2735 = vmatpush1.msra.mxu0 0.0
        %2736 = vmatprep.subr.mxu0 0.0
        %2737 = vmatpush1.msra.mxu0 0.0
        %2738 = vmatprep.mubr.f32.mxu0 0.0
        %2739 = vmatmul.mubr.f32.gmra.mrb[0].mxu0 %v2672
        %v2740 = vpop.f32.mrb[0].mxu0
        %v2741 = vadd.f32 0.0, %v2740
        %v2742 = vpop.f32.mrb[0].mxu0
        %2743 = vdwg.mxu0
        %2744 = vrot.lane.b32.xlu0 %v2741, 32
        %v2745 = vpop.permute.xlu0 %2744
        %s2746 = scalar_lea.vmem %s1308, 32
        %v2747 = vld [vmem:[%s2746] sm:$0x1]
        %v2748 = vlaneseq
        %v2749 = vshrl.u32 %v2748, 7
        %v2750 = vsub.s32 0, %v2749
        %v2751 = vrot.slane %v2747, %v2750
        %v2752 = vmul.f32 %v2745, %v2751
        %v2753 = vadd.f32 %v2668, %v2752
        %2754 = vrot.lane.b32.xlu0 %v2741, 16
        %v2755 = vpop.permute.xlu0 %2754
        %v2756 = vld [vmem:[%s2746 + $0x1] sm:$0x1]
        %v2757 = vlaneseq
        %v2758 = vshrl.u32 %v2757, 7
        %v2759 = vsub.s32 0, %v2758
        %v2760 = vrot.slane %v2756, %v2759
        %v2761 = vmul.f32 %v2755, %v2760
        %v2762 = vadd.f32 %v2753, %v2761
        %v2763 = vld [vmem:[%s2746 + $0x2] sm:$0x1]
        %v2764 = vlaneseq
        %v2765 = vshrl.u32 %v2764, 7
        %v2766 = vsub.s32 0, %v2765
        %v2767 = vrot.slane %v2763, %v2766
        %v2768 = vmul.f32 %v2741, %v2767
        %v2769 = vadd.f32 %v2762, %v2768
        %2770 = vrot.lane.b32.xlu0 %v2741, 112
        %v2771 = vpop.permute.xlu0 %2770
        %v2772 = vld [vmem:[%s2746 + $0x3] sm:$0x1]
        %v2773 = vlaneseq
        %v2774 = vshrl.u32 %v2773, 7
        %v2775 = vsub.s32 0, %v2774
        %v2776 = vrot.slane %v2772, %v2775
        %v2777 = vmul.f32 %v2771, %v2776
        %v2778 = vadd.f32 %v2769, %v2777
        %2779 = vrot.lane.b32.xlu0 %v2741, 96
        %v2780 = vpop.permute.xlu0 %2779
        %v2781 = vld [vmem:[%s2746 + $0x4] sm:$0x1]
        %v2782 = vlaneseq
        %v2783 = vshrl.u32 %v2782, 7
        %v2784 = vsub.s32 0, %v2783
        %v2785 = vrot.slane %v2781, %v2784
        %v2786 = vmul.f32 %v2780, %v2785
        %v2787 = vadd.f32 %v2778, %v2786
        %v2788 = vmul.f32 %v2787, 0.5
        %v2789 = vmul.f32 %v2787, 0.70710677
        %v2790 = verf.f32.pop %v2789
        %v2791 = vadd.f32 %v2790, 1.0
        %v2792 = vmul.f32 %v2788, %v2791
        %v2793 = vmul.f32 %v2792, %v1828
        %v2794 = vadd.f32 %v2209, %v2793
        %v2795 = vld [vmem:[#allocation5] sm:$0xff]
        %v2796 = vld [vmem:[#allocation5 + $0x8] sm:$0xff]
        %v2797 = vld [vmem:[#allocation5 + $0x10] sm:$0xff]
        %v2798 = vld [vmem:[#allocation5 + $0x18] sm:$0xff]
        %v2799 = vld [vmem:[#allocation5 + $0x20] sm:$0xff]
        %v2800 = vld [vmem:[#allocation5 + $0x28] sm:$0xff]
        %v2801 = vld [vmem:[#allocation5 + $0x30] sm:$0xff]
        %v2802 = vld [vmem:[#allocation5 + $0x38] sm:$0xff]
        %v2803 = vld [vmem:[#allocation5 + $0x40] sm:$0xff]
        %v2804 = vld [vmem:[#allocation5 + $0x48] sm:$0xff]
        %v2805 = vld [vmem:[#allocation5 + $0x50] sm:$0xff]
        %v2806 = vld [vmem:[#allocation5 + $0x58] sm:$0xff]
        %v2807 = vld [vmem:[#allocation5 + $0x60] sm:$0xff]
        %v2808 = vld [vmem:[#allocation5 + $0x68] sm:$0xff]
        %v2809 = vld [vmem:[#allocation5 + $0x70] sm:$0xff]
        %v2810 = vld [vmem:[#allocation5 + $0x78] sm:$0xff]
        %2811 = vmatprep.subr.mxu0 0.0
        %2812 = vmatpush1.msra.mxu0 %v2795
        %2813 = vmatprep.subr.mxu0 0.0
        %2814 = vmatpush1.msra.mxu0 %v2796
        %2815 = vmatprep.subr.mxu0 0.0
        %2816 = vmatpush1.msra.mxu0 %v2797
        %2817 = vmatprep.subr.mxu0 0.0
        %2818 = vmatpush1.msra.mxu0 %v2798
        %2819 = vmatprep.subr.mxu0 0.0
        %2820 = vmatpush1.msra.mxu0 %v2799
        %2821 = vmatprep.subr.mxu0 0.0
        %2822 = vmatpush1.msra.mxu0 %v2800
        %2823 = vmatprep.subr.mxu0 0.0
        %2824 = vmatpush1.msra.mxu0 %v2801
        %2825 = vmatprep.subr.mxu0 0.0
        %2826 = vmatpush1.msra.mxu0 %v2802
        %2827 = vmatprep.subr.mxu0 0.0
        %2828 = vmatpush1.msra.mxu0 %v2803
        %2829 = vmatprep.subr.mxu0 0.0
        %2830 = vmatpush1.msra.mxu0 %v2804
        %2831 = vmatprep.subr.mxu0 0.0
        %2832 = vmatpush1.msra.mxu0 %v2805
        %2833 = vmatprep.subr.mxu0 0.0
        %2834 = vmatpush1.msra.mxu0 %v2806
        %2835 = vmatprep.subr.mxu0 0.0
        %2836 = vmatpush1.msra.mxu0 %v2807
        %2837 = vmatprep.subr.mxu0 0.0
        %2838 = vmatpush1.msra.mxu0 %v2808
        %2839 = vmatprep.subr.mxu0 0.0
        %2840 = vmatpush1.msra.mxu0 %v2809
        %2841 = vmatprep.subr.mxu0 0.0
        %2842 = vmatpush1.msra.mxu0 %v2810
        %2843 = vmatprep.subr.mxu0 0.0
        %2844 = vmatpush1.msra.mxu0 0.0
        %2845 = vmatprep.subr.mxu0 0.0
        %2846 = vmatpush1.msra.mxu0 0.0
        %2847 = vmatprep.subr.mxu0 0.0
        %2848 = vmatpush1.msra.mxu0 0.0
        %2849 = vmatprep.subr.mxu0 0.0
        %2850 = vmatpush1.msra.mxu0 0.0
        %2851 = vmatprep.subr.mxu0 0.0
        %2852 = vmatpush1.msra.mxu0 0.0
        %2853 = vmatprep.subr.mxu0 0.0
        %2854 = vmatpush1.msra.mxu0 0.0
        %2855 = vmatprep.subr.mxu0 0.0
        %2856 = vmatpush1.msra.mxu0 0.0
        %2857 = vmatprep.subr.mxu0 0.0
        %2858 = vmatpush1.msra.mxu0 0.0
        %2859 = vmatprep.subr.mxu0 0.0
        %2860 = vmatpush1.msra.mxu0 0.0
        %2861 = vmatprep.subr.mxu0 0.0
        %2862 = vmatpush1.msra.mxu0 0.0
        %2863 = vmatprep.subr.mxu0 0.0
        %2864 = vmatpush1.msra.mxu0 0.0
        %2865 = vmatprep.subr.mxu0 0.0
        %2866 = vmatpush1.msra.mxu0 0.0
        %2867 = vmatprep.subr.mxu0 0.0
        %2868 = vmatpush1.msra.mxu0 0.0
        %2869 = vmatprep.subr.mxu0 0.0
        %2870 = vmatpush1.msra.mxu0 0.0
        %2871 = vmatprep.subr.mxu0 0.0
        %2872 = vmatpush1.msra.mxu0 0.0
        %2873 = vmatprep.subr.mxu0 0.0
        %2874 = vmatpush1.msra.mxu0 0.0
        %2875 = vmatprep.mubr.f32.mxu0 0.0
        %2876 = vmatmul.mubr.f32.gmra.mrb[0].mxu0 %v2792
        %v2877 = vpop.f32.mrb[0].mxu0
        %v2878 = vadd.f32 0.0, %v2877
        %v2879 = vpop.f32.mrb[0].mxu0
        %2880 = vdwg.mxu0
        %v2881 = vrot.slane %v2878, 4
        %v2882 = vadd.f32 %v2878, %v2881
        %v2883 = vrot.slane %v2882, 2
        %v2884 = vadd.f32 %v2882, %v2883
        %v2885 = vrot.slane %v2884, 1
        %v2886 = vadd.f32 %v2884, %v2885
        %v2887 = vrcp.pop 8.0
        %v2888 = vmul.f32 %v2886, %v2887
        %v2889 = vmul.f32 %v2888, 0.5
        %v2890 = vmul.f32 %v2888, 0.70710677
        %v2891 = verf.f32.pop %v2890
        %v2892 = vadd.f32 %v2891, 1.0
        %v2893 = vmul.f32 %v2889, %v2892
        %v2894 = vmul.f32 %v2893, %v1897
        %v2895 = vadd.f32 %v2794, %v2894
        %v2896 = vld [vmem:[%s1111] sm:$0xff]
        %v2897 = vld [vmem:[%s1111 + $0x8] sm:$0xff]
        %v2898 = vld [vmem:[%s1111 + $0x10] sm:$0xff]
        %v2899 = vld [vmem:[%s1111 + $0x18] sm:$0xff]
        %v2900 = vld [vmem:[%s1111 + $0x20] sm:$0xff]
        %v2901 = vld [vmem:[%s1111 + $0x28] sm:$0xff]
        %v2902 = vld [vmem:[%s1111 + $0x30] sm:$0xff]
        %v2903 = vld [vmem:[%s1111 + $0x38] sm:$0xff]
        %v2904 = vld [vmem:[%s1111 + $0x40] sm:$0xff]
        %v2905 = vld [vmem:[%s1111 + $0x48] sm:$0xff]
        %v2906 = vld [vmem:[%s1111 + $0x50] sm:$0xff]
        %v2907 = vld [vmem:[%s1111 + $0x58] sm:$0xff]
        %v2908 = vld [vmem:[%s1111 + $0x60] sm:$0xff]
        %v2909 = vld [vmem:[%s1111 + $0x68] sm:$0xff]
        %v2910 = vld [vmem:[%s1111 + $0x70] sm:$0xff]
        %v2911 = vld [vmem:[%s1111 + $0x78] sm:$0xff]
        %v2912 = vld [vmem:[%s1119] sm:$0x1]
        %v2914 = vlaneseq
        %v2915 = vshrl.u32 %v2914, 7
        %v2916 = vsub.s32 0, %v2915
        %v2917 = vrot.slane %v2912, %v2916
        %2919 = vmatprep.subr.mxu0 0.0
        %2920 = vmatpush1.msra.mxu0 %v2896
        %2921 = vmatprep.subr.mxu0 0.0
        %2922 = vmatpush1.msra.mxu0 %v2897
        %2923 = vmatprep.subr.mxu0 0.0
        %2924 = vmatpush1.msra.mxu0 %v2898
        %2925 = vmatprep.subr.mxu0 0.0
        %2926 = vmatpush1.msra.mxu0 %v2899
        %2927 = vmatprep.subr.mxu0 0.0
        %2928 = vmatpush1.msra.mxu0 %v2900
        %2929 = vmatprep.subr.mxu0 0.0
        %2930 = vmatpush1.msra.mxu0 %v2901
        %2931 = vmatprep.subr.mxu0 0.0
        %2932 = vmatpush1.msra.mxu0 %v2902
        %2933 = vmatprep.subr.mxu0 0.0
        %2934 = vmatpush1.msra.mxu0 %v2903
        %2935 = vmatprep.subr.mxu0 0.0
        %2936 = vmatpush1.msra.mxu0 %v2904
        %2937 = vmatprep.subr.mxu0 0.0
        %2938 = vmatpush1.msra.mxu0 %v2905
        %2939 = vmatprep.subr.mxu0 0.0
        %2940 = vmatpush1.msra.mxu0 %v2906
        %2941 = vmatprep.subr.mxu0 0.0
        %2942 = vmatpush1.msra.mxu0 %v2907
        %2943 = vmatprep.subr.mxu0 0.0
        %2944 = vmatpush1.msra.mxu0 %v2908
        %2945 = vmatprep.subr.mxu0 0.0
        %2946 = vmatpush1.msra.mxu0 %v2909
        %2947 = vmatprep.subr.mxu0 0.0
        %2948 = vmatpush1.msra.mxu0 %v2910
        %2949 = vmatprep.subr.mxu0 0.0
        %2950 = vmatpush1.msra.mxu0 %v2911
        %2951 = vmatprep.subr.mxu0 0.0
        %2952 = vmatpush1.msra.mxu0 0.0
        %2953 = vmatprep.subr.mxu0 0.0
        %2954 = vmatpush1.msra.mxu0 0.0
        %2955 = vmatprep.subr.mxu0 0.0
        %2956 = vmatpush1.msra.mxu0 0.0
        %2957 = vmatprep.subr.mxu0 0.0
        %2958 = vmatpush1.msra.mxu0 0.0
        %2959 = vmatprep.subr.mxu0 0.0
        %2960 = vmatpush1.msra.mxu0 0.0
        %2961 = vmatprep.subr.mxu0 0.0
        %2962 = vmatpush1.msra.mxu0 0.0
        %2963 = vmatprep.subr.mxu0 0.0
        %2964 = vmatpush1.msra.mxu0 0.0
        %2965 = vmatprep.subr.mxu0 0.0
        %2966 = vmatpush1.msra.mxu0 0.0
        %2967 = vmatprep.subr.mxu0 0.0
        %2968 = vmatpush1.msra.mxu0 0.0
        %2969 = vmatprep.subr.mxu0 0.0
        %2970 = vmatpush1.msra.mxu0 0.0
        %2971 = vmatprep.subr.mxu0 0.0
        %2972 = vmatpush1.msra.mxu0 0.0
        %2973 = vmatprep.subr.mxu0 0.0
        %2974 = vmatpush1.msra.mxu0 0.0
        %2975 = vmatprep.subr.mxu0 0.0
        %2976 = vmatpush1.msra.mxu0 0.0
        %2977 = vmatprep.subr.mxu0 0.0
        %2978 = vmatpush1.msra.mxu0 0.0
        %2979 = vmatprep.subr.mxu0 0.0
        %2980 = vmatpush1.msra.mxu0 0.0
        %2981 = vmatprep.subr.mxu0 0.0
        %2982 = vmatpush1.msra.mxu0 0.0
        %2983 = vmatprep.mubr.f32.mxu0 0.0
        %2984 = vmatmul.mubr.f32.gmra.mrb[0].mxu0 %v2895
        %v2985 = vpop.f32.mrb[0].mxu0
        %v2986 = vadd.f32 %v2917, %v2985
        %v2987 = vpop.f32.mrb[0].mxu0
        %2988 = vdwg.mxu0
        %v2989 = vmul.f32 %v1598, %v2986
        %v2990 = vld [vmem:[%s1128] sm:$0xff]
        %v2991 = vld [vmem:[%s1128 + $0x8] sm:$0xff]
        %v2992 = vld [vmem:[%s1128 + $0x10] sm:$0xff]
        %v2993 = vld [vmem:[%s1128 + $0x18] sm:$0xff]
        %v2994 = vld [vmem:[%s1128 + $0x20] sm:$0xff]
        %v2995 = vld [vmem:[%s1128 + $0x28] sm:$0xff]
        %v2996 = vld [vmem:[%s1128 + $0x30] sm:$0xff]
        %v2997 = vld [vmem:[%s1128 + $0x38] sm:$0xff]
        %v2998 = vld [vmem:[%s1128 + $0x40] sm:$0xff]
        %v2999 = vld [vmem:[%s1128 + $0x48] sm:$0xff]
        %v3000 = vld [vmem:[%s1128 + $0x50] sm:$0xff]
        %v3001 = vld [vmem:[%s1128 + $0x58] sm:$0xff]
        %v3002 = vld [vmem:[%s1128 + $0x60] sm:$0xff]
        %v3003 = vld [vmem:[%s1128 + $0x68] sm:$0xff]
        %v3004 = vld [vmem:[%s1128 + $0x70] sm:$0xff]
        %v3005 = vld [vmem:[%s1128 + $0x78] sm:$0xff]
        %v3006 = vld [vmem:[%s1311] sm:$0x1]
        %v3008 = vlaneseq
        %v3009 = vshrl.u32 %v3008, 7
        %v3010 = vsub.s32 0, %v3009
        %v3011 = vrot.slane %v3006, %v3010
        %3013 = vmatprep.subr.mxu0 0.0
        %3014 = vmatpush1.msra.mxu0 %v2990
        %3015 = vmatprep.subr.mxu0 0.0
        %3016 = vmatpush1.msra.mxu0 %v2991
        %3017 = vmatprep.subr.mxu0 0.0
        %3018 = vmatpush1.msra.mxu0 %v2992
        %3019 = vmatprep.subr.mxu0 0.0
        %3020 = vmatpush1.msra.mxu0 %v2993
        %3021 = vmatprep.subr.mxu0 0.0
        %3022 = vmatpush1.msra.mxu0 %v2994
        %3023 = vmatprep.subr.mxu0 0.0
        %3024 = vmatpush1.msra.mxu0 %v2995
        %3025 = vmatprep.subr.mxu0 0.0
        %3026 = vmatpush1.msra.mxu0 %v2996
        %3027 = vmatprep.subr.mxu0 0.0
        %3028 = vmatpush1.msra.mxu0 %v2997
        %3029 = vmatprep.subr.mxu0 0.0
        %3030 = vmatpush1.msra.mxu0 %v2998
        %3031 = vmatprep.subr.mxu0 0.0
        %3032 = vmatpush1.msra.mxu0 %v2999
        %3033 = vmatprep.subr.mxu0 0.0
        %3034 = vmatpush1.msra.mxu0 %v3000
        %3035 = vmatprep.subr.mxu0 0.0
        %3036 = vmatpush1.msra.mxu0 %v3001
        %3037 = vmatprep.subr.mxu0 0.0
        %3038 = vmatpush1.msra.mxu0 %v3002
        %3039 = vmatprep.subr.mxu0 0.0
        %3040 = vmatpush1.msra.mxu0 %v3003
        %3041 = vmatprep.subr.mxu0 0.0
        %3042 = vmatpush1.msra.mxu0 %v3004
        %3043 = vmatprep.subr.mxu0 0.0
        %3044 = vmatpush1.msra.mxu0 %v3005
        %3045 = vmatprep.subr.mxu0 0.0
        %3046 = vmatpush1.msra.mxu0 0.0
        %3047 = vmatprep.subr.mxu0 0.0
        %3048 = vmatpush1.msra.mxu0 0.0
        %3049 = vmatprep.subr.mxu0 0.0
        %3050 = vmatpush1.msra.mxu0 0.0
        %3051 = vmatprep.subr.mxu0 0.0
        %3052 = vmatpush1.msra.mxu0 0.0
        %3053 = vmatprep.subr.mxu0 0.0
        %3054 = vmatpush1.msra.mxu0 0.0
        %3055 = vmatprep.subr.mxu0 0.0
        %3056 = vmatpush1.msra.mxu0 0.0
        %3057 = vmatprep.subr.mxu0 0.0
        %3058 = vmatpush1.msra.mxu0 0.0
        %3059 = vmatprep.subr.mxu0 0.0
        %3060 = vmatpush1.msra.mxu0 0.0
        %3061 = vmatprep.subr.mxu0 0.0
        %3062 = vmatpush1.msra.mxu0 0.0
        %3063 = vmatprep.subr.mxu0 0.0
        %3064 = vmatpush1.msra.mxu0 0.0
        %3065 = vmatprep.subr.mxu0 0.0
        %3066 = vmatpush1.msra.mxu0 0.0
        %3067 = vmatprep.subr.mxu0 0.0
        %3068 = vmatpush1.msra.mxu0 0.0
        %3069 = vmatprep.subr.mxu0 0.0
        %3070 = vmatpush1.msra.mxu0 0.0
        %3071 = vmatprep.subr.mxu0 0.0
        %3072 = vmatpush1.msra.mxu0 0.0
        %3073 = vmatprep.subr.mxu0 0.0
        %3074 = vmatpush1.msra.mxu0 0.0
        %3075 = vmatprep.subr.mxu0 0.0
        %3076 = vmatpush1.msra.mxu0 0.0
        %3077 = vmatprep.mubr.f32.mxu0 0.0
        %3078 = vmatmul.mubr.f32.gmra.mrb[0].mxu0 %v2989
        %v3079 = vpop.f32.mrb[0].mxu0
        %v3080 = vadd.f32 %v3011, %v3079
        %v3081 = vpop.f32.mrb[0].mxu0
        %3082 = vdwg.mxu0
        %v3083 = vadd.f32 %v1331, %v3080
        %v3084 = vld [vmem:[%s1314] sm:$0x1]
        %v3085 = vld [vmem:[%s1317] sm:$0x1]
        %3086 = vmatprep.subr.mxu0 0.0
        %3087 = vmatpush1.msra.mxu0 %v1332
        %3088 = vmatprep.subr.mxu0 0.0
        %3089 = vmatpush1.msra.mxu0 %v1333
        %3090 = vmatprep.subr.mxu0 0.0
        %3091 = vmatpush1.msra.mxu0 %v1334
        %3092 = vmatprep.subr.mxu0 0.0
        %3093 = vmatpush1.msra.mxu0 %v1335
        %3094 = vmatprep.subr.mxu0 0.0
        %3095 = vmatpush1.msra.mxu0 %v1336
        %3096 = vmatprep.subr.mxu0 0.0
        %3097 = vmatpush1.msra.mxu0 %v1337
        %3098 = vmatprep.subr.mxu0 0.0
        %3099 = vmatpush1.msra.mxu0 %v1338
        %3100 = vmatprep.subr.mxu0 0.0
        %3101 = vmatpush1.msra.mxu0 %v1339
        %3102 = vmatprep.subr.mxu0 0.0
        %3103 = vmatpush1.msra.mxu0 %v1340
        %3104 = vmatprep.subr.mxu0 0.0
        %3105 = vmatpush1.msra.mxu0 %v1341
        %3106 = vmatprep.subr.mxu0 0.0
        %3107 = vmatpush1.msra.mxu0 %v1342
        %3108 = vmatprep.subr.mxu0 0.0
        %3109 = vmatpush1.msra.mxu0 %v1343
        %3110 = vmatprep.subr.mxu0 0.0
        %3111 = vmatpush1.msra.mxu0 %v1344
        %3112 = vmatprep.subr.mxu0 0.0
        %3113 = vmatpush1.msra.mxu0 %v1345
        %3114 = vmatprep.subr.mxu0 0.0
        %3115 = vmatpush1.msra.mxu0 %v1346
        %3116 = vmatprep.subr.mxu0 0.0
        %3117 = vmatpush1.msra.mxu0 %v1347
        %3118 = vmatprep.subr.mxu0 0.0
        %3119 = vmatpush1.msra.mxu0 0.0
        %3120 = vmatprep.subr.mxu0 0.0
        %3121 = vmatpush1.msra.mxu0 0.0
        %3122 = vmatprep.subr.mxu0 0.0
        %3123 = vmatpush1.msra.mxu0 0.0
        %3124 = vmatprep.subr.mxu0 0.0
        %3125 = vmatpush1.msra.mxu0 0.0
        %3126 = vmatprep.subr.mxu0 0.0
        %3127 = vmatpush1.msra.mxu0 0.0
        %3128 = vmatprep.subr.mxu0 0.0
        %3129 = vmatpush1.msra.mxu0 0.0
        %3130 = vmatprep.subr.mxu0 0.0
        %3131 = vmatpush1.msra.mxu0 0.0
        %3132 = vmatprep.subr.mxu0 0.0
        %3133 = vmatpush1.msra.mxu0 0.0
        %3134 = vmatprep.subr.mxu0 0.0
        %3135 = vmatpush1.msra.mxu0 0.0
        %3136 = vmatprep.subr.mxu0 0.0
        %3137 = vmatpush1.msra.mxu0 0.0
        %3138 = vmatprep.subr.mxu0 0.0
        %3139 = vmatpush1.msra.mxu0 0.0
        %3140 = vmatprep.subr.mxu0 0.0
        %3141 = vmatpush1.msra.mxu0 0.0
        %3142 = vmatprep.subr.mxu0 0.0
        %3143 = vmatpush1.msra.mxu0 0.0
        %3144 = vmatprep.subr.mxu0 0.0
        %3145 = vmatpush1.msra.mxu0 0.0
        %3146 = vmatprep.subr.mxu0 0.0
        %3147 = vmatpush1.msra.mxu0 0.0
        %3148 = vmatprep.subr.mxu0 0.0
        %3149 = vmatpush1.msra.mxu0 0.0
        %3150 = vmatprep.mubr.f32.mxu0 0.0
        %3151 = vmatmul.mubr.f32.gmra.mrb[0].mxu0 %v3083
        %v3152 = vpop.f32.mrb[0].mxu0
        %v3153 = vadd.f32 0.0, %v3152
        %v3154 = vpop.f32.mrb[0].mxu0
        %3155 = vdwg.mxu0
        %v3156 = vsub.f32 %v3083, %v3153
        %v3157 = vmul.f32 %v3156, %v3156
        %3158 = vmatprep.subr.mxu0 0.0
        %3159 = vmatpush1.msra.mxu0 %v1332
        %3160 = vmatprep.subr.mxu0 0.0
        %3161 = vmatpush1.msra.mxu0 %v1333
        %3162 = vmatprep.subr.mxu0 0.0
        %3163 = vmatpush1.msra.mxu0 %v1334
        %3164 = vmatprep.subr.mxu0 0.0
        %3165 = vmatpush1.msra.mxu0 %v1335
        %3166 = vmatprep.subr.mxu0 0.0
        %3167 = vmatpush1.msra.mxu0 %v1336
        %3168 = vmatprep.subr.mxu0 0.0
        %3169 = vmatpush1.msra.mxu0 %v1337
        %3170 = vmatprep.subr.mxu0 0.0
        %3171 = vmatpush1.msra.mxu0 %v1338
        %3172 = vmatprep.subr.mxu0 0.0
        %3173 = vmatpush1.msra.mxu0 %v1339
        %3174 = vmatprep.subr.mxu0 0.0
        %3175 = vmatpush1.msra.mxu0 %v1340
        %3176 = vmatprep.subr.mxu0 0.0
        %3177 = vmatpush1.msra.mxu0 %v1341
        %3178 = vmatprep.subr.mxu0 0.0
        %3179 = vmatpush1.msra.mxu0 %v1342
        %3180 = vmatprep.subr.mxu0 0.0
        %3181 = vmatpush1.msra.mxu0 %v1343
        %3182 = vmatprep.subr.mxu0 0.0
        %3183 = vmatpush1.msra.mxu0 %v1344
        %3184 = vmatprep.subr.mxu0 0.0
        %3185 = vmatpush1.msra.mxu0 %v1345
        %3186 = vmatprep.subr.mxu0 0.0
        %3187 = vmatpush1.msra.mxu0 %v1346
        %3188 = vmatprep.subr.mxu0 0.0
        %3189 = vmatpush1.msra.mxu0 %v1347
        %3190 = vmatprep.subr.mxu0 0.0
        %3191 = vmatpush1.msra.mxu0 0.0
        %3192 = vmatprep.subr.mxu0 0.0
        %3193 = vmatpush1.msra.mxu0 0.0
        %3194 = vmatprep.subr.mxu0 0.0
        %3195 = vmatpush1.msra.mxu0 0.0
        %3196 = vmatprep.subr.mxu0 0.0
        %3197 = vmatpush1.msra.mxu0 0.0
        %3198 = vmatprep.subr.mxu0 0.0
        %3199 = vmatpush1.msra.mxu0 0.0
        %3200 = vmatprep.subr.mxu0 0.0
        %3201 = vmatpush1.msra.mxu0 0.0
        %3202 = vmatprep.subr.mxu0 0.0
        %3203 = vmatpush1.msra.mxu0 0.0
        %3204 = vmatprep.subr.mxu0 0.0
        %3205 = vmatpush1.msra.mxu0 0.0
        %3206 = vmatprep.subr.mxu0 0.0
        %3207 = vmatpush1.msra.mxu0 0.0
        %3208 = vmatprep.subr.mxu0 0.0
        %3209 = vmatpush1.msra.mxu0 0.0
        %3210 = vmatprep.subr.mxu0 0.0
        %3211 = vmatpush1.msra.mxu0 0.0
        %3212 = vmatprep.subr.mxu0 0.0
        %3213 = vmatpush1.msra.mxu0 0.0
        %3214 = vmatprep.subr.mxu0 0.0
        %3215 = vmatpush1.msra.mxu0 0.0
        %3216 = vmatprep.subr.mxu0 0.0
        %3217 = vmatpush1.msra.mxu0 0.0
        %3218 = vmatprep.subr.mxu0 0.0
        %3219 = vmatpush1.msra.mxu0 0.0
        %3220 = vmatprep.subr.mxu0 0.0
        %3221 = vmatpush1.msra.mxu0 0.0
        %3222 = vmatprep.mubr.f32.mxu0 0.0
        %3223 = vmatmul.mubr.f32.gmra.mrb[0].mxu0 %v3157
        %v3224 = vpop.f32.mrb[0].mxu0
        %v3225 = vadd.f32 1e-05, %v3224
        %v3226 = vpop.f32.mrb[0].mxu0
        %3227 = vdwg.mxu0
        %v3228 = vrsqrt.pop %v3225
        %v3229 = vmul.f32 %v3156, %v3228
        %v3231 = vlaneseq
        %v3232 = vshrl.u32 %v3231, 7
        %v3233 = vsub.s32 0, %v3232
        %v3234 = vrot.slane %v3084, %v3233
        %v3236 = vmul.f32 %v3229, %v3234
        %v3238 = vlaneseq
        %v3239 = vshrl.u32 %v3238, 7
        %v3240 = vsub.s32 0, %v3239
        %v3241 = vrot.slane %v3085, %v3240
        %v3243 = vadd.f32 %v3236, %v3241
        %v3244 = vld [vmem:[%s1137] sm:$0xff]
        %v3245 = vld [vmem:[%s1137 + $0x8] sm:$0xff]
        %v3246 = vld [vmem:[%s1137 + $0x10] sm:$0xff]
        %v3247 = vld [vmem:[%s1137 + $0x18] sm:$0xff]
        %v3248 = vld [vmem:[%s1137 + $0x20] sm:$0xff]
        %v3249 = vld [vmem:[%s1137 + $0x28] sm:$0xff]
        %v3250 = vld [vmem:[%s1137 + $0x30] sm:$0xff]
        %v3251 = vld [vmem:[%s1137 + $0x38] sm:$0xff]
        %v3252 = vld [vmem:[%s1137 + $0x40] sm:$0xff]
        %v3253 = vld [vmem:[%s1137 + $0x48] sm:$0xff]
        %v3254 = vld [vmem:[%s1137 + $0x50] sm:$0xff]
        %v3255 = vld [vmem:[%s1137 + $0x58] sm:$0xff]
        %v3256 = vld [vmem:[%s1137 + $0x60] sm:$0xff]
        %v3257 = vld [vmem:[%s1137 + $0x68] sm:$0xff]
        %v3258 = vld [vmem:[%s1137 + $0x70] sm:$0xff]
        %v3259 = vld [vmem:[%s1137 + $0x78] sm:$0xff]
        %v3260 = vld [vmem:[%s1137 + $0x80] sm:$0xff]
        %v3261 = vld [vmem:[%s1137 + $0x88] sm:$0xff]
        %v3262 = vld [vmem:[%s1137 + $0x90] sm:$0xff]
        %v3263 = vld [vmem:[%s1137 + $0x98] sm:$0xff]
        %v3264 = vld [vmem:[%s1137 + $0xa0] sm:$0xff]
        %v3265 = vld [vmem:[%s1137 + $0xa8] sm:$0xff]
        %v3266 = vld [vmem:[%s1137 + $0xb0] sm:$0xff]
        %v3267 = vld [vmem:[%s1137 + $0xb8] sm:$0xff]
        %v3268 = vld [vmem:[%s1137 + $0xc0] sm:$0xff]
        %v3269 = vld [vmem:[%s1137 + $0xc8] sm:$0xff]
        %v3270 = vld [vmem:[%s1137 + $0xd0] sm:$0xff]
        %v3271 = vld [vmem:[%s1137 + $0xd8] sm:$0xff]
        %v3272 = vld [vmem:[%s1137 + $0xe0] sm:$0xff]
        %v3273 = vld [vmem:[%s1137 + $0xe8] sm:$0xff]
        %v3274 = vld [vmem:[%s1137 + $0xf0] sm:$0xff]
        %v3275 = vld [vmem:[%s1137 + $0xf8] sm:$0xff]
        %v3276 = vld [vmem:[%s1137 + $0x100] sm:$0xff]
        %v3277 = vld [vmem:[%s1137 + $0x108] sm:$0xff]
        %v3278 = vld [vmem:[%s1137 + $0x110] sm:$0xff]
        %v3279 = vld [vmem:[%s1137 + $0x118] sm:$0xff]
        %v3280 = vld [vmem:[%s1137 + $0x120] sm:$0xff]
        %v3281 = vld [vmem:[%s1137 + $0x128] sm:$0xff]
        %v3282 = vld [vmem:[%s1137 + $0x130] sm:$0xff]
        %v3283 = vld [vmem:[%s1137 + $0x138] sm:$0xff]
        %v3284 = vld [vmem:[%s1137 + $0x140] sm:$0xff]
        %v3285 = vld [vmem:[%s1137 + $0x148] sm:$0xff]
        %v3286 = vld [vmem:[%s1137 + $0x150] sm:$0xff]
        %v3287 = vld [vmem:[%s1137 + $0x158] sm:$0xff]
        %v3288 = vld [vmem:[%s1137 + $0x160] sm:$0xff]
        %v3289 = vld [vmem:[%s1137 + $0x168] sm:$0xff]
        %v3290 = vld [vmem:[%s1137 + $0x170] sm:$0xff]
        %v3291 = vld [vmem:[%s1137 + $0x178] sm:$0xff]
        %v3292 = vld [vmem:[%s1137 + $0x180] sm:$0xff]
        %v3293 = vld [vmem:[%s1137 + $0x188] sm:$0xff]
        %v3294 = vld [vmem:[%s1137 + $0x190] sm:$0xff]
        %v3295 = vld [vmem:[%s1137 + $0x198] sm:$0xff]
        %v3296 = vld [vmem:[%s1137 + $0x1a0] sm:$0xff]
        %v3297 = vld [vmem:[%s1137 + $0x1a8] sm:$0xff]
        %v3298 = vld [vmem:[%s1137 + $0x1b0] sm:$0xff]
        %v3299 = vld [vmem:[%s1137 + $0x1b8] sm:$0xff]
        %v3300 = vld [vmem:[%s1137 + $0x1c0] sm:$0xff]
        %v3301 = vld [vmem:[%s1137 + $0x1c8] sm:$0xff]
        %v3302 = vld [vmem:[%s1137 + $0x1d0] sm:$0xff]
        %v3303 = vld [vmem:[%s1137 + $0x1d8] sm:$0xff]
        %v3304 = vld [vmem:[%s1137 + $0x1e0] sm:$0xff]
        %v3305 = vld [vmem:[%s1137 + $0x1e8] sm:$0xff]
        %v3306 = vld [vmem:[%s1137 + $0x1f0] sm:$0xff]
        %v3307 = vld [vmem:[%s1137 + $0x1f8] sm:$0xff]
        %v3308 = vld [vmem:[%s1321] sm:$0xf]
        %v3310 = vlaneseq
        %v3311 = vshrl.u32 %v3310, 7
        %v3312 = vsub.s32 0, %v3311
        %v3313 = vrot.slane %v3308, %v3312
        %v3314 = vlaneseq
        %v3315 = vshrl.u32 %v3314, 7
        %v3316 = vsub.s32 1, %v3315
        %v3317 = vrot.slane %v3308, %v3316
        %v3318 = vlaneseq
        %v3319 = vshrl.u32 %v3318, 7
        %v3320 = vsub.s32 2, %v3319
        %v3321 = vrot.slane %v3308, %v3320
        %v3322 = vlaneseq
        %v3323 = vshrl.u32 %v3322, 7
        %v3324 = vsub.s32 3, %v3323
        %v3325 = vrot.slane %v3308, %v3324
        %3330 = vmatprep.subr.mxu0 %v3245
        %3331 = vmatpush1.msra.mxu0 %v3244
        %3332 = vmatprep.subr.mxu0 %v3249
        %3333 = vmatpush1.msra.mxu0 %v3248
        %3334 = vmatprep.subr.mxu0 %v3253
        %3335 = vmatpush1.msra.mxu0 %v3252
        %3336 = vmatprep.subr.mxu0 %v3257
        %3337 = vmatpush1.msra.mxu0 %v3256
        %3338 = vmatprep.subr.mxu0 %v3261
        %3339 = vmatpush1.msra.mxu0 %v3260
        %3340 = vmatprep.subr.mxu0 %v3265
        %3341 = vmatpush1.msra.mxu0 %v3264
        %3342 = vmatprep.subr.mxu0 %v3269
        %3343 = vmatpush1.msra.mxu0 %v3268
        %3344 = vmatprep.subr.mxu0 %v3273
        %3345 = vmatpush1.msra.mxu0 %v3272
        %3346 = vmatprep.subr.mxu0 %v3277
        %3347 = vmatpush1.msra.mxu0 %v3276
        %3348 = vmatprep.subr.mxu0 %v3281
        %3349 = vmatpush1.msra.mxu0 %v3280
        %3350 = vmatprep.subr.mxu0 %v3285
        %3351 = vmatpush1.msra.mxu0 %v3284
        %3352 = vmatprep.subr.mxu0 %v3289
        %3353 = vmatpush1.msra.mxu0 %v3288
        %3354 = vmatprep.subr.mxu0 %v3293
        %3355 = vmatpush1.msra.mxu0 %v3292
        %3356 = vmatprep.subr.mxu0 %v3297
        %3357 = vmatpush1.msra.mxu0 %v3296
        %3358 = vmatprep.subr.mxu0 %v3301
        %3359 = vmatpush1.msra.mxu0 %v3300
        %3360 = vmatprep.subr.mxu0 %v3305
        %3361 = vmatpush1.msra.mxu0 %v3304
        %3362 = vmatprep.subr.mxu0 0.0
        %3363 = vmatpush1.msra.mxu0 0.0
        %3364 = vmatprep.subr.mxu0 0.0
        %3365 = vmatpush1.msra.mxu0 0.0
        %3366 = vmatprep.subr.mxu0 0.0
        %3367 = vmatpush1.msra.mxu0 0.0
        %3368 = vmatprep.subr.mxu0 0.0
        %3369 = vmatpush1.msra.mxu0 0.0
        %3370 = vmatprep.subr.mxu0 0.0
        %3371 = vmatpush1.msra.mxu0 0.0
        %3372 = vmatprep.subr.mxu0 0.0
        %3373 = vmatpush1.msra.mxu0 0.0
        %3374 = vmatprep.subr.mxu0 0.0
        %3375 = vmatpush1.msra.mxu0 0.0
        %3376 = vmatprep.subr.mxu0 0.0
        %3377 = vmatpush1.msra.mxu0 0.0
        %3378 = vmatprep.subr.mxu0 0.0
        %3379 = vmatpush1.msra.mxu0 0.0
        %3380 = vmatprep.subr.mxu0 0.0
        %3381 = vmatpush1.msra.mxu0 0.0
        %3382 = vmatprep.subr.mxu0 0.0
        %3383 = vmatpush1.msra.mxu0 0.0
        %3384 = vmatprep.subr.mxu0 0.0
        %3385 = vmatpush1.msra.mxu0 0.0
        %3386 = vmatprep.subr.mxu0 0.0
        %3387 = vmatpush1.msra.mxu0 0.0
        %3388 = vmatprep.subr.mxu0 0.0
        %3389 = vmatpush1.msra.mxu0 0.0
        %3390 = vmatprep.subr.mxu0 0.0
        %3391 = vmatpush1.msra.mxu0 0.0
        %3392 = vmatprep.subr.mxu0 0.0
        %3393 = vmatpush1.msra.mxu0 0.0
        %3394 = vmatprep.mubr.f32.mxu0 0.0
        %3395 = vmatmul.mubr.f32.gmra.mrb[0].mxu0 %v3243
        %v3396 = vpop.f32.mrb[0].mxu0
        %v3397 = vadd.f32 %v3313, %v3396
        %v3398 = vpop.f32.mrb[0].mxu0
        %v3399 = vadd.f32 %v3317, %v3398
        %3400 = vdwg.mxu0
        %3401 = vmatprep.subr.mxu0 %v3247
        %3402 = vmatpush1.msra.mxu0 %v3246
        %3403 = vmatprep.subr.mxu0 %v3251
        %3404 = vmatpush1.msra.mxu0 %v3250
        %3405 = vmatprep.subr.mxu0 %v3255
        %3406 = vmatpush1.msra.mxu0 %v3254
        %3407 = vmatprep.subr.mxu0 %v3259
        %3408 = vmatpush1.msra.mxu0 %v3258
        %3409 = vmatprep.subr.mxu0 %v3263
        %3410 = vmatpush1.msra.mxu0 %v3262
        %3411 = vmatprep.subr.mxu0 %v3267
        %3412 = vmatpush1.msra.mxu0 %v3266
        %3413 = vmatprep.subr.mxu0 %v3271
        %3414 = vmatpush1.msra.mxu0 %v3270
        %3415 = vmatprep.subr.mxu0 %v3275
        %3416 = vmatpush1.msra.mxu0 %v3274
        %3417 = vmatprep.subr.mxu0 %v3279
        %3418 = vmatpush1.msra.mxu0 %v3278
        %3419 = vmatprep.subr.mxu0 %v3283
        %3420 = vmatpush1.msra.mxu0 %v3282
        %3421 = vmatprep.subr.mxu0 %v3287
        %3422 = vmatpush1.msra.mxu0 %v3286
        %3423 = vmatprep.subr.mxu0 %v3291
        %3424 = vmatpush1.msra.mxu0 %v3290
        %3425 = vmatprep.subr.mxu0 %v3295
        %3426 = vmatpush1.msra.mxu0 %v3294
        %3427 = vmatprep.subr.mxu0 %v3299
        %3428 = vmatpush1.msra.mxu0 %v3298
        %3429 = vmatprep.subr.mxu0 %v3303
        %3430 = vmatpush1.msra.mxu0 %v3302
        %3431 = vmatprep.subr.mxu0 %v3307
        %3432 = vmatpush1.msra.mxu0 %v3306
        %3433 = vmatprep.subr.mxu0 0.0
        %3434 = vmatpush1.msra.mxu0 0.0
        %3435 = vmatprep.subr.mxu0 0.0
        %3436 = vmatpush1.msra.mxu0 0.0
        %3437 = vmatprep.subr.mxu0 0.0
        %3438 = vmatpush1.msra.mxu0 0.0
        %3439 = vmatprep.subr.mxu0 0.0
        %3440 = vmatpush1.msra.mxu0 0.0
        %3441 = vmatprep.subr.mxu0 0.0
        %3442 = vmatpush1.msra.mxu0 0.0
        %3443 = vmatprep.subr.mxu0 0.0
        %3444 = vmatpush1.msra.mxu0 0.0
        %3445 = vmatprep.subr.mxu0 0.0
        %3446 = vmatpush1.msra.mxu0 0.0
        %3447 = vmatprep.subr.mxu0 0.0
        %3448 = vmatpush1.msra.mxu0 0.0
        %3449 = vmatprep.subr.mxu0 0.0
        %3450 = vmatpush1.msra.mxu0 0.0
        %3451 = vmatprep.subr.mxu0 0.0
        %3452 = vmatpush1.msra.mxu0 0.0
        %3453 = vmatprep.subr.mxu0 0.0
        %3454 = vmatpush1.msra.mxu0 0.0
        %3455 = vmatprep.subr.mxu0 0.0
        %3456 = vmatpush1.msra.mxu0 0.0
        %3457 = vmatprep.subr.mxu0 0.0
        %3458 = vmatpush1.msra.mxu0 0.0
        %3459 = vmatprep.subr.mxu0 0.0
        %3460 = vmatpush1.msra.mxu0 0.0
        %3461 = vmatprep.subr.mxu0 0.0
        %3462 = vmatpush1.msra.mxu0 0.0
        %3463 = vmatprep.subr.mxu0 0.0
        %3464 = vmatpush1.msra.mxu0 0.0
        %3465 = vmatprep.mubr.f32.mxu0 0.0
        %3466 = vmatmul.mubr.f32.gmra.mrb[0].mxu0 %v3243
        %v3467 = vpop.f32.mrb[0].mxu0
        %v3468 = vadd.f32 %v3321, %v3467
        %v3469 = vpop.f32.mrb[0].mxu0
        %v3470 = vadd.f32 %v3325, %v3469
        %3471 = vdwg.mxu0
        %v3472 = vmul.f32 %v3397, 0.5
        %v3473 = vmul.f32 %v3399, 0.5
        %v3474 = vmul.f32 %v3468, 0.5
        %v3475 = vmul.f32 %v3470, 0.5
        %v3476 = vmul.f32 %v3397, 0.70710677
        %v3477 = vmul.f32 %v3399, 0.70710677
        %v3478 = vmul.f32 %v3468, 0.70710677
        %v3479 = vmul.f32 %v3470, 0.70710677
        %v3480 = verf.f32.pop %v3476
        %v3481 = verf.f32.pop %v3477
        %v3482 = verf.f32.pop %v3478
        %v3483 = verf.f32.pop %v3479
        %v3484 = vadd.f32 %v3480, 1.0
        %v3485 = vadd.f32 %v3481, 1.0
        %v3486 = vadd.f32 %v3482, 1.0
        %v3487 = vadd.f32 %v3483, 1.0
        %v3488 = vmul.f32 %v3472, %v3484
        %v3489 = vmul.f32 %v3473, %v3485
        %v3490 = vmul.f32 %v3474, %v3486
        %v3491 = vmul.f32 %v3475, %v3487
        %v3492 = vld [vmem:[%s1146] sm:$0xff]
        %v3493 = vld [vmem:[%s1146 + $0x8] sm:$0xff]
        %v3494 = vld [vmem:[%s1146 + $0x10] sm:$0xff]
        %v3495 = vld [vmem:[%s1146 + $0x18] sm:$0xff]
        %v3496 = vld [vmem:[%s1146 + $0x20] sm:$0xff]
        %v3497 = vld [vmem:[%s1146 + $0x28] sm:$0xff]
        %v3498 = vld [vmem:[%s1146 + $0x30] sm:$0xff]
        %v3499 = vld [vmem:[%s1146 + $0x38] sm:$0xff]
        %v3500 = vld [vmem:[%s1146 + $0x40] sm:$0xff]
        %v3501 = vld [vmem:[%s1146 + $0x48] sm:$0xff]
        %v3502 = vld [vmem:[%s1146 + $0x50] sm:$0xff]
        %v3503 = vld [vmem:[%s1146 + $0x58] sm:$0xff]
        %v3504 = vld [vmem:[%s1146 + $0x60] sm:$0xff]
        %v3505 = vld [vmem:[%s1146 + $0x68] sm:$0xff]
        %v3506 = vld [vmem:[%s1146 + $0x70] sm:$0xff]
        %v3507 = vld [vmem:[%s1146 + $0x78] sm:$0xff]
        %v3508 = vld [vmem:[%s1146 + $0x80] sm:$0xff]
        %v3509 = vld [vmem:[%s1146 + $0x88] sm:$0xff]
        %v3510 = vld [vmem:[%s1146 + $0x90] sm:$0xff]
        %v3511 = vld [vmem:[%s1146 + $0x98] sm:$0xff]
        %v3512 = vld [vmem:[%s1146 + $0xa0] sm:$0xff]
        %v3513 = vld [vmem:[%s1146 + $0xa8] sm:$0xff]
        %v3514 = vld [vmem:[%s1146 + $0xb0] sm:$0xff]
        %v3515 = vld [vmem:[%s1146 + $0xb8] sm:$0xff]
        %v3516 = vld [vmem:[%s1146 + $0xc0] sm:$0xff]
        %v3517 = vld [vmem:[%s1146 + $0xc8] sm:$0xff]
        %v3518 = vld [vmem:[%s1146 + $0xd0] sm:$0xff]
        %v3519 = vld [vmem:[%s1146 + $0xd8] sm:$0xff]
        %v3520 = vld [vmem:[%s1146 + $0xe0] sm:$0xff]
        %v3521 = vld [vmem:[%s1146 + $0xe8] sm:$0xff]
        %v3522 = vld [vmem:[%s1146 + $0xf0] sm:$0xff]
        %v3523 = vld [vmem:[%s1146 + $0xf8] sm:$0xff]
        %v3524 = vld [vmem:[%s1146 + $0x100] sm:$0xff]
        %v3525 = vld [vmem:[%s1146 + $0x108] sm:$0xff]
        %v3526 = vld [vmem:[%s1146 + $0x110] sm:$0xff]
        %v3527 = vld [vmem:[%s1146 + $0x118] sm:$0xff]
        %v3528 = vld [vmem:[%s1146 + $0x120] sm:$0xff]
        %v3529 = vld [vmem:[%s1146 + $0x128] sm:$0xff]
        %v3530 = vld [vmem:[%s1146 + $0x130] sm:$0xff]
        %v3531 = vld [vmem:[%s1146 + $0x138] sm:$0xff]
        %v3532 = vld [vmem:[%s1146 + $0x140] sm:$0xff]
        %v3533 = vld [vmem:[%s1146 + $0x148] sm:$0xff]
        %v3534 = vld [vmem:[%s1146 + $0x150] sm:$0xff]
        %v3535 = vld [vmem:[%s1146 + $0x158] sm:$0xff]
        %v3536 = vld [vmem:[%s1146 + $0x160] sm:$0xff]
        %v3537 = vld [vmem:[%s1146 + $0x168] sm:$0xff]
        %v3538 = vld [vmem:[%s1146 + $0x170] sm:$0xff]
        %v3539 = vld [vmem:[%s1146 + $0x178] sm:$0xff]
        %v3540 = vld [vmem:[%s1146 + $0x180] sm:$0xff]
        %v3541 = vld [vmem:[%s1146 + $0x188] sm:$0xff]
        %v3542 = vld [vmem:[%s1146 + $0x190] sm:$0xff]
        %v3543 = vld [vmem:[%s1146 + $0x198] sm:$0xff]
        %v3544 = vld [vmem:[%s1146 + $0x1a0] sm:$0xff]
        %v3545 = vld [vmem:[%s1146 + $0x1a8] sm:$0xff]
        %v3546 = vld [vmem:[%s1146 + $0x1b0] sm:$0xff]
        %v3547 = vld [vmem:[%s1146 + $0x1b8] sm:$0xff]
        %v3548 = vld [vmem:[%s1146 + $0x1c0] sm:$0xff]
        %v3549 = vld [vmem:[%s1146 + $0x1c8] sm:$0xff]
        %v3550 = vld [vmem:[%s1146 + $0x1d0] sm:$0xff]
        %v3551 = vld [vmem:[%s1146 + $0x1d8] sm:$0xff]
        %v3552 = vld [vmem:[%s1146 + $0x1e0] sm:$0xff]
        %v3553 = vld [vmem:[%s1146 + $0x1e8] sm:$0xff]
        %v3554 = vld [vmem:[%s1146 + $0x1f0] sm:$0xff]
        %v3555 = vld [vmem:[%s1146 + $0x1f8] sm:$0xff]
        %v3556 = vld [vmem:[%s1324] sm:$0x1]
        %v3558 = vlaneseq
        %v3559 = vshrl.u32 %v3558, 7
        %v3560 = vsub.s32 0, %v3559
        %v3561 = vrot.slane %v3556, %v3560
        %3563 = vmatprep.subr.mxu0 0.0
        %3564 = vmatpush1.msra.mxu0 %v3492
        %3565 = vmatprep.subr.mxu0 0.0
        %3566 = vmatpush1.msra.mxu0 %v3493
        %3567 = vmatprep.subr.mxu0 0.0
        %3568 = vmatpush1.msra.mxu0 %v3494
        %3569 = vmatprep.subr.mxu0 0.0
        %3570 = vmatpush1.msra.mxu0 %v3495
        %3571 = vmatprep.subr.mxu0 0.0
        %3572 = vmatpush1.msra.mxu0 %v3496
        %3573 = vmatprep.subr.mxu0 0.0
        %3574 = vmatpush1.msra.mxu0 %v3497
        %3575 = vmatprep.subr.mxu0 0.0
        %3576 = vmatpush1.msra.mxu0 %v3498
        %3577 = vmatprep.subr.mxu0 0.0
        %3578 = vmatpush1.msra.mxu0 %v3499
        %3579 = vmatprep.subr.mxu0 0.0
        %3580 = vmatpush1.msra.mxu0 %v3500
        %3581 = vmatprep.subr.mxu0 0.0
        %3582 = vmatpush1.msra.mxu0 %v3501
        %3583 = vmatprep.subr.mxu0 0.0
        %3584 = vmatpush1.msra.mxu0 %v3502
        %3585 = vmatprep.subr.mxu0 0.0
        %3586 = vmatpush1.msra.mxu0 %v3503
        %3587 = vmatprep.subr.mxu0 0.0
        %3588 = vmatpush1.msra.mxu0 %v3504
        %3589 = vmatprep.subr.mxu0 0.0
        %3590 = vmatpush1.msra.mxu0 %v3505
        %3591 = vmatprep.subr.mxu0 0.0
        %3592 = vmatpush1.msra.mxu0 %v3506
        %3593 = vmatprep.subr.mxu0 0.0
        %3594 = vmatpush1.msra.mxu0 %v3507
        %3595 = vmatprep.subr.mxu0 0.0
        %3596 = vmatpush1.msra.mxu0 %v3508
        %3597 = vmatprep.subr.mxu0 0.0
        %3598 = vmatpush1.msra.mxu0 %v3509
        %3599 = vmatprep.subr.mxu0 0.0
        %3600 = vmatpush1.msra.mxu0 %v3510
        %3601 = vmatprep.subr.mxu0 0.0
        %3602 = vmatpush1.msra.mxu0 %v3511
        %3603 = vmatprep.subr.mxu0 0.0
        %3604 = vmatpush1.msra.mxu0 %v3512
        %3605 = vmatprep.subr.mxu0 0.0
        %3606 = vmatpush1.msra.mxu0 %v3513
        %3607 = vmatprep.subr.mxu0 0.0
        %3608 = vmatpush1.msra.mxu0 %v3514
        %3609 = vmatprep.subr.mxu0 0.0
        %3610 = vmatpush1.msra.mxu0 %v3515
        %3611 = vmatprep.subr.mxu0 0.0
        %3612 = vmatpush1.msra.mxu0 %v3516
        %3613 = vmatprep.subr.mxu0 0.0
        %3614 = vmatpush1.msra.mxu0 %v3517
        %3615 = vmatprep.subr.mxu0 0.0
        %3616 = vmatpush1.msra.mxu0 %v3518
        %3617 = vmatprep.subr.mxu0 0.0
        %3618 = vmatpush1.msra.mxu0 %v3519
        %3619 = vmatprep.subr.mxu0 0.0
        %3620 = vmatpush1.msra.mxu0 %v3520
        %3621 = vmatprep.subr.mxu0 0.0
        %3622 = vmatpush1.msra.mxu0 %v3521
        %3623 = vmatprep.subr.mxu0 0.0
        %3624 = vmatpush1.msra.mxu0 %v3522
        %3625 = vmatprep.subr.mxu0 0.0
        %3626 = vmatpush1.msra.mxu0 %v3523
        %3627 = vmatprep.mubr.f32.mxu0 %v3489
        %3628 = vmatmul.mubr.f32.gmra.mrb[0].mxu0 %v3488
        %v3629 = vpop.f32.mrb[0].mxu0
        %v3630 = vadd.f32 %v3561, %v3629
        %v3631 = vpop.f32.mrb[0].mxu0
        %3632 = vdwg.mxu0
        %3633 = vmatprep.subr.mxu0 0.0
        %3634 = vmatpush1.msra.mxu0 %v3524
        %3635 = vmatprep.subr.mxu0 0.0
        %3636 = vmatpush1.msra.mxu0 %v3525
        %3637 = vmatprep.subr.mxu0 0.0
        %3638 = vmatpush1.msra.mxu0 %v3526
        %3639 = vmatprep.subr.mxu0 0.0
        %3640 = vmatpush1.msra.mxu0 %v3527
        %3641 = vmatprep.subr.mxu0 0.0
        %3642 = vmatpush1.msra.mxu0 %v3528
        %3643 = vmatprep.subr.mxu0 0.0
        %3644 = vmatpush1.msra.mxu0 %v3529
        %3645 = vmatprep.subr.mxu0 0.0
        %3646 = vmatpush1.msra.mxu0 %v3530
        %3647 = vmatprep.subr.mxu0 0.0
        %3648 = vmatpush1.msra.mxu0 %v3531
        %3649 = vmatprep.subr.mxu0 0.0
        %3650 = vmatpush1.msra.mxu0 %v3532
        %3651 = vmatprep.subr.mxu0 0.0
        %3652 = vmatpush1.msra.mxu0 %v3533
        %3653 = vmatprep.subr.mxu0 0.0
        %3654 = vmatpush1.msra.mxu0 %v3534
        %3655 = vmatprep.subr.mxu0 0.0
        %3656 = vmatpush1.msra.mxu0 %v3535
        %3657 = vmatprep.subr.mxu0 0.0
        %3658 = vmatpush1.msra.mxu0 %v3536
        %3659 = vmatprep.subr.mxu0 0.0
        %3660 = vmatpush1.msra.mxu0 %v3537
        %3661 = vmatprep.subr.mxu0 0.0
        %3662 = vmatpush1.msra.mxu0 %v3538
        %3663 = vmatprep.subr.mxu0 0.0
        %3664 = vmatpush1.msra.mxu0 %v3539
        %3665 = vmatprep.subr.mxu0 0.0
        %3666 = vmatpush1.msra.mxu0 %v3540
        %3667 = vmatprep.subr.mxu0 0.0
        %3668 = vmatpush1.msra.mxu0 %v3541
        %3669 = vmatprep.subr.mxu0 0.0
        %3670 = vmatpush1.msra.mxu0 %v3542
        %3671 = vmatprep.subr.mxu0 0.0
        %3672 = vmatpush1.msra.mxu0 %v3543
        %3673 = vmatprep.subr.mxu0 0.0
        %3674 = vmatpush1.msra.mxu0 %v3544
        %3675 = vmatprep.subr.mxu0 0.0
        %3676 = vmatpush1.msra.mxu0 %v3545
        %3677 = vmatprep.subr.mxu0 0.0
        %3678 = vmatpush1.msra.mxu0 %v3546
        %3679 = vmatprep.subr.mxu0 0.0
        %3680 = vmatpush1.msra.mxu0 %v3547
        %3681 = vmatprep.subr.mxu0 0.0
        %3682 = vmatpush1.msra.mxu0 %v3548
        %3683 = vmatprep.subr.mxu0 0.0
        %3684 = vmatpush1.msra.mxu0 %v3549
        %3685 = vmatprep.subr.mxu0 0.0
        %3686 = vmatpush1.msra.mxu0 %v3550
        %3687 = vmatprep.subr.mxu0 0.0
        %3688 = vmatpush1.msra.mxu0 %v3551
        %3689 = vmatprep.subr.mxu0 0.0
        %3690 = vmatpush1.msra.mxu0 %v3552
        %3691 = vmatprep.subr.mxu0 0.0
        %3692 = vmatpush1.msra.mxu0 %v3553
        %3693 = vmatprep.subr.mxu0 0.0
        %3694 = vmatpush1.msra.mxu0 %v3554
        %3695 = vmatprep.subr.mxu0 0.0
        %3696 = vmatpush1.msra.mxu0 %v3555
        %3697 = vmatprep.mubr.f32.mxu0 %v3491
        %3698 = vmatmul.mubr.f32.gmra.mrb[0].mxu0 %v3490
        %v3699 = vpop.f32.mrb[0].mxu0
        %v3700 = vadd.f32 %v3630, %v3699
        %v3701 = vpop.f32.mrb[0].mxu0
        %3702 = vdwg.mxu0
        %v3703 = vadd.f32 %v3083, %v3700
        %3704 = vst [vmem:[%s1295] sm:$0xff] %v3703
        %s3705 = sand.u32 %s671, 1
        %s3706 = scalar_lea.sflag [#allocation4], %s3705
        %s3707 = sand.u32 %s671, 1
        %s3708 = smul.addr %s3707, 8
        %s3709 = scalar_lea.vmem [#allocation19], %s3708
        // Predicated region
        $region177: #{tpu_custom_call.1} parent=115 // pred_check
          %p3710 = pneg %p681
        $region178: #{tpu_custom_call.1} parent=115 // pred_check_branch
          %3712 = sbr.rel (%p3710) target = $region180
        $region179: #{tpu_custom_call.1} parent=115 // pred_region
          %s3714 = ssub.s32 128, 128
          %3715 = vsyncadd %s3706, %s3714
          %s3716 = smul.addr %s46, 128
          %s3717 = scalar_lea.hbm %s24, %s3716
          %s3719 = sshll.u32 %s3709, 4
          %s3720 = int_to_ptr.vmem [resolvable:$true] %s3719
          %3722 = dma.vmem_to_hbm [thread:$0]  %s3720, 128, %s3717, %s3706
        $region180: #{tpu_custom_call.1} parent=115 // pred_fallthru
          _
      $region116: #{tpu_custom_call.1} parent=5 // pred_fallthru
        _
      %p3723 = scmp.le.s32.totalorder 2, %s37
      // Predicated region
      $region181: #{tpu_custom_call.1} parent=5 // pred_check
        %p3724 = pneg %p3723
      $region182: #{tpu_custom_call.1} parent=5 // pred_check_branch
        %3726 = sbr.rel (%p3724) target = $region184
      $region183: #{tpu_custom_call.1} parent=5 // pred_region
        %s3727 = ssub.s32 %s37, 2
        // Predicated region
        $region185: #{tpu_custom_call.1} parent=183 // pred_check
          %p3728 = pneg %p687
        $region186: #{tpu_custom_call.1} parent=183 // pred_check_branch
          %3730 = sbr.rel (%p3728) target = $region188
        $region187: #{tpu_custom_call.1} parent=183 // pred_region
          %s3731 = sand.u32 %s672, 1
          %s3732 = scalar_lea.sflag [#allocation4], %s3731
          %s3733 = sand.u32 %s672, 1
          %s3734 = smul.addr %s3733, 8
          %s3735 = scalar_lea.vmem [#allocation19], %s3734
          %3736 = dma.done %s3732, 128
        $region188: #{tpu_custom_call.1} parent=183 // pred_fallthru
          _
      $region184: #{tpu_custom_call.1} parent=5 // pred_fallthru
        _
    $region6: #{tpu_custom_call.1} parent=1 // loop_footer
      %s41 = sadd.s32 1, %s37
    $region7: #{tpu_custom_call.1} parent=1 // loop_footer_branch
      %36 = sbr.rel target = $region3
    $region8: #{tpu_custom_call.1} parent=1 // loop_exit
      _
    %3737 = vsyncpa [#allocation3], 1
    %s3738 = scalar_lea.sflag [#allocation3], 1
    %3739 = vsyncpa %s3738, 1
    %3740 = vsyncpa [#allocation6], 1
    %3741 = vsyncpa [#allocation4], 1
    %s3742 = scalar_lea.sflag [#allocation4], 1
    %3743 = vsyncpa %s3742, 1

</llo_original>
